<compile_context>
chip_gen: v7x
topology: tpu7x:2x2x1
jax: 0.10.0
libtpu: 0.0.40
codegen_flags: <defaults>
</compile_context>

<pallas_src>
import functools

import jax
import jax.numpy as jnp
from jax.experimental import pallas as pl
from jax.experimental.pallas import tpu as pltpu


def _erf_f32(x):
    # Abramowitz & Stegun 7.1.26 rational approximation (max abs err ~1.5e-7).
    # Mosaic has no erf primitive; exp + EUP reciprocal keep this off the VALU.
    a1, a2, a3, a4, a5 = 0.254829592, -0.284496736, 1.421413741, -1.453152027, 1.061405429
    p = 0.3275911
    sgn = jnp.where(x >= 0.0, 1.0, -1.0)
    ax = jnp.abs(x)
    t = pl.reciprocal(1.0 + p * ax, approx=True)          # EUP vrcp (separate slot)
    poly = ((((a5 * t + a4) * t + a3) * t + a2) * t + a1) * t
    return sgn * (1.0 - poly * jnp.exp(-ax * ax))


def _gelu_exact(x):
    # nn.GELU() default = exact (erf) formulation.
    return 0.5 * x * (1.0 + _erf_f32(x * 0.7071067811865476))


def _convnext_block2_kernel(
    x_ref,      # (1, C, T)  f32  NCL input block (one batch element)
    dww_ref,    # (7, C)     f32  depthwise conv weights (tap, channel)
    dwb_ref,    # (1, C)     f32  depthwise conv bias
    lnw_ref,    # (1, C)     f32  LayerNorm weight
    lnb_ref,    # (1, C)     f32  LayerNorm bias
    w1_ref,     # (C, I)     bf16 pwconv1 weight (transposed for x @ W)
    b1_ref,     # (1, I)     f32
    gg_ref,     # (1, I)     f32  GRN gamma
    gb_ref,     # (1, I)     f32  GRN beta
    w2_ref,     # (I, C)     bf16 pwconv2 weight (transposed)
    b2_ref,     # (1, C)     f32
    o_ref,      # (1, C, T)  f32  NCL output block
):
    C = o_ref.shape[1]
    T = o_ref.shape[2]

    x_ct = x_ref[0].astype(jnp.float32)            # (C, T)  residual kept in NCL
    xt = jnp.transpose(x_ct, (1, 0))               # (T, C)  channels-last working copy

    # ---- depthwise Conv1d, kernel_size=7, padding=3, groups=dim ----
    # tap k reads x[t + k - 3]; realized as a circular roll by (3 - k) along the
    # sublane (T) axis (XLU) with the wrapped boundary rows masked to zero.
    row = jax.lax.broadcasted_iota(jnp.int32, (T, C), 0)
    y = xt * dww_ref[3:4, :]                       # center tap seeds the accumulator
    for k in (0, 1, 2, 4, 5, 6):                   # static unrolled taps
        s = 3 - k
        rolled = pltpu.roll(xt, shift=s % T, axis=0)
        valid = (row >= s) if s > 0 else (row < T + s)
        y = y + jnp.where(valid, rolled, 0.0) * dww_ref[k:k + 1, :]
    y = y + dwb_ref[...]

    # ---- LayerNorm over channel dim (eps=1e-6, biased variance) ----
    mean = jnp.mean(y, axis=-1, keepdims=True)
    d = y - mean
    var = jnp.mean(d * d, axis=-1, keepdims=True)
    y = d * jax.lax.rsqrt(var + 1e-6)
    y = y * lnw_ref[...] + lnb_ref[...]

    # ---- pwconv1 (Linear dim -> intermediate_dim), bf16 MXU / f32 acc, exact GELU ----
    h = jnp.dot(y.astype(jnp.bfloat16), w1_ref[...],
                preferred_element_type=jnp.float32) + b1_ref[...]
    h = _gelu_exact(h)                             # (T, I) f32

    # ---- GRN: L2 norm over the sequence dim, normalize by channel-mean ----
    gx = jnp.sqrt(jnp.sum(h * h, axis=0, keepdims=True))          # (1, I)
    mean_gx = jnp.mean(gx, axis=-1, keepdims=True)                 # (1, 1)
    nx = gx * pl.reciprocal(mean_gx + 1e-6, approx=True)           # (1, I)
    # folded affine: gamma*(h*nx) + beta + h == h*(1 + gamma*nx) + beta
    h = h * (1.0 + gg_ref[...] * nx) + gb_ref[...]

    # ---- pwconv2 (Linear intermediate_dim -> dim), residual add, back to NCL ----
    out = jnp.dot(h.astype(jnp.bfloat16), w2_ref[...],
                  preferred_element_type=jnp.float32) + b2_ref[...]   # (T, C)
    o_ref[...] = (x_ct + jnp.transpose(out, (1, 0)))[None].astype(o_ref.dtype)


def convnext_block2(x, params):
    """x: (B, C, T) float32 (PyTorch NCL).  Returns (B, C, T)."""
    B, C, T = x.shape
    I = params["w1"].shape[1]

    # Pre-cast the two big matmul weights to bf16 (halves their DMA + native MXU dtype).
    w1 = params["w1"].astype(jnp.bfloat16)
    w2 = params["w2"].astype(jnp.bfloat16)

    full = lambda b: (0, 0)
    # NOTE: for large C/I, add pipeline_mode=pl.Buffered(1) on the constant-index weight
    # specs below and set pltpu.CompilerParams(vmem_limit_bytes=...) to free VMEM on v7x.
    out = pl.pallas_call(
        _convnext_block2_kernel,
        out_shape=jax.ShapeDtypeStruct((B, C, T), x.dtype),
        grid_spec=pltpu.PrefetchScalarGridSpec(
            num_scalar_prefetch=0,
            grid=(B,),
            in_specs=[
                pl.BlockSpec((1, C, T), lambda b: (b, 0, 0)),
                pl.BlockSpec((7, C), full),
                pl.BlockSpec((1, C), full),
                pl.BlockSpec((1, C), full),
                pl.BlockSpec((1, C), full),
                pl.BlockSpec((C, I), full),
                pl.BlockSpec((1, I), full),
                pl.BlockSpec((1, I), full),
                pl.BlockSpec((1, I), full),
                pl.BlockSpec((I, C), full),
                pl.BlockSpec((1, C), full),
            ],
            out_specs=pl.BlockSpec((1, C, T), lambda b: (b, 0, 0)),
        ),
        compiler_params=pltpu.CompilerParams(dimension_semantics=("parallel",)),
    )(
        x,
        params["dw_w"], params["dw_b"],
        params["ln_w"], params["ln_b"],
        w1, params["b1"],
        params["grn_g"], params["grn_b"],
        w2, params["b2"],
    )
    return out


def init_params(key, dim, intermediate_dim):
    ks = jax.random.split(key, 8)
    s = 0.02
    # torch dwconv.weight is (dim, 1, 7); stored as (7, dim): dw_w[k, c] = w[c, 0, k]
    dw_w = jax.random.normal(ks[0], (7, dim), jnp.float32) * s
    dw_b = jax.random.normal(ks[1], (1, dim), jnp.float32) * s
    ln_w = jnp.ones((1, dim), jnp.float32)
    ln_b = jnp.zeros((1, dim), jnp.float32)
    # torch pwconv1.weight is (I, dim); stored transposed (dim, I) for x @ W
    w1 = jax.random.normal(ks[2], (dim, intermediate_dim), jnp.float32) * s
    b1 = jax.random.normal(ks[3], (1, intermediate_dim), jnp.float32) * s
    # GRN params (torch inits them to zero; random here to exercise the path)
    grn_g = jax.random.normal(ks[4], (1, intermediate_dim), jnp.float32) * s
    grn_b = jax.random.normal(ks[5], (1, intermediate_dim), jnp.float32) * s
    # torch pwconv2.weight is (dim, I); stored transposed (I, dim)
    w2 = jax.random.normal(ks[6], (intermediate_dim, dim), jnp.float32) * s
    b2 = jax.random.normal(ks[7], (1, dim), jnp.float32) * s
    return dict(dw_w=dw_w, dw_b=dw_b, ln_w=ln_w, ln_b=ln_b,
                w1=w1, b1=b1, grn_g=grn_g, grn_b=grn_b, w2=w2, b2=b2)


if __name__ == "__main__":
    # Small but lane-dense dims: C and I multiples of 128, T = 256 rows of MXU M per step,
    # B = 2 parallel grid steps (feeds both v7x TensorCores).
    B, DIM, INTERMEDIATE, T = 2, 128, 256, 256

    key = jax.random.PRNGKey(0)
    kx, kp = jax.random.split(key)
    x = jax.random.normal(kx, (B, DIM, T), jnp.float32)      # NCL, like nn.Conv1d input
    params = init_params(kp, DIM, INTERMEDIATE)

    fn = jax.jit(functools.partial(convnext_block2, params=params))
    out = fn(x)
    jax.block_until_ready(out)
    assert out.shape == (B, DIM, T) and out.dtype == jnp.float32
    print("KERNEL_OK")
</pallas_src>

<mosaic_0001>
module attributes {stable_mosaic.version = 11 : i64} {
  func.func @_convnext_block2_kernel(%arg0: i32, %arg1: memref<1x128x256xf32, #tpu.memory_space<vmem>>, %arg2: memref<7x128xf32, #tpu.memory_space<vmem>>, %arg3: memref<1x128xf32, #tpu.memory_space<vmem>>, %arg4: memref<1x128xf32, #tpu.memory_space<vmem>>, %arg5: memref<1x128xf32, #tpu.memory_space<vmem>>, %arg6: memref<128x256xbf16, #tpu.memory_space<vmem>>, %arg7: memref<1x256xf32, #tpu.memory_space<vmem>>, %arg8: memref<1x256xf32, #tpu.memory_space<vmem>>, %arg9: memref<1x256xf32, #tpu.memory_space<vmem>>, %arg10: memref<256x128xbf16, #tpu.memory_space<vmem>>, %arg11: memref<1x128xf32, #tpu.memory_space<vmem>>, %arg12: memref<1x128x256xf32, #tpu.memory_space<vmem>>) attributes {dimension_semantics = [#tpu.dimension_semantics<parallel>], iteration_bounds = array<i64: 2>, scalar_prefetch = 0 : i64, scratch_operands = 0 : i64, tpu.core_type = #tpu.core_type<tc>, window_params = [{transform_indices = @transform_0, window_bounds = array<i64: 1, 128, 256>}, {pipeline_mode = #tpu.pipeline_mode<synchronous>, transform_indices = @transform_1, window_bounds = array<i64: 7, 128>}, {pipeline_mode = #tpu.pipeline_mode<synchronous>, transform_indices = @transform_2, window_bounds = array<i64: 1, 128>}, {pipeline_mode = #tpu.pipeline_mode<synchronous>, transform_indices = @transform_3, window_bounds = array<i64: 1, 128>}, {pipeline_mode = #tpu.pipeline_mode<synchronous>, transform_indices = @transform_4, window_bounds = array<i64: 1, 128>}, {pipeline_mode = #tpu.pipeline_mode<synchronous>, transform_indices = @transform_5, window_bounds = array<i64: 128, 256>}, {pipeline_mode = #tpu.pipeline_mode<synchronous>, transform_indices = @transform_6, window_bounds = array<i64: 1, 256>}, {pipeline_mode = #tpu.pipeline_mode<synchronous>, transform_indices = @transform_7, window_bounds = array<i64: 1, 256>}, {pipeline_mode = #tpu.pipeline_mode<synchronous>, transform_indices = @transform_8, window_bounds = array<i64: 1, 256>}, {pipeline_mode = #tpu.pipeline_mode<synchronous>, transform_indices = @transform_9, window_bounds = array<i64: 256, 128>}, {pipeline_mode = #tpu.pipeline_mode<synchronous>, transform_indices = @transform_10, window_bounds = array<i64: 1, 128>}, {transform_indices = @transform_11, window_bounds = array<i64: 1, 128, 256>}]} {
    %c0 = arith.constant 0 : index
    %c0_0 = arith.constant 0 : index
    %c0_1 = arith.constant 0 : index
    %0 = vector.load %arg1[%c0, %c0_0, %c0_1] : memref<1x128x256xf32, #tpu.memory_space<vmem>>, vector<1x128x256xf32>
    %1 = vector.shape_cast %0 : vector<1x128x256xf32> to vector<128x256xf32>
    %2 = tpu.transpose %1, [1, 0] : vector<128x256xf32> -> vector<256x128xf32>
    %3 = tpu.iota {dimensions = array<i32: 0>} : vector<256x128xi32>
    %c3 = arith.constant 3 : index
    %c0_2 = arith.constant 0 : index
    %4 = vector.load %arg2[%c3, %c0_2] : memref<7x128xf32, #tpu.memory_space<vmem>>, vector<1x128xf32>
    %5 = vector.broadcast %4 : vector<1x128xf32> to vector<256x128xf32>
    %6 = arith.mulf %2, %5 : vector<256x128xf32>
    %c3_i32 = arith.constant 3 : i32
    %7 = tpu.dynamic_rotate %2 by %c3_i32 dim 0 : vector<256x128xf32>, i32 -> vector<256x128xf32>
    %c3_i32_3 = arith.constant 3 : i32
    %8 = vector.broadcast %c3_i32_3 : i32 to vector<256x128xi32>
    %9 = arith.cmpi sge, %3, %8 : vector<256x128xi32>
    %cst = arith.constant 0.000000e+00 : f32
    %10 = vector.broadcast %cst : f32 to vector<256x128xf32>
    %11 = arith.select %9, %7, %10 : vector<256x128xi1>, vector<256x128xf32>
    %c0_4 = arith.constant 0 : index
    %c0_5 = arith.constant 0 : index
    %12 = vector.load %arg2[%c0_4, %c0_5] : memref<7x128xf32, #tpu.memory_space<vmem>>, vector<1x128xf32>
    %13 = vector.broadcast %12 : vector<1x128xf32> to vector<256x128xf32>
    %14 = arith.mulf %11, %13 : vector<256x128xf32>
    %15 = arith.addf %6, %14 : vector<256x128xf32>
    %c2_i32 = arith.constant 2 : i32
    %16 = tpu.dynamic_rotate %2 by %c2_i32 dim 0 : vector<256x128xf32>, i32 -> vector<256x128xf32>
    %c2_i32_6 = arith.constant 2 : i32
    %17 = vector.broadcast %c2_i32_6 : i32 to vector<256x128xi32>
    %18 = arith.cmpi sge, %3, %17 : vector<256x128xi32>
    %cst_7 = arith.constant 0.000000e+00 : f32
    %19 = vector.broadcast %cst_7 : f32 to vector<256x128xf32>
    %20 = arith.select %18, %16, %19 : vector<256x128xi1>, vector<256x128xf32>
    %c1 = arith.constant 1 : index
    %c0_8 = arith.constant 0 : index
    %21 = vector.load %arg2[%c1, %c0_8] : memref<7x128xf32, #tpu.memory_space<vmem>>, vector<1x128xf32>
    %22 = vector.broadcast %21 : vector<1x128xf32> to vector<256x128xf32>
    %23 = arith.mulf %20, %22 : vector<256x128xf32>
    %24 = arith.addf %15, %23 : vector<256x128xf32>
    %c1_i32 = arith.constant 1 : i32
    %25 = tpu.dynamic_rotate %2 by %c1_i32 dim 0 : vector<256x128xf32>, i32 -> vector<256x128xf32>
    %c1_i32_9 = arith.constant 1 : i32
    %26 = vector.broadcast %c1_i32_9 : i32 to vector<256x128xi32>
    %27 = arith.cmpi sge, %3, %26 : vector<256x128xi32>
    %cst_10 = arith.constant 0.000000e+00 : f32
    %28 = vector.broadcast %cst_10 : f32 to vector<256x128xf32>
    %29 = arith.select %27, %25, %28 : vector<256x128xi1>, vector<256x128xf32>
    %c2 = arith.constant 2 : index
    %c0_11 = arith.constant 0 : index
    %30 = vector.load %arg2[%c2, %c0_11] : memref<7x128xf32, #tpu.memory_space<vmem>>, vector<1x128xf32>
    %31 = vector.broadcast %30 : vector<1x128xf32> to vector<256x128xf32>
    %32 = arith.mulf %29, %31 : vector<256x128xf32>
    %33 = arith.addf %24, %32 : vector<256x128xf32>
    %c255_i32 = arith.constant 255 : i32
    %34 = tpu.dynamic_rotate %2 by %c255_i32 dim 0 : vector<256x128xf32>, i32 -> vector<256x128xf32>
    %c255_i32_12 = arith.constant 255 : i32
    %35 = vector.broadcast %c255_i32_12 : i32 to vector<256x128xi32>
    %36 = arith.cmpi slt, %3, %35 : vector<256x128xi32>
    %cst_13 = arith.constant 0.000000e+00 : f32
    %37 = vector.broadcast %cst_13 : f32 to vector<256x128xf32>
    %38 = arith.select %36, %34, %37 : vector<256x128xi1>, vector<256x128xf32>
    %c4 = arith.constant 4 : index
    %c0_14 = arith.constant 0 : index
    %39 = vector.load %arg2[%c4, %c0_14] : memref<7x128xf32, #tpu.memory_space<vmem>>, vector<1x128xf32>
    %40 = vector.broadcast %39 : vector<1x128xf32> to vector<256x128xf32>
    %41 = arith.mulf %38, %40 : vector<256x128xf32>
    %42 = arith.addf %33, %41 : vector<256x128xf32>
    %c254_i32 = arith.constant 254 : i32
    %43 = tpu.dynamic_rotate %2 by %c254_i32 dim 0 : vector<256x128xf32>, i32 -> vector<256x128xf32>
    %c254_i32_15 = arith.constant 254 : i32
    %44 = vector.broadcast %c254_i32_15 : i32 to vector<256x128xi32>
    %45 = arith.cmpi slt, %3, %44 : vector<256x128xi32>
    %cst_16 = arith.constant 0.000000e+00 : f32
    %46 = vector.broadcast %cst_16 : f32 to vector<256x128xf32>
    %47 = arith.select %45, %43, %46 : vector<256x128xi1>, vector<256x128xf32>
    %c5 = arith.constant 5 : index
    %c0_17 = arith.constant 0 : index
    %48 = vector.load %arg2[%c5, %c0_17] : memref<7x128xf32, #tpu.memory_space<vmem>>, vector<1x128xf32>
    %49 = vector.broadcast %48 : vector<1x128xf32> to vector<256x128xf32>
    %50 = arith.mulf %47, %49 : vector<256x128xf32>
    %51 = arith.addf %42, %50 : vector<256x128xf32>
    %c253_i32 = arith.constant 253 : i32
    %52 = tpu.dynamic_rotate %2 by %c253_i32 dim 0 : vector<256x128xf32>, i32 -> vector<256x128xf32>
    %c253_i32_18 = arith.constant 253 : i32
    %53 = vector.broadcast %c253_i32_18 : i32 to vector<256x128xi32>
    %54 = arith.cmpi slt, %3, %53 : vector<256x128xi32>
    %cst_19 = arith.constant 0.000000e+00 : f32
    %55 = vector.broadcast %cst_19 : f32 to vector<256x128xf32>
    %56 = arith.select %54, %52, %55 : vector<256x128xi1>, vector<256x128xf32>
    %c6 = arith.constant 6 : index
    %c0_20 = arith.constant 0 : index
    %57 = vector.load %arg2[%c6, %c0_20] : memref<7x128xf32, #tpu.memory_space<vmem>>, vector<1x128xf32>
    %58 = vector.broadcast %57 : vector<1x128xf32> to vector<256x128xf32>
    %59 = arith.mulf %56, %58 : vector<256x128xf32>
    %60 = arith.addf %51, %59 : vector<256x128xf32>
    %c0_21 = arith.constant 0 : index
    %c0_22 = arith.constant 0 : index
    %61 = vector.load %arg3[%c0_21, %c0_22] : memref<1x128xf32, #tpu.memory_space<vmem>>, vector<1x128xf32>
    %62 = vector.broadcast %61 : vector<1x128xf32> to vector<256x128xf32>
    %63 = arith.addf %60, %62 : vector<256x128xf32>
    %cst_23 = arith.constant dense<0.000000e+00> : vector<256xf32>
    %64 = vector.multi_reduction <add>, %63, %cst_23 [1] : vector<256x128xf32> to vector<256xf32>
    %65 = vector.shape_cast %64 : vector<256xf32> to vector<256x1xf32>
    %cst_24 = arith.constant 1.280000e+02 : f32
    %66 = vector.broadcast %cst_24 : f32 to vector<256x1xf32>
    %67 = arith.divf %65, %66 : vector<256x1xf32>
    %68 = vector.broadcast %67 : vector<256x1xf32> to vector<256x128xf32>
    %69 = arith.subf %63, %68 : vector<256x128xf32>
    %70 = arith.mulf %69, %69 : vector<256x128xf32>
    %cst_25 = arith.constant dense<0.000000e+00> : vector<256xf32>
    %71 = vector.multi_reduction <add>, %70, %cst_25 [1] : vector<256x128xf32> to vector<256xf32>
    %72 = vector.shape_cast %71 : vector<256xf32> to vector<256x1xf32>
    %cst_26 = arith.constant 1.280000e+02 : f32
    %73 = vector.broadcast %cst_26 : f32 to vector<256x1xf32>
    %74 = arith.divf %72, %73 : vector<256x1xf32>
    %cst_27 = arith.constant 9.99999997E-7 : f32
    %75 = vector.broadcast %cst_27 : f32 to vector<256x1xf32>
    %76 = arith.addf %74, %75 : vector<256x1xf32>
    %77 = math.rsqrt %76 : vector<256x1xf32>
    %78 = vector.broadcast %77 : vector<256x1xf32> to vector<256x128xf32>
    %79 = arith.mulf %69, %78 : vector<256x128xf32>
    %c0_28 = arith.constant 0 : index
    %c0_29 = arith.constant 0 : index
    %80 = vector.load %arg4[%c0_28, %c0_29] : memref<1x128xf32, #tpu.memory_space<vmem>>, vector<1x128xf32>
    %81 = vector.broadcast %80 : vector<1x128xf32> to vector<256x128xf32>
    %82 = arith.mulf %79, %81 : vector<256x128xf32>
    %c0_30 = arith.constant 0 : index
    %c0_31 = arith.constant 0 : index
    %83 = vector.load %arg5[%c0_30, %c0_31] : memref<1x128xf32, #tpu.memory_space<vmem>>, vector<1x128xf32>
    %84 = vector.broadcast %83 : vector<1x128xf32> to vector<256x128xf32>
    %85 = arith.addf %82, %84 : vector<256x128xf32>
    %86 = arith.truncf %85 : vector<256x128xf32> to vector<256x128xbf16>
    %c0_32 = arith.constant 0 : index
    %c0_33 = arith.constant 0 : index
    %87 = vector.load %arg6[%c0_32, %c0_33] : memref<128x256xbf16, #tpu.memory_space<vmem>>, vector<128x256xbf16>
    %cst_34 = arith.constant dense<0.000000e+00> : vector<256x256xf32>
    %88 = tpu.matmul %86, %87, %cst_34 {dimension_numbers = #tpu.dot_dimension_numbers<[1], [0], [0], [1], [0, 0, 1, 1], [], []>} : vector<256x128xbf16>, vector<128x256xbf16>, vector<256x256xf32> -> vector<256x256xf32>
    %c0_35 = arith.constant 0 : index
    %c0_36 = arith.constant 0 : index
    %89 = vector.load %arg7[%c0_35, %c0_36] : memref<1x256xf32, #tpu.memory_space<vmem>>, vector<1x256xf32>
    %90 = vector.broadcast %89 : vector<1x256xf32> to vector<256x256xf32>
    %91 = arith.addf %88, %90 : vector<256x256xf32>
    %cst_37 = arith.constant 5.000000e-01 : f32
    %92 = vector.broadcast %cst_37 : f32 to vector<256x256xf32>
    %93 = arith.mulf %92, %91 : vector<256x256xf32>
    %cst_38 = arith.constant 0.707106769 : f32
    %94 = vector.broadcast %cst_38 : f32 to vector<256x256xf32>
    %95 = arith.mulf %91, %94 : vector<256x256xf32>
    %cst_39 = arith.constant 0.000000e+00 : f32
    %96 = vector.broadcast %cst_39 : f32 to vector<256x256xf32>
    %97 = arith.cmpf oge, %95, %96 : vector<256x256xf32>
    %cst_40 = arith.constant 1.000000e+00 : f32
    %cst_41 = arith.constant -1.000000e+00 : f32
    %98 = vector.broadcast %cst_40 : f32 to vector<256x256xf32>
    %99 = vector.broadcast %cst_41 : f32 to vector<256x256xf32>
    %100 = arith.select %97, %98, %99 : vector<256x256xi1>, vector<256x256xf32>
    %101 = math.absf %95 : vector<256x256xf32>
    %cst_42 = arith.constant 0.327591091 : f32
    %102 = vector.broadcast %cst_42 : f32 to vector<256x256xf32>
    %103 = arith.mulf %102, %101 : vector<256x256xf32>
    %cst_43 = arith.constant 1.000000e+00 : f32
    %104 = vector.broadcast %cst_43 : f32 to vector<256x256xf32>
    %105 = arith.addf %104, %103 : vector<256x256xf32>
    %106 = tpu.reciprocal %105 {approx = true} : vector<256x256xf32> -> vector<256x256xf32>
    %cst_44 = arith.constant 1.06140542 : f32
    %107 = vector.broadcast %cst_44 : f32 to vector<256x256xf32>
    %108 = arith.mulf %107, %106 : vector<256x256xf32>
    %cst_45 = arith.constant -1.45315206 : f32
    %109 = vector.broadcast %cst_45 : f32 to vector<256x256xf32>
    %110 = arith.addf %108, %109 : vector<256x256xf32>
    %111 = arith.mulf %110, %106 : vector<256x256xf32>
    %cst_46 = arith.constant 1.42141378 : f32
    %112 = vector.broadcast %cst_46 : f32 to vector<256x256xf32>
    %113 = arith.addf %111, %112 : vector<256x256xf32>
    %114 = arith.mulf %113, %106 : vector<256x256xf32>
    %cst_47 = arith.constant -0.284496725 : f32
    %115 = vector.broadcast %cst_47 : f32 to vector<256x256xf32>
    %116 = arith.addf %114, %115 : vector<256x256xf32>
    %117 = arith.mulf %116, %106 : vector<256x256xf32>
    %cst_48 = arith.constant 0.254829586 : f32
    %118 = vector.broadcast %cst_48 : f32 to vector<256x256xf32>
    %119 = arith.addf %117, %118 : vector<256x256xf32>
    %120 = arith.mulf %119, %106 : vector<256x256xf32>
    %cst_49 = arith.constant 0.000000e+00 : f32
    %121 = vector.broadcast %cst_49 : f32 to vector<256x256xf32>
    %122 = arith.subf %121, %101 : vector<256x256xf32>
    %123 = arith.mulf %122, %101 : vector<256x256xf32>
    %124 = math.exp %123 : vector<256x256xf32>
    %125 = arith.mulf %120, %124 : vector<256x256xf32>
    %cst_50 = arith.constant 1.000000e+00 : f32
    %126 = vector.broadcast %cst_50 : f32 to vector<256x256xf32>
    %127 = arith.subf %126, %125 : vector<256x256xf32>
    %128 = arith.mulf %100, %127 : vector<256x256xf32>
    %cst_51 = arith.constant 1.000000e+00 : f32
    %129 = vector.broadcast %cst_51 : f32 to vector<256x256xf32>
    %130 = arith.addf %129, %128 : vector<256x256xf32>
    %131 = arith.mulf %93, %130 : vector<256x256xf32>
    %132 = arith.mulf %131, %131 : vector<256x256xf32>
    %cst_52 = arith.constant dense<0.000000e+00> : vector<256xf32>
    %133 = vector.multi_reduction <add>, %132, %cst_52 [0] : vector<256x256xf32> to vector<256xf32>
    %134 = vector.shape_cast %133 : vector<256xf32> to vector<1x256xf32>
    %135 = math.sqrt %134 : vector<1x256xf32>
    %cst_53 = arith.constant dense<0.000000e+00> : vector<1xf32>
    %136 = vector.multi_reduction <add>, %135, %cst_53 [1] : vector<1x256xf32> to vector<1xf32>
    %137 = vector.shape_cast %136 : vector<1xf32> to vector<1x1xf32>
    %cst_54 = arith.constant 2.560000e+02 : f32
    %138 = vector.broadcast %cst_54 : f32 to vector<1x1xf32>
    %139 = arith.divf %137, %138 : vector<1x1xf32>
    %cst_55 = arith.constant 9.99999997E-7 : f32
    %140 = vector.broadcast %cst_55 : f32 to vector<1x1xf32>
    %141 = arith.addf %139, %140 : vector<1x1xf32>
    %142 = tpu.reciprocal %141 {approx = true} : vector<1x1xf32> -> vector<1x1xf32>
    %143 = vector.broadcast %142 : vector<1x1xf32> to vector<1x256xf32>
    %144 = arith.mulf %135, %143 : vector<1x256xf32>
    %c0_56 = arith.constant 0 : index
    %c0_57 = arith.constant 0 : index
    %145 = vector.load %arg8[%c0_56, %c0_57] : memref<1x256xf32, #tpu.memory_space<vmem>>, vector<1x256xf32>
    %146 = arith.mulf %145, %144 : vector<1x256xf32>
    %cst_58 = arith.constant 1.000000e+00 : f32
    %147 = vector.broadcast %cst_58 : f32 to vector<1x256xf32>
    %148 = arith.addf %147, %146 : vector<1x256xf32>
    %149 = vector.broadcast %148 : vector<1x256xf32> to vector<256x256xf32>
    %150 = arith.mulf %131, %149 : vector<256x256xf32>
    %c0_59 = arith.constant 0 : index
    %c0_60 = arith.constant 0 : index
    %151 = vector.load %arg9[%c0_59, %c0_60] : memref<1x256xf32, #tpu.memory_space<vmem>>, vector<1x256xf32>
    %152 = vector.broadcast %151 : vector<1x256xf32> to vector<256x256xf32>
    %153 = arith.addf %150, %152 : vector<256x256xf32>
    %154 = arith.truncf %153 : vector<256x256xf32> to vector<256x256xbf16>
    %c0_61 = arith.constant 0 : index
    %c0_62 = arith.constant 0 : index
    %155 = vector.load %arg10[%c0_61, %c0_62] : memref<256x128xbf16, #tpu.memory_space<vmem>>, vector<256x128xbf16>
    %cst_63 = arith.constant dense<0.000000e+00> : vector<256x128xf32>
    %156 = tpu.matmul %154, %155, %cst_63 {dimension_numbers = #tpu.dot_dimension_numbers<[1], [0], [0], [1], [0, 0, 1, 1], [], []>} : vector<256x256xbf16>, vector<256x128xbf16>, vector<256x128xf32> -> vector<256x128xf32>
    %c0_64 = arith.constant 0 : index
    %c0_65 = arith.constant 0 : index
    %157 = vector.load %arg11[%c0_64, %c0_65] : memref<1x128xf32, #tpu.memory_space<vmem>>, vector<1x128xf32>
    %158 = vector.broadcast %157 : vector<1x128xf32> to vector<256x128xf32>
    %159 = arith.addf %156, %158 : vector<256x128xf32>
    %160 = tpu.transpose %159, [1, 0] : vector<256x128xf32> -> vector<128x256xf32>
    %161 = arith.addf %1, %160 : vector<128x256xf32>
    %162 = vector.shape_cast %161 : vector<128x256xf32> to vector<1x128x256xf32>
    %c0_66 = arith.constant 0 : index
    %c0_67 = arith.constant 0 : index
    %c0_68 = arith.constant 0 : index
    %163 = vector.load %arg12[%c0_66, %c0_67, %c0_68] : memref<1x128x256xf32, #tpu.memory_space<vmem>>, vector<1x128x256xf32>
    tpu.vector_store %arg12[%c0_66, %c0_67, %c0_68], %162 {strides = array<i32>} : memref<1x128x256xf32, #tpu.memory_space<vmem>>, vector<1x128x256xf32>,
    return
  }
  func.func @transform_0(%arg0: i32) -> (i32, i32, i32) {
    %c0_i32 = arith.constant 0 : i32
    %c0_i32_0 = arith.constant 0 : i32
    %c0_i32_1 = arith.constant 0 : i32
    return %arg0, %c0_i32, %c0_i32_0 : i32, i32, i32
  }
  func.func @transform_1(%arg0: i32) -> (i32, i32) {
    %c0_i32 = arith.constant 0 : i32
    %c0_i32_0 = arith.constant 0 : i32
    %c0_i32_1 = arith.constant 0 : i32
    return %c0_i32, %c0_i32_0 : i32, i32
  }
  func.func @transform_2(%arg0: i32) -> (i32, i32) {
    %c0_i32 = arith.constant 0 : i32
    %c0_i32_0 = arith.constant 0 : i32
    %c0_i32_1 = arith.constant 0 : i32
    return %c0_i32, %c0_i32_0 : i32, i32
  }
  func.func @transform_3(%arg0: i32) -> (i32, i32) {
    %c0_i32 = arith.constant 0 : i32
    %c0_i32_0 = arith.constant 0 : i32
    %c0_i32_1 = arith.constant 0 : i32
    return %c0_i32, %c0_i32_0 : i32, i32
  }
  func.func @transform_4(%arg0: i32) -> (i32, i32) {
    %c0_i32 = arith.constant 0 : i32
    %c0_i32_0 = arith.constant 0 : i32
    %c0_i32_1 = arith.constant 0 : i32
    return %c0_i32, %c0_i32_0 : i32, i32
  }
  func.func @transform_5(%arg0: i32) -> (i32, i32) {
    %c0_i32 = arith.constant 0 : i32
    %c0_i32_0 = arith.constant 0 : i32
    %c0_i32_1 = arith.constant 0 : i32
    return %c0_i32, %c0_i32_0 : i32, i32
  }
  func.func @transform_6(%arg0: i32) -> (i32, i32) {
    %c0_i32 = arith.constant 0 : i32
    %c0_i32_0 = arith.constant 0 : i32
    %c0_i32_1 = arith.constant 0 : i32
    return %c0_i32, %c0_i32_0 : i32, i32
  }
  func.func @transform_7(%arg0: i32) -> (i32, i32) {
    %c0_i32 = arith.constant 0 : i32
    %c0_i32_0 = arith.constant 0 : i32
    %c0_i32_1 = arith.constant 0 : i32
    return %c0_i32, %c0_i32_0 : i32, i32
  }
  func.func @transform_8(%arg0: i32) -> (i32, i32) {
    %c0_i32 = arith.constant 0 : i32
    %c0_i32_0 = arith.constant 0 : i32
    %c0_i32_1 = arith.constant 0 : i32
    return %c0_i32, %c0_i32_0 : i32, i32
  }
  func.func @transform_9(%arg0: i32) -> (i32, i32) {
    %c0_i32 = arith.constant 0 : i32
    %c0_i32_0 = arith.constant 0 : i32
    %c0_i32_1 = arith.constant 0 : i32
    return %c0_i32, %c0_i32_0 : i32, i32
  }
  func.func @transform_10(%arg0: i32) -> (i32, i32) {
    %c0_i32 = arith.constant 0 : i32
    %c0_i32_0 = arith.constant 0 : i32
    %c0_i32_1 = arith.constant 0 : i32
    return %c0_i32, %c0_i32_0 : i32, i32
  }
  func.func @transform_11(%arg0: i32) -> (i32, i32, i32) {
    %c0_i32 = arith.constant 0 : i32
    %c0_i32_0 = arith.constant 0 : i32
    %c0_i32_1 = arith.constant 0 : i32
    return %arg0, %c0_i32, %c0_i32_0 : i32, i32, i32
  }
}

</mosaic_0001>

<llo_original>
// kernel: convnext_block2.1
$region0: #{convnext_block2.1}
  #allocation0 [shape = 'u32[]', space=smem, size = 0x4, offset = 0x4, fixed_abs, tag = 'smem constant byte address 0x4 - core index']
  #allocation1 [shape = 'u32[144,128]{1,0:T(1,128)}', space=vmem, size = 0x12000, scoped, tag = 'internal scratch']
  %s0 = inlined_call_operand.hbm [shape: f32[2,128,256], index: 0, kind: input, shape index: {}]
  %s1 = inlined_call_operand.vmem [shape: f32[7,128], index: 1, kind: input, shape index: {}]
  %s2 = inlined_call_operand.vmem [shape: f32[1,128], index: 2, kind: input, shape index: {}]
  %s3 = inlined_call_operand.vmem [shape: f32[1,128], index: 3, kind: input, shape index: {}]
  %s4 = inlined_call_operand.vmem [shape: f32[1,128], index: 4, kind: input, shape index: {}]
  %s5 = inlined_call_operand.vmem [shape: bf16[128,256], index: 5, kind: input, shape index: {}]
  %s6 = inlined_call_operand.vmem [shape: f32[1,256], index: 6, kind: input, shape index: {}]
  %s7 = inlined_call_operand.vmem [shape: f32[1,256], index: 7, kind: input, shape index: {}]
  %s8 = inlined_call_operand.vmem [shape: f32[1,256], index: 8, kind: input, shape index: {}]
  %s9 = inlined_call_operand.vmem [shape: bf16[256,128], index: 9, kind: input, shape index: {}]
  %s10 = inlined_call_operand.vmem [shape: f32[1,128], index: 10, kind: input, shape index: {}]
  %s11 = inlined_call_operand.hbm [shape: f32[2,128,256], index: 11, kind: output, shape index: {}]
  %s12 = sld [smem:[#allocation0]]
  $region81: #{convnext_block2.1} parent=0
    _
  %s14 = ssub.s32 1, %s12
  %s15 = scalar_select 0, %s14, %s12
  $region1: #{convnext_block2.1} parent=0
    #allocation2 [shape = 'u8[262144]{0}', space=vmem, size = 0x40000, scoped, tag = 'input window, operand 0']
    #allocation3 [shape = 's32[2]{0}', space=sflag, size = 0x8, scoped, tag = 'scoped memory for convnext_block2.1']
    #allocation4 [shape = 's32[2]{0}', space=sflag, size = 0x8, scoped, tag = 'scoped memory for convnext_block2.1']
    #allocation5 [shape = 'u8[262144]{0}', space=vmem, size = 0x40000, scoped, tag = 'output window, operand 0']
    %16 = vsyncpa [#allocation3], 0
    %s17 = scalar_lea.sflag [#allocation3], 1
    %18 = vsyncpa %s17, 0
    %19 = vsyncpa [#allocation4], 0
    %s20 = scalar_lea.sflag [#allocation4], 1
    %21 = vsyncpa %s20, 0
    loop: start=0, step=1, limit=4
    $region2: #{convnext_block2.1} parent=1 // loop_pre_header
      _
    $region3: #{convnext_block2.1} parent=1 // loop_header
      %s23 = sphi 0, %s27
      %p24 = scmp.ge.s32.totalorder %s23, 4
      %s33 = sphi 0, %s35
      %s36 = sphi 0, %s33
      %s37 = sphi 0, %s36
      %s53 = sphi 0, %s37
      %s57 = sphi 0, %s57
      %s59 = sphi 0, %s57
      %s60 = sphi 0, %s59
      %s74 = sphi 0, %s60
      %s78 = sphi 0, %s78
      %s80 = sphi 0, %s78
      %s81 = sphi 0, %s80
      %s95 = sphi 0, %s81
      %s99 = sphi 0, %s99
      %s101 = sphi 0, %s99
      %s102 = sphi 0, %s101
      %s116 = sphi 0, %s102
      %s120 = sphi 0, %s120
      %s122 = sphi 0, %s120
      %s123 = sphi 0, %s122
      %s137 = sphi 0, %s123
      %s141 = sphi 0, %s141
      %s143 = sphi 0, %s141
      %s144 = sphi 0, %s143
      %s158 = sphi 0, %s144
      %s162 = sphi 0, %s162
      %s164 = sphi 0, %s162
      %s165 = sphi 0, %s164
      %s179 = sphi 0, %s165
      %s183 = sphi 0, %s183
      %s185 = sphi 0, %s183
      %s186 = sphi 0, %s185
      %s200 = sphi 0, %s186
      %s204 = sphi 0, %s204
      %s206 = sphi 0, %s204
      %s207 = sphi 0, %s206
      %s221 = sphi 0, %s207
      %s225 = sphi 0, %s225
      %s227 = sphi 0, %s225
      %s228 = sphi 0, %s227
      %s242 = sphi 0, %s228
      %s246 = sphi 0, %s246
      %s248 = sphi 0, %s246
      %s249 = sphi 0, %s248
      %s263 = sphi 0, %s249
      %s269 = sphi 0, %s271
      %s272 = sphi 0, %s269
      %s273 = sphi 0, %s272
      %s289 = sphi 0, %s273
    $region4: #{convnext_block2.1} parent=1 // loop_header_branch
      %26 = sbr.rel (%p24) target = $region8
    $region5: #{convnext_block2.1} parent=1 // loop_body
      %s28 = ssub.s32 %s23, 1
      %s29 = ssub.s32 %s23, 2
      %s30 = sadd.s32 %s23, 1
      %s31 = ssub.s32 %s23, %s30
      %p32 = scmp.eq.s32.totalorder %s31, 0
      %s34 = sadd.s32 %s33, 1
      %s35 = scalar_select %p32, %s33, %s34
      %p38 = pneg %p32
      %p39 = scmp.eq.s32.totalorder %s23, 1
      %p40 = por %p38, %p39
      %p41 = scmp.ne.s32.totalorder %s33, %s36
      %p42 = scmp.eq.s32.totalorder %s23, 0
      %p43 = por %p41, %p42
      %p44 = scmp.ne.s32.totalorder %s33, %s36
      %p45 = scmp.eq.s32.totalorder %s28, 1
      %p46 = por %p44, %p45
      %p47 = scmp.ne.s32.totalorder %s36, %s37
      %p48 = scmp.eq.s32.totalorder %s28, 0
      %p49 = por %p47, %p48
      %p50 = scmp.ne.s32.totalorder %s36, %s37
      %p51 = scmp.eq.s32.totalorder %s29, 1
      %p52 = por %p50, %p51
      %p54 = scmp.ne.s32.totalorder %s37, %s53
      %p55 = scmp.eq.s32.totalorder %s29, 0
      %p56 = por %p54, %p55
      %s58 = sadd.s32 %s57, 1
      %p61 = scmp.eq.s32.totalorder %s23, 1
      %p62 = scmp.ne.s32.totalorder %s57, %s59
      %p63 = scmp.eq.s32.totalorder %s23, 0
      %p64 = por %p62, %p63
      %p65 = scmp.ne.s32.totalorder %s57, %s59
      %p66 = scmp.eq.s32.totalorder %s28, 1
      %p67 = por %p65, %p66
      %p68 = scmp.ne.s32.totalorder %s59, %s60
      %p69 = scmp.eq.s32.totalorder %s28, 0
      %p70 = por %p68, %p69
      %p71 = scmp.ne.s32.totalorder %s59, %s60
      %p72 = scmp.eq.s32.totalorder %s29, 1
      %p73 = por %p71, %p72
      %p75 = scmp.ne.s32.totalorder %s60, %s74
      %p76 = scmp.eq.s32.totalorder %s29, 0
      %p77 = por %p75, %p76
      %s79 = sadd.s32 %s78, 1
      %p82 = scmp.eq.s32.totalorder %s23, 1
      %p83 = scmp.ne.s32.totalorder %s78, %s80
      %p84 = scmp.eq.s32.totalorder %s23, 0
      %p85 = por %p83, %p84
      %p86 = scmp.ne.s32.totalorder %s78, %s80
      %p87 = scmp.eq.s32.totalorder %s28, 1
      %p88 = por %p86, %p87
      %p89 = scmp.ne.s32.totalorder %s80, %s81
      %p90 = scmp.eq.s32.totalorder %s28, 0
      %p91 = por %p89, %p90
      %p92 = scmp.ne.s32.totalorder %s80, %s81
      %p93 = scmp.eq.s32.totalorder %s29, 1
      %p94 = por %p92, %p93
      %p96 = scmp.ne.s32.totalorder %s81, %s95
      %p97 = scmp.eq.s32.totalorder %s29, 0
      %p98 = por %p96, %p97
      %s100 = sadd.s32 %s99, 1
      %p103 = scmp.eq.s32.totalorder %s23, 1
      %p104 = scmp.ne.s32.totalorder %s99, %s101
      %p105 = scmp.eq.s32.totalorder %s23, 0
      %p106 = por %p104, %p105
      %p107 = scmp.ne.s32.totalorder %s99, %s101
      %p108 = scmp.eq.s32.totalorder %s28, 1
      %p109 = por %p107, %p108
      %p110 = scmp.ne.s32.totalorder %s101, %s102
      %p111 = scmp.eq.s32.totalorder %s28, 0
      %p112 = por %p110, %p111
      %p113 = scmp.ne.s32.totalorder %s101, %s102
      %p114 = scmp.eq.s32.totalorder %s29, 1
      %p115 = por %p113, %p114
      %p117 = scmp.ne.s32.totalorder %s102, %s116
      %p118 = scmp.eq.s32.totalorder %s29, 0
      %p119 = por %p117, %p118
      %s121 = sadd.s32 %s120, 1
      %p124 = scmp.eq.s32.totalorder %s23, 1
      %p125 = scmp.ne.s32.totalorder %s120, %s122
      %p126 = scmp.eq.s32.totalorder %s23, 0
      %p127 = por %p125, %p126
      %p128 = scmp.ne.s32.totalorder %s120, %s122
      %p129 = scmp.eq.s32.totalorder %s28, 1
      %p130 = por %p128, %p129
      %p131 = scmp.ne.s32.totalorder %s122, %s123
      %p132 = scmp.eq.s32.totalorder %s28, 0
      %p133 = por %p131, %p132
      %p134 = scmp.ne.s32.totalorder %s122, %s123
      %p135 = scmp.eq.s32.totalorder %s29, 1
      %p136 = por %p134, %p135
      %p138 = scmp.ne.s32.totalorder %s123, %s137
      %p139 = scmp.eq.s32.totalorder %s29, 0
      %p140 = por %p138, %p139
      %s142 = sadd.s32 %s141, 1
      %p145 = scmp.eq.s32.totalorder %s23, 1
      %p146 = scmp.ne.s32.totalorder %s141, %s143
      %p147 = scmp.eq.s32.totalorder %s23, 0
      %p148 = por %p146, %p147
      %p149 = scmp.ne.s32.totalorder %s141, %s143
      %p150 = scmp.eq.s32.totalorder %s28, 1
      %p151 = por %p149, %p150
      %p152 = scmp.ne.s32.totalorder %s143, %s144
      %p153 = scmp.eq.s32.totalorder %s28, 0
      %p154 = por %p152, %p153
      %p155 = scmp.ne.s32.totalorder %s143, %s144
      %p156 = scmp.eq.s32.totalorder %s29, 1
      %p157 = por %p155, %p156
      %p159 = scmp.ne.s32.totalorder %s144, %s158
      %p160 = scmp.eq.s32.totalorder %s29, 0
      %p161 = por %p159, %p160
      %s163 = sadd.s32 %s162, 1
      %p166 = scmp.eq.s32.totalorder %s23, 1
      %p167 = scmp.ne.s32.totalorder %s162, %s164
      %p168 = scmp.eq.s32.totalorder %s23, 0
      %p169 = por %p167, %p168
      %p170 = scmp.ne.s32.totalorder %s162, %s164
      %p171 = scmp.eq.s32.totalorder %s28, 1
      %p172 = por %p170, %p171
      %p173 = scmp.ne.s32.totalorder %s164, %s165
      %p174 = scmp.eq.s32.totalorder %s28, 0
      %p175 = por %p173, %p174
      %p176 = scmp.ne.s32.totalorder %s164, %s165
      %p177 = scmp.eq.s32.totalorder %s29, 1
      %p178 = por %p176, %p177
      %p180 = scmp.ne.s32.totalorder %s165, %s179
      %p181 = scmp.eq.s32.totalorder %s29, 0
      %p182 = por %p180, %p181
      %s184 = sadd.s32 %s183, 1
      %p187 = scmp.eq.s32.totalorder %s23, 1
      %p188 = scmp.ne.s32.totalorder %s183, %s185
      %p189 = scmp.eq.s32.totalorder %s23, 0
      %p190 = por %p188, %p189
      %p191 = scmp.ne.s32.totalorder %s183, %s185
      %p192 = scmp.eq.s32.totalorder %s28, 1
      %p193 = por %p191, %p192
      %p194 = scmp.ne.s32.totalorder %s185, %s186
      %p195 = scmp.eq.s32.totalorder %s28, 0
      %p196 = por %p194, %p195
      %p197 = scmp.ne.s32.totalorder %s185, %s186
      %p198 = scmp.eq.s32.totalorder %s29, 1
      %p199 = por %p197, %p198
      %p201 = scmp.ne.s32.totalorder %s186, %s200
      %p202 = scmp.eq.s32.totalorder %s29, 0
      %p203 = por %p201, %p202
      %s205 = sadd.s32 %s204, 1
      %p208 = scmp.eq.s32.totalorder %s23, 1
      %p209 = scmp.ne.s32.totalorder %s204, %s206
      %p210 = scmp.eq.s32.totalorder %s23, 0
      %p211 = por %p209, %p210
      %p212 = scmp.ne.s32.totalorder %s204, %s206
      %p213 = scmp.eq.s32.totalorder %s28, 1
      %p214 = por %p212, %p213
      %p215 = scmp.ne.s32.totalorder %s206, %s207
      %p216 = scmp.eq.s32.totalorder %s28, 0
      %p217 = por %p215, %p216
      %p218 = scmp.ne.s32.totalorder %s206, %s207
      %p219 = scmp.eq.s32.totalorder %s29, 1
      %p220 = por %p218, %p219
      %p222 = scmp.ne.s32.totalorder %s207, %s221
      %p223 = scmp.eq.s32.totalorder %s29, 0
      %p224 = por %p222, %p223
      %s226 = sadd.s32 %s225, 1
      %p229 = scmp.eq.s32.totalorder %s23, 1
      %p230 = scmp.ne.s32.totalorder %s225, %s227
      %p231 = scmp.eq.s32.totalorder %s23, 0
      %p232 = por %p230, %p231
      %p233 = scmp.ne.s32.totalorder %s225, %s227
      %p234 = scmp.eq.s32.totalorder %s28, 1
      %p235 = por %p233, %p234
      %p236 = scmp.ne.s32.totalorder %s227, %s228
      %p237 = scmp.eq.s32.totalorder %s28, 0
      %p238 = por %p236, %p237
      %p239 = scmp.ne.s32.totalorder %s227, %s228
      %p240 = scmp.eq.s32.totalorder %s29, 1
      %p241 = por %p239, %p240
      %p243 = scmp.ne.s32.totalorder %s228, %s242
      %p244 = scmp.eq.s32.totalorder %s29, 0
      %p245 = por %p243, %p244
      %s247 = sadd.s32 %s246, 1
      %p250 = scmp.eq.s32.totalorder %s23, 1
      %p251 = scmp.ne.s32.totalorder %s246, %s248
      %p252 = scmp.eq.s32.totalorder %s23, 0
      %p253 = por %p251, %p252
      %p254 = scmp.ne.s32.totalorder %s246, %s248
      %p255 = scmp.eq.s32.totalorder %s28, 1
      %p256 = por %p254, %p255
      %p257 = scmp.ne.s32.totalorder %s248, %s249
      %p258 = scmp.eq.s32.totalorder %s28, 0
      %p259 = por %p257, %p258
      %p260 = scmp.ne.s32.totalorder %s248, %s249
      %p261 = scmp.eq.s32.totalorder %s29, 1
      %p262 = por %p260, %p261
      %p264 = scmp.ne.s32.totalorder %s249, %s263
      %p265 = scmp.eq.s32.totalorder %s29, 0
      %p266 = por %p264, %p265
      %s267 = ssub.s32 %s23, %s30
      %p268 = scmp.eq.s32.totalorder %s267, 0
      %s270 = sadd.s32 %s269, 1
      %s271 = scalar_select %p268, %s269, %s270
      %p274 = pneg %p268
      %p275 = scmp.eq.s32.totalorder %s23, 1
      %p276 = por %p274, %p275
      %p277 = scmp.ne.s32.totalorder %s269, %s272
      %p278 = scmp.eq.s32.totalorder %s23, 0
      %p279 = por %p277, %p278
      %p280 = scmp.ne.s32.totalorder %s269, %s272
      %p281 = scmp.eq.s32.totalorder %s28, 1
      %p282 = por %p280, %p281
      %p283 = scmp.ne.s32.totalorder %s272, %s273
      %p284 = scmp.eq.s32.totalorder %s28, 0
      %p285 = por %p283, %p284
      %p286 = scmp.ne.s32.totalorder %s272, %s273
      %p287 = scmp.eq.s32.totalorder %s29, 1
      %p288 = por %p286, %p287
      %p290 = scmp.ne.s32.totalorder %s273, %s289
      %p291 = scmp.eq.s32.totalorder %s29, 0
      %p292 = por %p290, %p291
      %p293 = scmp.le.s32.totalorder 1, %s23
      %p294 = scmp.lt.s32.totalorder %s23, 3
      %p295 = pnand %p293, %p294
      %p296 = pneg %p295
      // Predicated region
      $region9: #{convnext_block2.1} parent=5 // pred_check
        _
      $region10: #{convnext_block2.1} parent=5 // pred_check_branch
        %298 = sbr.rel (%p295) target = $region12
      $region11: #{convnext_block2.1} parent=5 // pred_region
        %s299 = ssub.s32 %s23, 1
        // Predicated region
        $region13: #{convnext_block2.1} parent=11 // pred_check
          %p300 = pneg %p70
        $region14: #{convnext_block2.1} parent=11 // pred_check_branch
          %302 = sbr.rel (%p300) target = $region16
        $region15: #{convnext_block2.1} parent=11 // pred_region
          _
        $region16: #{convnext_block2.1} parent=11 // pred_fallthru
          _
        // Predicated region
        $region17: #{convnext_block2.1} parent=11 // pred_check
          %p303 = pneg %p91
        $region18: #{convnext_block2.1} parent=11 // pred_check_branch
          %305 = sbr.rel (%p303) target = $region20
        $region19: #{convnext_block2.1} parent=11 // pred_region
          _
        $region20: #{convnext_block2.1} parent=11 // pred_fallthru
          _
        // Predicated region
        $region21: #{convnext_block2.1} parent=11 // pred_check
          %p306 = pneg %p112
        $region22: #{convnext_block2.1} parent=11 // pred_check_branch
          %308 = sbr.rel (%p306) target = $region24
        $region23: #{convnext_block2.1} parent=11 // pred_region
          _
        $region24: #{convnext_block2.1} parent=11 // pred_fallthru
          _
        // Predicated region
        $region25: #{convnext_block2.1} parent=11 // pred_check
          %p309 = pneg %p133
        $region26: #{convnext_block2.1} parent=11 // pred_check_branch
          %311 = sbr.rel (%p309) target = $region28
        $region27: #{convnext_block2.1} parent=11 // pred_region
          _
        $region28: #{convnext_block2.1} parent=11 // pred_fallthru
          _
        // Predicated region
        $region29: #{convnext_block2.1} parent=11 // pred_check
          %p312 = pneg %p154
        $region30: #{convnext_block2.1} parent=11 // pred_check_branch
          %314 = sbr.rel (%p312) target = $region32
        $region31: #{convnext_block2.1} parent=11 // pred_region
          _
        $region32: #{convnext_block2.1} parent=11 // pred_fallthru
          _
        // Predicated region
        $region33: #{convnext_block2.1} parent=11 // pred_check
          %p315 = pneg %p175
        $region34: #{convnext_block2.1} parent=11 // pred_check_branch
          %317 = sbr.rel (%p315) target = $region36
        $region35: #{convnext_block2.1} parent=11 // pred_region
          _
        $region36: #{convnext_block2.1} parent=11 // pred_fallthru
          _
        // Predicated region
        $region37: #{convnext_block2.1} parent=11 // pred_check
          %p318 = pneg %p196
        $region38: #{convnext_block2.1} parent=11 // pred_check_branch
          %320 = sbr.rel (%p318) target = $region40
        $region39: #{convnext_block2.1} parent=11 // pred_region
          _
        $region40: #{convnext_block2.1} parent=11 // pred_fallthru
          _
        // Predicated region
        $region41: #{convnext_block2.1} parent=11 // pred_check
          %p321 = pneg %p217
        $region42: #{convnext_block2.1} parent=11 // pred_check_branch
          %323 = sbr.rel (%p321) target = $region44
        $region43: #{convnext_block2.1} parent=11 // pred_region
          _
        $region44: #{convnext_block2.1} parent=11 // pred_fallthru
          _
        // Predicated region
        $region45: #{convnext_block2.1} parent=11 // pred_check
          %p324 = pneg %p238
        $region46: #{convnext_block2.1} parent=11 // pred_check_branch
          %326 = sbr.rel (%p324) target = $region48
        $region47: #{convnext_block2.1} parent=11 // pred_region
          _
        $region48: #{convnext_block2.1} parent=11 // pred_fallthru
          _
        // Predicated region
        $region49: #{convnext_block2.1} parent=11 // pred_check
          %p327 = pneg %p259
        $region50: #{convnext_block2.1} parent=11 // pred_check_branch
          %329 = sbr.rel (%p327) target = $region52
        $region51: #{convnext_block2.1} parent=11 // pred_region
          _
        $region52: #{convnext_block2.1} parent=11 // pred_fallthru
          _
      $region12: #{convnext_block2.1} parent=5 // pred_fallthru
        _
      %p330 = scmp.lt.s32.totalorder %s23, 2
      // Predicated region
      $region53: #{convnext_block2.1} parent=5 // pred_check
        %p331 = pneg %p330
      $region54: #{convnext_block2.1} parent=5 // pred_check_branch
        %333 = sbr.rel (%p331) target = $region56
      $region55: #{convnext_block2.1} parent=5 // pred_region
        // Predicated region
        $region57: #{convnext_block2.1} parent=55 // pred_check
          %p334 = pneg %p43
        $region58: #{convnext_block2.1} parent=55 // pred_check_branch
          %336 = sbr.rel (%p334) target = $region60
        $region59: #{convnext_block2.1} parent=55 // pred_region
          %s337 = sand.u32 %s33, 1
          %s338 = scalar_lea.sflag [#allocation3], %s337
          %s339 = sand.u32 %s33, 1
          %s340 = smul.addr %s339, 256
          %s341 = scalar_lea.vmem [#allocation2], %s340
          %s343 = ssub.s32 4096, 4096
          %344 = vsyncadd %s338, %s343
          %s345 = smul.addr %s23, 32
          %s346 = smul.addr %s345, 128
          %s347 = scalar_lea.hbm %s0, %s346
          %s348 = sshll.u32 %s341, 4
          %s349 = int_to_ptr.vmem [resolvable:$true] %s348
          %354 = dma.hbm_to_vmem [thread:$0]  %s347, 4096, %s349, %s338, 256, 256, 16
        $region60: #{convnext_block2.1} parent=55 // pred_fallthru
          _
      $region56: #{convnext_block2.1} parent=5 // pred_fallthru
        _
      %p355 = scmp.le.s32.totalorder 1, %s23
      %p356 = scmp.lt.s32.totalorder %s23, 3
      %p357 = pnand %p355, %p356
      %p358 = pneg %p357
      // Predicated region
      $region61: #{convnext_block2.1} parent=5 // pred_check
        _
      $region62: #{convnext_block2.1} parent=5 // pred_check_branch
        %360 = sbr.rel (%p357) target = $region64
      $region63: #{convnext_block2.1} parent=5 // pred_region
        %s361 = ssub.s32 %s23, 1
        %s362 = sand.u32 %s36, 1
        %s363 = scalar_lea.sflag [#allocation3], %s362
        %s364 = sand.u32 %s36, 1
        %s365 = smul.addr %s364, 256
        %s366 = scalar_lea.vmem [#allocation2], %s365
        // Predicated region
        $region65: #{convnext_block2.1} parent=63 // pred_check
          %p367 = pneg %p49
        $region66: #{convnext_block2.1} parent=63 // pred_check_branch
          %369 = sbr.rel (%p367) target = $region68
        $region67: #{convnext_block2.1} parent=63 // pred_region
          %370 = dma.done %s363, 4096
        $region68: #{convnext_block2.1} parent=63 // pred_fallthru
          _
        %s371 = sand.u32 %s36, 1
        %s372 = scalar_lea.sflag [#allocation3], %s371
        %s373 = sand.u32 %s36, 1
        %s374 = smul.addr %s373, 256
        %s375 = scalar_lea.vmem [#allocation2], %s374
        %p376 = pneg %p49
        %p377 = pneg %p46
        %p378 = pneg %p70
        %p379 = pneg %p67
        %p380 = pneg %p91
        %p381 = pneg %p88
        %p382 = pneg %p112
        %p383 = pneg %p109
        %p384 = pneg %p133
        %p385 = pneg %p130
        %p386 = pneg %p154
        %p387 = pneg %p151
        %p388 = pneg %p175
        %p389 = pneg %p172
        %p390 = pneg %p196
        %p391 = pneg %p193
        %p392 = pneg %p217
        %p393 = pneg %p214
        %p394 = pneg %p238
        %p395 = pneg %p235
        %p396 = pneg %p259
        %p397 = pneg %p256
        %p398 = pneg %p285
        %p399 = pneg %p282
        %s400 = sand.u32 %s272, 1
        %s401 = scalar_lea.sflag [#allocation4], %s400
        %s402 = sand.u32 %s272, 1
        %s403 = smul.addr %s402, 256
        %s404 = scalar_lea.vmem [#allocation5], %s403
        %v406 = vld [vmem:[%s366] sm:$0xff]
        %v407 = vld [vmem:[%s366 + $0x8] sm:$0xff]
        %v408 = vld [vmem:[%s366 + $0x10] sm:$0xff]
        %v409 = vld [vmem:[%s366 + $0x18] sm:$0xff]
        %v410 = vld [vmem:[%s366 + $0x20] sm:$0xff]
        %v411 = vld [vmem:[%s366 + $0x28] sm:$0xff]
        %v412 = vld [vmem:[%s366 + $0x30] sm:$0xff]
        %v413 = vld [vmem:[%s366 + $0x38] sm:$0xff]
        %v414 = vld [vmem:[%s366 + $0x40] sm:$0xff]
        %v415 = vld [vmem:[%s366 + $0x48] sm:$0xff]
        %v416 = vld [vmem:[%s366 + $0x50] sm:$0xff]
        %v417 = vld [vmem:[%s366 + $0x58] sm:$0xff]
        %v418 = vld [vmem:[%s366 + $0x60] sm:$0xff]
        %v419 = vld [vmem:[%s366 + $0x68] sm:$0xff]
        %v420 = vld [vmem:[%s366 + $0x70] sm:$0xff]
        %v421 = vld [vmem:[%s366 + $0x78] sm:$0xff]
        %v422 = vld [vmem:[%s366 + $0x80] sm:$0xff]
        %v423 = vld [vmem:[%s366 + $0x88] sm:$0xff]
        %v424 = vld [vmem:[%s366 + $0x90] sm:$0xff]
        %v425 = vld [vmem:[%s366 + $0x98] sm:$0xff]
        %v426 = vld [vmem:[%s366 + $0xa0] sm:$0xff]
        %v427 = vld [vmem:[%s366 + $0xa8] sm:$0xff]
        %v428 = vld [vmem:[%s366 + $0xb0] sm:$0xff]
        %v429 = vld [vmem:[%s366 + $0xb8] sm:$0xff]
        %v430 = vld [vmem:[%s366 + $0xc0] sm:$0xff]
        %v431 = vld [vmem:[%s366 + $0xc8] sm:$0xff]
        %v432 = vld [vmem:[%s366 + $0xd0] sm:$0xff]
        %v433 = vld [vmem:[%s366 + $0xd8] sm:$0xff]
        %v434 = vld [vmem:[%s366 + $0xe0] sm:$0xff]
        %v435 = vld [vmem:[%s366 + $0xe8] sm:$0xff]
        %v436 = vld [vmem:[%s366 + $0xf0] sm:$0xff]
        %v437 = vld [vmem:[%s366 + $0xf8] sm:$0xff]
        %438 = vxpose.xlu0.b32.start [1/16] %v406, 128
        %439 = vxpose.xlu0.b32.cont [2/16] %v408, 128
        %440 = vxpose.xlu0.b32.cont [3/16] %v410, 128
        %441 = vxpose.xlu0.b32.cont [4/16] %v412, 128
        %442 = vxpose.xlu0.b32.cont [5/16] %v414, 128
        %443 = vxpose.xlu0.b32.cont [6/16] %v416, 128
        %444 = vxpose.xlu0.b32.cont [7/16] %v418, 128
        %445 = vxpose.xlu0.b32.cont [8/16] %v420, 128
        %446 = vxpose.xlu0.b32.cont [9/16] %v422, 128
        %447 = vxpose.xlu0.b32.cont [10/16] %v424, 128
        %448 = vxpose.xlu0.b32.cont [11/16] %v426, 128
        %449 = vxpose.xlu0.b32.cont [12/16] %v428, 128
        %450 = vxpose.xlu0.b32.cont [13/16] %v430, 128
        %451 = vxpose.xlu0.b32.cont [14/16] %v432, 128
        %452 = vxpose.xlu0.b32.cont [15/16] %v434, 128
        %453 = vxpose.xlu0.b32.end [16/16] %v436, 128
        %v454 = vpop.trf.xlu0
        %v455 = vpop.trf.xlu0
        %v456 = vpop.trf.xlu0
        %v457 = vpop.trf.xlu0
        %v458 = vpop.trf.xlu0
        %v459 = vpop.trf.xlu0
        %v460 = vpop.trf.xlu0
        %v461 = vpop.trf.xlu0
        %v462 = vpop.trf.xlu0
        %v463 = vpop.trf.xlu0
        %v464 = vpop.trf.xlu0
        %v465 = vpop.trf.xlu0
        %v466 = vpop.trf.xlu0
        %v467 = vpop.trf.xlu0
        %v468 = vpop.trf.xlu0
        %v469 = vpop.trf.xlu0
        %470 = vxpose.xlu0.b32.start [1/16] %v407, 128
        %471 = vxpose.xlu0.b32.cont [2/16] %v409, 128
        %472 = vxpose.xlu0.b32.cont [3/16] %v411, 128
        %473 = vxpose.xlu0.b32.cont [4/16] %v413, 128
        %474 = vxpose.xlu0.b32.cont [5/16] %v415, 128
        %475 = vxpose.xlu0.b32.cont [6/16] %v417, 128
        %476 = vxpose.xlu0.b32.cont [7/16] %v419, 128
        %477 = vxpose.xlu0.b32.cont [8/16] %v421, 128
        %478 = vxpose.xlu0.b32.cont [9/16] %v423, 128
        %479 = vxpose.xlu0.b32.cont [10/16] %v425, 128
        %480 = vxpose.xlu0.b32.cont [11/16] %v427, 128
        %481 = vxpose.xlu0.b32.cont [12/16] %v429, 128
        %482 = vxpose.xlu0.b32.cont [13/16] %v431, 128
        %483 = vxpose.xlu0.b32.cont [14/16] %v433, 128
        %484 = vxpose.xlu0.b32.cont [15/16] %v435, 128
        %485 = vxpose.xlu0.b32.end [16/16] %v437, 128
        %v486 = vpop.trf.xlu0
        %v487 = vpop.trf.xlu0
        %v488 = vpop.trf.xlu0
        %v489 = vpop.trf.xlu0
        %v490 = vpop.trf.xlu0
        %v491 = vpop.trf.xlu0
        %v492 = vpop.trf.xlu0
        %v493 = vpop.trf.xlu0
        %v494 = vpop.trf.xlu0
        %v495 = vpop.trf.xlu0
        %v496 = vpop.trf.xlu0
        %v497 = vpop.trf.xlu0
        %v498 = vpop.trf.xlu0
        %v499 = vpop.trf.xlu0
        %v500 = vpop.trf.xlu0
        %v501 = vpop.trf.xlu0
        %v502 = vlaneseq
        %v503 = vshrl.u32 %v502, 7
        %v504 = vadd.s32 %v503, 8
        %v505 = vadd.s32 %v503, 16
        %v506 = vadd.s32 %v503, 24
        %v507 = vadd.s32 %v503, 32
        %v508 = vadd.s32 %v503, 40
        %v509 = vadd.s32 %v503, 48
        %v510 = vadd.s32 %v503, 56
        %v511 = vadd.s32 %v503, 64
        %v512 = vadd.s32 %v503, 72
        %v513 = vadd.s32 %v503, 80
        %v514 = vadd.s32 %v503, 88
        %v515 = vadd.s32 %v503, 96
        %v516 = vadd.s32 %v503, 104
        %v517 = vadd.s32 %v503, 112
        %v518 = vadd.s32 %v503, 120
        %v519 = vadd.s32 %v503, 128
        %v520 = vadd.s32 %v503, 136
        %v521 = vadd.s32 %v503, 144
        %v522 = vadd.s32 %v503, 152
        %v523 = vadd.s32 %v503, 160
        %v524 = vadd.s32 %v503, 168
        %v525 = vadd.s32 %v503, 176
        %v526 = vadd.s32 %v503, 184
        %v527 = vadd.s32 %v503, 192
        %v528 = vadd.s32 %v503, 200
        %v529 = vadd.s32 %v503, 208
        %v530 = vadd.s32 %v503, 216
        %v531 = vadd.s32 %v503, 224
        %v532 = vadd.s32 %v503, 232
        %v533 = vadd.s32 %v503, 240
        %v534 = vadd.s32 %v503, 248
        %v535 = vld [vmem:[%s1 + $0x3] sm:$0x1]
        %v536 = vlaneseq
        %v537 = vshrl.u32 %v536, 7
        %v538 = vsub.s32 0, %v537
        %v539 = vrot.slane %v535, %v538
        %v540 = vmul.f32 %v454, %v539
        %v541 = vmul.f32 %v455, %v539
        %v542 = vmul.f32 %v456, %v539
        %v543 = vmul.f32 %v457, %v539
        %v544 = vmul.f32 %v458, %v539
        %v545 = vmul.f32 %v459, %v539
        %v546 = vmul.f32 %v460, %v539
        %v547 = vmul.f32 %v461, %v539
        %v548 = vmul.f32 %v462, %v539
        %v549 = vmul.f32 %v463, %v539
        %v550 = vmul.f32 %v464, %v539
        %v551 = vmul.f32 %v465, %v539
        %v552 = vmul.f32 %v466, %v539
        %v553 = vmul.f32 %v467, %v539
        %v554 = vmul.f32 %v468, %v539
        %v555 = vmul.f32 %v469, %v539
        %v556 = vmul.f32 %v486, %v539
        %v557 = vmul.f32 %v487, %v539
        %v558 = vmul.f32 %v488, %v539
        %v559 = vmul.f32 %v489, %v539
        %v560 = vmul.f32 %v490, %v539
        %v561 = vmul.f32 %v491, %v539
        %v562 = vmul.f32 %v492, %v539
        %v563 = vmul.f32 %v493, %v539
        %v564 = vmul.f32 %v494, %v539
        %v565 = vmul.f32 %v495, %v539
        %v566 = vmul.f32 %v496, %v539
        %v567 = vmul.f32 %v497, %v539
        %v568 = vmul.f32 %v498, %v539
        %v569 = vmul.f32 %v499, %v539
        %v570 = vmul.f32 %v500, %v539
        %v571 = vmul.f32 %v501, %v539
        %v572 = vrot.slane %v454, 5
        %v573 = vrot.slane %v455, 5
        %v574 = vrot.slane %v456, 5
        %v575 = vrot.slane %v457, 5
        %v576 = vrot.slane %v458, 5
        %v577 = vrot.slane %v459, 5
        %v578 = vrot.slane %v460, 5
        %v579 = vrot.slane %v461, 5
        %v580 = vrot.slane %v462, 5
        %v581 = vrot.slane %v463, 5
        %v582 = vrot.slane %v464, 5
        %v583 = vrot.slane %v465, 5
        %v584 = vrot.slane %v466, 5
        %v585 = vrot.slane %v467, 5
        %v586 = vrot.slane %v468, 5
        %v587 = vrot.slane %v469, 5
        %v588 = vrot.slane %v486, 5
        %v589 = vrot.slane %v487, 5
        %v590 = vrot.slane %v488, 5
        %v591 = vrot.slane %v489, 5
        %v592 = vrot.slane %v490, 5
        %v593 = vrot.slane %v491, 5
        %v594 = vrot.slane %v492, 5
        %v595 = vrot.slane %v493, 5
        %v596 = vrot.slane %v494, 5
        %v597 = vrot.slane %v495, 5
        %v598 = vrot.slane %v496, 5
        %v599 = vrot.slane %v497, 5
        %v600 = vrot.slane %v498, 5
        %v601 = vrot.slane %v499, 5
        %v602 = vrot.slane %v500, 5
        %v603 = vrot.slane %v501, 5
        %vm604 = vcmp.lt.s32.totalorder %v503, 3
        %v605 = vsel %vm604, %v602, %v603
        %v606 = vsel %vm604, %v601, %v602
        %v607 = vsel %vm604, %v600, %v601
        %v608 = vsel %vm604, %v599, %v600
        %v609 = vsel %vm604, %v598, %v599
        %v610 = vsel %vm604, %v597, %v598
        %v611 = vsel %vm604, %v596, %v597
        %v612 = vsel %vm604, %v595, %v596
        %v613 = vsel %vm604, %v594, %v595
        %v614 = vsel %vm604, %v593, %v594
        %v615 = vsel %vm604, %v592, %v593
        %v616 = vsel %vm604, %v591, %v592
        %v617 = vsel %vm604, %v590, %v591
        %v618 = vsel %vm604, %v589, %v590
        %v619 = vsel %vm604, %v588, %v589
        %v620 = vsel %vm604, %v587, %v588
        %v621 = vsel %vm604, %v586, %v587
        %v622 = vsel %vm604, %v585, %v586
        %v623 = vsel %vm604, %v584, %v585
        %v624 = vsel %vm604, %v583, %v584
        %v625 = vsel %vm604, %v582, %v583
        %v626 = vsel %vm604, %v581, %v582
        %v627 = vsel %vm604, %v580, %v581
        %v628 = vsel %vm604, %v579, %v580
        %v629 = vsel %vm604, %v578, %v579
        %v630 = vsel %vm604, %v577, %v578
        %v631 = vsel %vm604, %v576, %v577
        %v632 = vsel %vm604, %v575, %v576
        %v633 = vsel %vm604, %v574, %v575
        %v634 = vsel %vm604, %v573, %v574
        %v635 = vsel %vm604, %v572, %v573
        %v636 = vsel %vm604, %v603, %v572
        %vm637 = vcmp.ge.s32.totalorder %v503, 3
        %vm638 = vcmp.ge.s32.totalorder %v504, 3
        %vm639 = vcmp.ge.s32.totalorder %v505, 3
        %vm640 = vcmp.ge.s32.totalorder %v506, 3
        %vm641 = vcmp.ge.s32.totalorder %v507, 3
        %vm642 = vcmp.ge.s32.totalorder %v508, 3
        %vm643 = vcmp.ge.s32.totalorder %v509, 3
        %vm644 = vcmp.ge.s32.totalorder %v510, 3
        %vm645 = vcmp.ge.s32.totalorder %v511, 3
        %vm646 = vcmp.ge.s32.totalorder %v512, 3
        %vm647 = vcmp.ge.s32.totalorder %v513, 3
        %vm648 = vcmp.ge.s32.totalorder %v514, 3
        %vm649 = vcmp.ge.s32.totalorder %v515, 3
        %vm650 = vcmp.ge.s32.totalorder %v516, 3
        %vm651 = vcmp.ge.s32.totalorder %v517, 3
        %vm652 = vcmp.ge.s32.totalorder %v518, 3
        %vm653 = vcmp.ge.s32.totalorder %v519, 3
        %vm654 = vcmp.ge.s32.totalorder %v520, 3
        %vm655 = vcmp.ge.s32.totalorder %v521, 3
        %vm656 = vcmp.ge.s32.totalorder %v522, 3
        %vm657 = vcmp.ge.s32.totalorder %v523, 3
        %vm658 = vcmp.ge.s32.totalorder %v524, 3
        %vm659 = vcmp.ge.s32.totalorder %v525, 3
        %vm660 = vcmp.ge.s32.totalorder %v526, 3
        %vm661 = vcmp.ge.s32.totalorder %v527, 3
        %vm662 = vcmp.ge.s32.totalorder %v528, 3
        %vm663 = vcmp.ge.s32.totalorder %v529, 3
        %vm664 = vcmp.ge.s32.totalorder %v530, 3
        %vm665 = vcmp.ge.s32.totalorder %v531, 3
        %vm666 = vcmp.ge.s32.totalorder %v532, 3
        %vm667 = vcmp.ge.s32.totalorder %v533, 3
        %vm668 = vcmp.ge.s32.totalorder %v534, 3
        %v669 = vsel %vm637, %v636, 0.0
        %v670 = vsel %vm638, %v635, 0.0
        %v671 = vsel %vm639, %v634, 0.0
        %v672 = vsel %vm640, %v633, 0.0
        %v673 = vsel %vm641, %v632, 0.0
        %v674 = vsel %vm642, %v631, 0.0
        %v675 = vsel %vm643, %v630, 0.0
        %v676 = vsel %vm644, %v629, 0.0
        %v677 = vsel %vm645, %v628, 0.0
        %v678 = vsel %vm646, %v627, 0.0
        %v679 = vsel %vm647, %v626, 0.0
        %v680 = vsel %vm648, %v625, 0.0
        %v681 = vsel %vm649, %v624, 0.0
        %v682 = vsel %vm650, %v623, 0.0
        %v683 = vsel %vm651, %v622, 0.0
        %v684 = vsel %vm652, %v621, 0.0
        %v685 = vsel %vm653, %v620, 0.0
        %v686 = vsel %vm654, %v619, 0.0
        %v687 = vsel %vm655, %v618, 0.0
        %v688 = vsel %vm656, %v617, 0.0
        %v689 = vsel %vm657, %v616, 0.0
        %v690 = vsel %vm658, %v615, 0.0
        %v691 = vsel %vm659, %v614, 0.0
        %v692 = vsel %vm660, %v613, 0.0
        %v693 = vsel %vm661, %v612, 0.0
        %v694 = vsel %vm662, %v611, 0.0
        %v695 = vsel %vm663, %v610, 0.0
        %v696 = vsel %vm664, %v609, 0.0
        %v697 = vsel %vm665, %v608, 0.0
        %v698 = vsel %vm666, %v607, 0.0
        %v699 = vsel %vm667, %v606, 0.0
        %v700 = vsel %vm668, %v605, 0.0
        %v701 = vld [vmem:[%s1] sm:$0x1]
        %v702 = vlaneseq
        %v703 = vshrl.u32 %v702, 7
        %v704 = vsub.s32 0, %v703
        %v705 = vrot.slane %v701, %v704
        %v706 = vmul.f32 %v669, %v705
        %v707 = vmul.f32 %v670, %v705
        %v708 = vmul.f32 %v671, %v705
        %v709 = vmul.f32 %v672, %v705
        %v710 = vmul.f32 %v673, %v705
        %v711 = vmul.f32 %v674, %v705
        %v712 = vmul.f32 %v675, %v705
        %v713 = vmul.f32 %v676, %v705
        %v714 = vmul.f32 %v677, %v705
        %v715 = vmul.f32 %v678, %v705
        %v716 = vmul.f32 %v679, %v705
        %v717 = vmul.f32 %v680, %v705
        %v718 = vmul.f32 %v681, %v705
        %v719 = vmul.f32 %v682, %v705
        %v720 = vmul.f32 %v683, %v705
        %v721 = vmul.f32 %v684, %v705
        %v722 = vmul.f32 %v685, %v705
        %v723 = vmul.f32 %v686, %v705
        %v724 = vmul.f32 %v687, %v705
        %v725 = vmul.f32 %v688, %v705
        %v726 = vmul.f32 %v689, %v705
        %v727 = vmul.f32 %v690, %v705
        %v728 = vmul.f32 %v691, %v705
        %v729 = vmul.f32 %v692, %v705
        %v730 = vmul.f32 %v693, %v705
        %v731 = vmul.f32 %v694, %v705
        %v732 = vmul.f32 %v695, %v705
        %v733 = vmul.f32 %v696, %v705
        %v734 = vmul.f32 %v697, %v705
        %v735 = vmul.f32 %v698, %v705
        %v736 = vmul.f32 %v699, %v705
        %v737 = vmul.f32 %v700, %v705
        %v738 = vadd.f32 %v540, %v706
        %v739 = vadd.f32 %v541, %v707
        %v740 = vadd.f32 %v542, %v708
        %v741 = vadd.f32 %v543, %v709
        %v742 = vadd.f32 %v544, %v710
        %v743 = vadd.f32 %v545, %v711
        %v744 = vadd.f32 %v546, %v712
        %v745 = vadd.f32 %v547, %v713
        %v746 = vadd.f32 %v548, %v714
        %v747 = vadd.f32 %v549, %v715
        %v748 = vadd.f32 %v550, %v716
        %v749 = vadd.f32 %v551, %v717
        %v750 = vadd.f32 %v552, %v718
        %v751 = vadd.f32 %v553, %v719
        %v752 = vadd.f32 %v554, %v720
        %v753 = vadd.f32 %v555, %v721
        %v754 = vadd.f32 %v556, %v722
        %v755 = vadd.f32 %v557, %v723
        %v756 = vadd.f32 %v558, %v724
        %v757 = vadd.f32 %v559, %v725
        %v758 = vadd.f32 %v560, %v726
        %v759 = vadd.f32 %v561, %v727
        %v760 = vadd.f32 %v562, %v728
        %v761 = vadd.f32 %v563, %v729
        %v762 = vadd.f32 %v564, %v730
        %v763 = vadd.f32 %v565, %v731
        %v764 = vadd.f32 %v566, %v732
        %v765 = vadd.f32 %v567, %v733
        %v766 = vadd.f32 %v568, %v734
        %v767 = vadd.f32 %v569, %v735
        %v768 = vadd.f32 %v570, %v736
        %v769 = vadd.f32 %v571, %v737
        %v770 = vrot.slane %v454, 6
        %v771 = vrot.slane %v455, 6
        %v772 = vrot.slane %v456, 6
        %v773 = vrot.slane %v457, 6
        %v774 = vrot.slane %v458, 6
        %v775 = vrot.slane %v459, 6
        %v776 = vrot.slane %v460, 6
        %v777 = vrot.slane %v461, 6
        %v778 = vrot.slane %v462, 6
        %v779 = vrot.slane %v463, 6
        %v780 = vrot.slane %v464, 6
        %v781 = vrot.slane %v465, 6
        %v782 = vrot.slane %v466, 6
        %v783 = vrot.slane %v467, 6
        %v784 = vrot.slane %v468, 6
        %v785 = vrot.slane %v469, 6
        %v786 = vrot.slane %v486, 6
        %v787 = vrot.slane %v487, 6
        %v788 = vrot.slane %v488, 6
        %v789 = vrot.slane %v489, 6
        %v790 = vrot.slane %v490, 6
        %v791 = vrot.slane %v491, 6
        %v792 = vrot.slane %v492, 6
        %v793 = vrot.slane %v493, 6
        %v794 = vrot.slane %v494, 6
        %v795 = vrot.slane %v495, 6
        %v796 = vrot.slane %v496, 6
        %v797 = vrot.slane %v497, 6
        %v798 = vrot.slane %v498, 6
        %v799 = vrot.slane %v499, 6
        %v800 = vrot.slane %v500, 6
        %v801 = vrot.slane %v501, 6
        %vm802 = vcmp.lt.s32.totalorder %v503, 2
        %v803 = vsel %vm802, %v800, %v801
        %v804 = vsel %vm802, %v799, %v800
        %v805 = vsel %vm802, %v798, %v799
        %v806 = vsel %vm802, %v797, %v798
        %v807 = vsel %vm802, %v796, %v797
        %v808 = vsel %vm802, %v795, %v796
        %v809 = vsel %vm802, %v794, %v795
        %v810 = vsel %vm802, %v793, %v794
        %v811 = vsel %vm802, %v792, %v793
        %v812 = vsel %vm802, %v791, %v792
        %v813 = vsel %vm802, %v790, %v791
        %v814 = vsel %vm802, %v789, %v790
        %v815 = vsel %vm802, %v788, %v789
        %v816 = vsel %vm802, %v787, %v788
        %v817 = vsel %vm802, %v786, %v787
        %v818 = vsel %vm802, %v785, %v786
        %v819 = vsel %vm802, %v784, %v785
        %v820 = vsel %vm802, %v783, %v784
        %v821 = vsel %vm802, %v782, %v783
        %v822 = vsel %vm802, %v781, %v782
        %v823 = vsel %vm802, %v780, %v781
        %v824 = vsel %vm802, %v779, %v780
        %v825 = vsel %vm802, %v778, %v779
        %v826 = vsel %vm802, %v777, %v778
        %v827 = vsel %vm802, %v776, %v777
        %v828 = vsel %vm802, %v775, %v776
        %v829 = vsel %vm802, %v774, %v775
        %v830 = vsel %vm802, %v773, %v774
        %v831 = vsel %vm802, %v772, %v773
        %v832 = vsel %vm802, %v771, %v772
        %v833 = vsel %vm802, %v770, %v771
        %v834 = vsel %vm802, %v801, %v770
        %vm835 = vcmp.ge.s32.totalorder %v503, 2
        %vm836 = vcmp.ge.s32.totalorder %v504, 2
        %vm837 = vcmp.ge.s32.totalorder %v505, 2
        %vm838 = vcmp.ge.s32.totalorder %v506, 2
        %vm839 = vcmp.ge.s32.totalorder %v507, 2
        %vm840 = vcmp.ge.s32.totalorder %v508, 2
        %vm841 = vcmp.ge.s32.totalorder %v509, 2
        %vm842 = vcmp.ge.s32.totalorder %v510, 2
        %vm843 = vcmp.ge.s32.totalorder %v511, 2
        %vm844 = vcmp.ge.s32.totalorder %v512, 2
        %vm845 = vcmp.ge.s32.totalorder %v513, 2
        %vm846 = vcmp.ge.s32.totalorder %v514, 2
        %vm847 = vcmp.ge.s32.totalorder %v515, 2
        %vm848 = vcmp.ge.s32.totalorder %v516, 2
        %vm849 = vcmp.ge.s32.totalorder %v517, 2
        %vm850 = vcmp.ge.s32.totalorder %v518, 2
        %vm851 = vcmp.ge.s32.totalorder %v519, 2
        %vm852 = vcmp.ge.s32.totalorder %v520, 2
        %vm853 = vcmp.ge.s32.totalorder %v521, 2
        %vm854 = vcmp.ge.s32.totalorder %v522, 2
        %vm855 = vcmp.ge.s32.totalorder %v523, 2
        %vm856 = vcmp.ge.s32.totalorder %v524, 2
        %vm857 = vcmp.ge.s32.totalorder %v525, 2
        %vm858 = vcmp.ge.s32.totalorder %v526, 2
        %vm859 = vcmp.ge.s32.totalorder %v527, 2
        %vm860 = vcmp.ge.s32.totalorder %v528, 2
        %vm861 = vcmp.ge.s32.totalorder %v529, 2
        %vm862 = vcmp.ge.s32.totalorder %v530, 2
        %vm863 = vcmp.ge.s32.totalorder %v531, 2
        %vm864 = vcmp.ge.s32.totalorder %v532, 2
        %vm865 = vcmp.ge.s32.totalorder %v533, 2
        %vm866 = vcmp.ge.s32.totalorder %v534, 2
        %v867 = vsel %vm835, %v834, 0.0
        %v868 = vsel %vm836, %v833, 0.0
        %v869 = vsel %vm837, %v832, 0.0
        %v870 = vsel %vm838, %v831, 0.0
        %v871 = vsel %vm839, %v830, 0.0
        %v872 = vsel %vm840, %v829, 0.0
        %v873 = vsel %vm841, %v828, 0.0
        %v874 = vsel %vm842, %v827, 0.0
        %v875 = vsel %vm843, %v826, 0.0
        %v876 = vsel %vm844, %v825, 0.0
        %v877 = vsel %vm845, %v824, 0.0
        %v878 = vsel %vm846, %v823, 0.0
        %v879 = vsel %vm847, %v822, 0.0
        %v880 = vsel %vm848, %v821, 0.0
        %v881 = vsel %vm849, %v820, 0.0
        %v882 = vsel %vm850, %v819, 0.0
        %v883 = vsel %vm851, %v818, 0.0
        %v884 = vsel %vm852, %v817, 0.0
        %v885 = vsel %vm853, %v816, 0.0
        %v886 = vsel %vm854, %v815, 0.0
        %v887 = vsel %vm855, %v814, 0.0
        %v888 = vsel %vm856, %v813, 0.0
        %v889 = vsel %vm857, %v812, 0.0
        %v890 = vsel %vm858, %v811, 0.0
        %v891 = vsel %vm859, %v810, 0.0
        %v892 = vsel %vm860, %v809, 0.0
        %v893 = vsel %vm861, %v808, 0.0
        %v894 = vsel %vm862, %v807, 0.0
        %v895 = vsel %vm863, %v806, 0.0
        %v896 = vsel %vm864, %v805, 0.0
        %v897 = vsel %vm865, %v804, 0.0
        %v898 = vsel %vm866, %v803, 0.0
        %v899 = vld [vmem:[%s1 + $0x1] sm:$0x1]
        %v900 = vlaneseq
        %v901 = vshrl.u32 %v900, 7
        %v902 = vsub.s32 0, %v901
        %v903 = vrot.slane %v899, %v902
        %v904 = vmul.f32 %v867, %v903
        %v905 = vmul.f32 %v868, %v903
        %v906 = vmul.f32 %v869, %v903
        %v907 = vmul.f32 %v870, %v903
        %v908 = vmul.f32 %v871, %v903
        %v909 = vmul.f32 %v872, %v903
        %v910 = vmul.f32 %v873, %v903
        %v911 = vmul.f32 %v874, %v903
        %v912 = vmul.f32 %v875, %v903
        %v913 = vmul.f32 %v876, %v903
        %v914 = vmul.f32 %v877, %v903
        %v915 = vmul.f32 %v878, %v903
        %v916 = vmul.f32 %v879, %v903
        %v917 = vmul.f32 %v880, %v903
        %v918 = vmul.f32 %v881, %v903
        %v919 = vmul.f32 %v882, %v903
        %v920 = vmul.f32 %v883, %v903
        %v921 = vmul.f32 %v884, %v903
        %v922 = vmul.f32 %v885, %v903
        %v923 = vmul.f32 %v886, %v903
        %v924 = vmul.f32 %v887, %v903
        %v925 = vmul.f32 %v888, %v903
        %v926 = vmul.f32 %v889, %v903
        %v927 = vmul.f32 %v890, %v903
        %v928 = vmul.f32 %v891, %v903
        %v929 = vmul.f32 %v892, %v903
        %v930 = vmul.f32 %v893, %v903
        %v931 = vmul.f32 %v894, %v903
        %v932 = vmul.f32 %v895, %v903
        %v933 = vmul.f32 %v896, %v903
        %v934 = vmul.f32 %v897, %v903
        %v935 = vmul.f32 %v898, %v903
        %v936 = vadd.f32 %v738, %v904
        %v937 = vadd.f32 %v739, %v905
        %v938 = vadd.f32 %v740, %v906
        %v939 = vadd.f32 %v741, %v907
        %v940 = vadd.f32 %v742, %v908
        %v941 = vadd.f32 %v743, %v909
        %v942 = vadd.f32 %v744, %v910
        %v943 = vadd.f32 %v745, %v911
        %v944 = vadd.f32 %v746, %v912
        %v945 = vadd.f32 %v747, %v913
        %v946 = vadd.f32 %v748, %v914
        %v947 = vadd.f32 %v749, %v915
        %v948 = vadd.f32 %v750, %v916
        %v949 = vadd.f32 %v751, %v917
        %v950 = vadd.f32 %v752, %v918
        %v951 = vadd.f32 %v753, %v919
        %v952 = vadd.f32 %v754, %v920
        %v953 = vadd.f32 %v755, %v921
        %v954 = vadd.f32 %v756, %v922
        %v955 = vadd.f32 %v757, %v923
        %v956 = vadd.f32 %v758, %v924
        %v957 = vadd.f32 %v759, %v925
        %v958 = vadd.f32 %v760, %v926
        %v959 = vadd.f32 %v761, %v927
        %v960 = vadd.f32 %v762, %v928
        %v961 = vadd.f32 %v763, %v929
        %v962 = vadd.f32 %v764, %v930
        %v963 = vadd.f32 %v765, %v931
        %v964 = vadd.f32 %v766, %v932
        %v965 = vadd.f32 %v767, %v933
        %v966 = vadd.f32 %v768, %v934
        %v967 = vadd.f32 %v769, %v935
        %v968 = vrot.slane %v454, 7
        %v969 = vrot.slane %v455, 7
        %v970 = vrot.slane %v456, 7
        %v971 = vrot.slane %v457, 7
        %v972 = vrot.slane %v458, 7
        %v973 = vrot.slane %v459, 7
        %v974 = vrot.slane %v460, 7
        %v975 = vrot.slane %v461, 7
        %v976 = vrot.slane %v462, 7
        %v977 = vrot.slane %v463, 7
        %v978 = vrot.slane %v464, 7
        %v979 = vrot.slane %v465, 7
        %v980 = vrot.slane %v466, 7
        %v981 = vrot.slane %v467, 7
        %v982 = vrot.slane %v468, 7
        %v983 = vrot.slane %v469, 7
        %v984 = vrot.slane %v486, 7
        %v985 = vrot.slane %v487, 7
        %v986 = vrot.slane %v488, 7
        %v987 = vrot.slane %v489, 7
        %v988 = vrot.slane %v490, 7
        %v989 = vrot.slane %v491, 7
        %v990 = vrot.slane %v492, 7
        %v991 = vrot.slane %v493, 7
        %v992 = vrot.slane %v494, 7
        %v993 = vrot.slane %v495, 7
        %v994 = vrot.slane %v496, 7
        %v995 = vrot.slane %v497, 7
        %v996 = vrot.slane %v498, 7
        %v997 = vrot.slane %v499, 7
        %v998 = vrot.slane %v500, 7
        %v999 = vrot.slane %v501, 7
        %vm1000 = vcmp.lt.s32.totalorder %v503, 1
        %v1001 = vsel %vm1000, %v998, %v999
        %v1002 = vsel %vm1000, %v997, %v998
        %v1003 = vsel %vm1000, %v996, %v997
        %v1004 = vsel %vm1000, %v995, %v996
        %v1005 = vsel %vm1000, %v994, %v995
        %v1006 = vsel %vm1000, %v993, %v994
        %v1007 = vsel %vm1000, %v992, %v993
        %v1008 = vsel %vm1000, %v991, %v992
        %v1009 = vsel %vm1000, %v990, %v991
        %v1010 = vsel %vm1000, %v989, %v990
        %v1011 = vsel %vm1000, %v988, %v989
        %v1012 = vsel %vm1000, %v987, %v988
        %v1013 = vsel %vm1000, %v986, %v987
        %v1014 = vsel %vm1000, %v985, %v986
        %v1015 = vsel %vm1000, %v984, %v985
        %v1016 = vsel %vm1000, %v983, %v984
        %v1017 = vsel %vm1000, %v982, %v983
        %v1018 = vsel %vm1000, %v981, %v982
        %v1019 = vsel %vm1000, %v980, %v981
        %v1020 = vsel %vm1000, %v979, %v980
        %v1021 = vsel %vm1000, %v978, %v979
        %v1022 = vsel %vm1000, %v977, %v978
        %v1023 = vsel %vm1000, %v976, %v977
        %v1024 = vsel %vm1000, %v975, %v976
        %v1025 = vsel %vm1000, %v974, %v975
        %v1026 = vsel %vm1000, %v973, %v974
        %v1027 = vsel %vm1000, %v972, %v973
        %v1028 = vsel %vm1000, %v971, %v972
        %v1029 = vsel %vm1000, %v970, %v971
        %v1030 = vsel %vm1000, %v969, %v970
        %v1031 = vsel %vm1000, %v968, %v969
        %v1032 = vsel %vm1000, %v999, %v968
        %vm1033 = vcmp.ge.s32.totalorder %v503, 1
        %vm1034 = vcmp.ge.s32.totalorder %v504, 1
        %vm1035 = vcmp.ge.s32.totalorder %v505, 1
        %vm1036 = vcmp.ge.s32.totalorder %v506, 1
        %vm1037 = vcmp.ge.s32.totalorder %v507, 1
        %vm1038 = vcmp.ge.s32.totalorder %v508, 1
        %vm1039 = vcmp.ge.s32.totalorder %v509, 1
        %vm1040 = vcmp.ge.s32.totalorder %v510, 1
        %vm1041 = vcmp.ge.s32.totalorder %v511, 1
        %vm1042 = vcmp.ge.s32.totalorder %v512, 1
        %vm1043 = vcmp.ge.s32.totalorder %v513, 1
        %vm1044 = vcmp.ge.s32.totalorder %v514, 1
        %vm1045 = vcmp.ge.s32.totalorder %v515, 1
        %vm1046 = vcmp.ge.s32.totalorder %v516, 1
        %vm1047 = vcmp.ge.s32.totalorder %v517, 1
        %vm1048 = vcmp.ge.s32.totalorder %v518, 1
        %vm1049 = vcmp.ge.s32.totalorder %v519, 1
        %vm1050 = vcmp.ge.s32.totalorder %v520, 1
        %vm1051 = vcmp.ge.s32.totalorder %v521, 1
        %vm1052 = vcmp.ge.s32.totalorder %v522, 1
        %vm1053 = vcmp.ge.s32.totalorder %v523, 1
        %vm1054 = vcmp.ge.s32.totalorder %v524, 1
        %vm1055 = vcmp.ge.s32.totalorder %v525, 1
        %vm1056 = vcmp.ge.s32.totalorder %v526, 1
        %vm1057 = vcmp.ge.s32.totalorder %v527, 1
        %vm1058 = vcmp.ge.s32.totalorder %v528, 1
        %vm1059 = vcmp.ge.s32.totalorder %v529, 1
        %vm1060 = vcmp.ge.s32.totalorder %v530, 1
        %vm1061 = vcmp.ge.s32.totalorder %v531, 1
        %vm1062 = vcmp.ge.s32.totalorder %v532, 1
        %vm1063 = vcmp.ge.s32.totalorder %v533, 1
        %vm1064 = vcmp.ge.s32.totalorder %v534, 1
        %v1065 = vsel %vm1033, %v1032, 0.0
        %v1066 = vsel %vm1034, %v1031, 0.0
        %v1067 = vsel %vm1035, %v1030, 0.0
        %v1068 = vsel %vm1036, %v1029, 0.0
        %v1069 = vsel %vm1037, %v1028, 0.0
        %v1070 = vsel %vm1038, %v1027, 0.0
        %v1071 = vsel %vm1039, %v1026, 0.0
        %v1072 = vsel %vm1040, %v1025, 0.0
        %v1073 = vsel %vm1041, %v1024, 0.0
        %v1074 = vsel %vm1042, %v1023, 0.0
        %v1075 = vsel %vm1043, %v1022, 0.0
        %v1076 = vsel %vm1044, %v1021, 0.0
        %v1077 = vsel %vm1045, %v1020, 0.0
        %v1078 = vsel %vm1046, %v1019, 0.0
        %v1079 = vsel %vm1047, %v1018, 0.0
        %v1080 = vsel %vm1048, %v1017, 0.0
        %v1081 = vsel %vm1049, %v1016, 0.0
        %v1082 = vsel %vm1050, %v1015, 0.0
        %v1083 = vsel %vm1051, %v1014, 0.0
        %v1084 = vsel %vm1052, %v1013, 0.0
        %v1085 = vsel %vm1053, %v1012, 0.0
        %v1086 = vsel %vm1054, %v1011, 0.0
        %v1087 = vsel %vm1055, %v1010, 0.0
        %v1088 = vsel %vm1056, %v1009, 0.0
        %v1089 = vsel %vm1057, %v1008, 0.0
        %v1090 = vsel %vm1058, %v1007, 0.0
        %v1091 = vsel %vm1059, %v1006, 0.0
        %v1092 = vsel %vm1060, %v1005, 0.0
        %v1093 = vsel %vm1061, %v1004, 0.0
        %v1094 = vsel %vm1062, %v1003, 0.0
        %v1095 = vsel %vm1063, %v1002, 0.0
        %v1096 = vsel %vm1064, %v1001, 0.0
        %v1097 = vld [vmem:[%s1 + $0x2] sm:$0x1]
        %v1098 = vlaneseq
        %v1099 = vshrl.u32 %v1098, 7
        %v1100 = vsub.s32 0, %v1099
        %v1101 = vrot.slane %v1097, %v1100
        %v1102 = vmul.f32 %v1065, %v1101
        %v1103 = vmul.f32 %v1066, %v1101
        %v1104 = vmul.f32 %v1067, %v1101
        %v1105 = vmul.f32 %v1068, %v1101
        %v1106 = vmul.f32 %v1069, %v1101
        %v1107 = vmul.f32 %v1070, %v1101
        %v1108 = vmul.f32 %v1071, %v1101
        %v1109 = vmul.f32 %v1072, %v1101
        %v1110 = vmul.f32 %v1073, %v1101
        %v1111 = vmul.f32 %v1074, %v1101
        %v1112 = vmul.f32 %v1075, %v1101
        %v1113 = vmul.f32 %v1076, %v1101
        %v1114 = vmul.f32 %v1077, %v1101
        %v1115 = vmul.f32 %v1078, %v1101
        %v1116 = vmul.f32 %v1079, %v1101
        %v1117 = vmul.f32 %v1080, %v1101
        %v1118 = vmul.f32 %v1081, %v1101
        %v1119 = vmul.f32 %v1082, %v1101
        %v1120 = vmul.f32 %v1083, %v1101
        %v1121 = vmul.f32 %v1084, %v1101
        %v1122 = vmul.f32 %v1085, %v1101
        %v1123 = vmul.f32 %v1086, %v1101
        %v1124 = vmul.f32 %v1087, %v1101
        %v1125 = vmul.f32 %v1088, %v1101
        %v1126 = vmul.f32 %v1089, %v1101
        %v1127 = vmul.f32 %v1090, %v1101
        %v1128 = vmul.f32 %v1091, %v1101
        %v1129 = vmul.f32 %v1092, %v1101
        %v1130 = vmul.f32 %v1093, %v1101
        %v1131 = vmul.f32 %v1094, %v1101
        %v1132 = vmul.f32 %v1095, %v1101
        %v1133 = vmul.f32 %v1096, %v1101
        %v1134 = vadd.f32 %v936, %v1102
        %v1135 = vadd.f32 %v937, %v1103
        %v1136 = vadd.f32 %v938, %v1104
        %v1137 = vadd.f32 %v939, %v1105
        %v1138 = vadd.f32 %v940, %v1106
        %v1139 = vadd.f32 %v941, %v1107
        %v1140 = vadd.f32 %v942, %v1108
        %v1141 = vadd.f32 %v943, %v1109
        %v1142 = vadd.f32 %v944, %v1110
        %v1143 = vadd.f32 %v945, %v1111
        %v1144 = vadd.f32 %v946, %v1112
        %v1145 = vadd.f32 %v947, %v1113
        %v1146 = vadd.f32 %v948, %v1114
        %v1147 = vadd.f32 %v949, %v1115
        %v1148 = vadd.f32 %v950, %v1116
        %v1149 = vadd.f32 %v951, %v1117
        %v1150 = vadd.f32 %v952, %v1118
        %v1151 = vadd.f32 %v953, %v1119
        %v1152 = vadd.f32 %v954, %v1120
        %v1153 = vadd.f32 %v955, %v1121
        %v1154 = vadd.f32 %v956, %v1122
        %v1155 = vadd.f32 %v957, %v1123
        %v1156 = vadd.f32 %v958, %v1124
        %v1157 = vadd.f32 %v959, %v1125
        %v1158 = vadd.f32 %v960, %v1126
        %v1159 = vadd.f32 %v961, %v1127
        %v1160 = vadd.f32 %v962, %v1128
        %v1161 = vadd.f32 %v963, %v1129
        %v1162 = vadd.f32 %v964, %v1130
        %v1163 = vadd.f32 %v965, %v1131
        %v1164 = vadd.f32 %v966, %v1132
        %v1165 = vadd.f32 %v967, %v1133
        %v1166 = vrot.slane %v454, 1
        %v1167 = vrot.slane %v455, 1
        %v1168 = vrot.slane %v456, 1
        %v1169 = vrot.slane %v457, 1
        %v1170 = vrot.slane %v458, 1
        %v1171 = vrot.slane %v459, 1
        %v1172 = vrot.slane %v460, 1
        %v1173 = vrot.slane %v461, 1
        %v1174 = vrot.slane %v462, 1
        %v1175 = vrot.slane %v463, 1
        %v1176 = vrot.slane %v464, 1
        %v1177 = vrot.slane %v465, 1
        %v1178 = vrot.slane %v466, 1
        %v1179 = vrot.slane %v467, 1
        %v1180 = vrot.slane %v468, 1
        %v1181 = vrot.slane %v469, 1
        %v1182 = vrot.slane %v486, 1
        %v1183 = vrot.slane %v487, 1
        %v1184 = vrot.slane %v488, 1
        %v1185 = vrot.slane %v489, 1
        %v1186 = vrot.slane %v490, 1
        %v1187 = vrot.slane %v491, 1
        %v1188 = vrot.slane %v492, 1
        %v1189 = vrot.slane %v493, 1
        %v1190 = vrot.slane %v494, 1
        %v1191 = vrot.slane %v495, 1
        %v1192 = vrot.slane %v496, 1
        %v1193 = vrot.slane %v497, 1
        %v1194 = vrot.slane %v498, 1
        %v1195 = vrot.slane %v499, 1
        %v1196 = vrot.slane %v500, 1
        %v1197 = vrot.slane %v501, 1
        %vm1198 = vcmp.lt.s32.totalorder %v503, 7
        %v1199 = vsel %vm1198, %v1196, %v1197
        %v1200 = vsel %vm1198, %v1195, %v1196
        %v1201 = vsel %vm1198, %v1194, %v1195
        %v1202 = vsel %vm1198, %v1193, %v1194
        %v1203 = vsel %vm1198, %v1192, %v1193
        %v1204 = vsel %vm1198, %v1191, %v1192
        %v1205 = vsel %vm1198, %v1190, %v1191
        %v1206 = vsel %vm1198, %v1189, %v1190
        %v1207 = vsel %vm1198, %v1188, %v1189
        %v1208 = vsel %vm1198, %v1187, %v1188
        %v1209 = vsel %vm1198, %v1186, %v1187
        %v1210 = vsel %vm1198, %v1185, %v1186
        %v1211 = vsel %vm1198, %v1184, %v1185
        %v1212 = vsel %vm1198, %v1183, %v1184
        %v1213 = vsel %vm1198, %v1182, %v1183
        %v1214 = vsel %vm1198, %v1181, %v1182
        %v1215 = vsel %vm1198, %v1180, %v1181
        %v1216 = vsel %vm1198, %v1179, %v1180
        %v1217 = vsel %vm1198, %v1178, %v1179
        %v1218 = vsel %vm1198, %v1177, %v1178
        %v1219 = vsel %vm1198, %v1176, %v1177
        %v1220 = vsel %vm1198, %v1175, %v1176
        %v1221 = vsel %vm1198, %v1174, %v1175
        %v1222 = vsel %vm1198, %v1173, %v1174
        %v1223 = vsel %vm1198, %v1172, %v1173
        %v1224 = vsel %vm1198, %v1171, %v1172
        %v1225 = vsel %vm1198, %v1170, %v1171
        %v1226 = vsel %vm1198, %v1169, %v1170
        %v1227 = vsel %vm1198, %v1168, %v1169
        %v1228 = vsel %vm1198, %v1167, %v1168
        %v1229 = vsel %vm1198, %v1166, %v1167
        %v1230 = vsel %vm1198, %v1197, %v1166
        %vm1231 = vcmp.lt.s32.totalorder %v503, 255
        %vm1232 = vcmp.lt.s32.totalorder %v504, 255
        %vm1233 = vcmp.lt.s32.totalorder %v505, 255
        %vm1234 = vcmp.lt.s32.totalorder %v506, 255
        %vm1235 = vcmp.lt.s32.totalorder %v507, 255
        %vm1236 = vcmp.lt.s32.totalorder %v508, 255
        %vm1237 = vcmp.lt.s32.totalorder %v509, 255
        %vm1238 = vcmp.lt.s32.totalorder %v510, 255
        %vm1239 = vcmp.lt.s32.totalorder %v511, 255
        %vm1240 = vcmp.lt.s32.totalorder %v512, 255
        %vm1241 = vcmp.lt.s32.totalorder %v513, 255
        %vm1242 = vcmp.lt.s32.totalorder %v514, 255
        %vm1243 = vcmp.lt.s32.totalorder %v515, 255
        %vm1244 = vcmp.lt.s32.totalorder %v516, 255
        %vm1245 = vcmp.lt.s32.totalorder %v517, 255
        %vm1246 = vcmp.lt.s32.totalorder %v518, 255
        %vm1247 = vcmp.lt.s32.totalorder %v519, 255
        %vm1248 = vcmp.lt.s32.totalorder %v520, 255
        %vm1249 = vcmp.lt.s32.totalorder %v521, 255
        %vm1250 = vcmp.lt.s32.totalorder %v522, 255
        %vm1251 = vcmp.lt.s32.totalorder %v523, 255
        %vm1252 = vcmp.lt.s32.totalorder %v524, 255
        %vm1253 = vcmp.lt.s32.totalorder %v525, 255
        %vm1254 = vcmp.lt.s32.totalorder %v526, 255
        %vm1255 = vcmp.lt.s32.totalorder %v527, 255
        %vm1256 = vcmp.lt.s32.totalorder %v528, 255
        %vm1257 = vcmp.lt.s32.totalorder %v529, 255
        %vm1258 = vcmp.lt.s32.totalorder %v530, 255
        %vm1259 = vcmp.lt.s32.totalorder %v531, 255
        %vm1260 = vcmp.lt.s32.totalorder %v532, 255
        %vm1261 = vcmp.lt.s32.totalorder %v533, 255
        %vm1262 = vcmp.lt.s32.totalorder %v534, 255
        %v1263 = vsel %vm1231, %v1229, 0.0
        %v1264 = vsel %vm1232, %v1228, 0.0
        %v1265 = vsel %vm1233, %v1227, 0.0
        %v1266 = vsel %vm1234, %v1226, 0.0
        %v1267 = vsel %vm1235, %v1225, 0.0
        %v1268 = vsel %vm1236, %v1224, 0.0
        %v1269 = vsel %vm1237, %v1223, 0.0
        %v1270 = vsel %vm1238, %v1222, 0.0
        %v1271 = vsel %vm1239, %v1221, 0.0
        %v1272 = vsel %vm1240, %v1220, 0.0
        %v1273 = vsel %vm1241, %v1219, 0.0
        %v1274 = vsel %vm1242, %v1218, 0.0
        %v1275 = vsel %vm1243, %v1217, 0.0
        %v1276 = vsel %vm1244, %v1216, 0.0
        %v1277 = vsel %vm1245, %v1215, 0.0
        %v1278 = vsel %vm1246, %v1214, 0.0
        %v1279 = vsel %vm1247, %v1213, 0.0
        %v1280 = vsel %vm1248, %v1212, 0.0
        %v1281 = vsel %vm1249, %v1211, 0.0
        %v1282 = vsel %vm1250, %v1210, 0.0
        %v1283 = vsel %vm1251, %v1209, 0.0
        %v1284 = vsel %vm1252, %v1208, 0.0
        %v1285 = vsel %vm1253, %v1207, 0.0
        %v1286 = vsel %vm1254, %v1206, 0.0
        %v1287 = vsel %vm1255, %v1205, 0.0
        %v1288 = vsel %vm1256, %v1204, 0.0
        %v1289 = vsel %vm1257, %v1203, 0.0
        %v1290 = vsel %vm1258, %v1202, 0.0
        %v1291 = vsel %vm1259, %v1201, 0.0
        %v1292 = vsel %vm1260, %v1200, 0.0
        %v1293 = vsel %vm1261, %v1199, 0.0
        %v1294 = vsel %vm1262, %v1230, 0.0
        %v1295 = vld [vmem:[%s1 + $0x4] sm:$0x1]
        %v1296 = vlaneseq
        %v1297 = vshrl.u32 %v1296, 7
        %v1298 = vsub.s32 0, %v1297
        %v1299 = vrot.slane %v1295, %v1298
        %v1300 = vmul.f32 %v1263, %v1299
        %v1301 = vmul.f32 %v1264, %v1299
        %v1302 = vmul.f32 %v1265, %v1299
        %v1303 = vmul.f32 %v1266, %v1299
        %v1304 = vmul.f32 %v1267, %v1299
        %v1305 = vmul.f32 %v1268, %v1299
        %v1306 = vmul.f32 %v1269, %v1299
        %v1307 = vmul.f32 %v1270, %v1299
        %v1308 = vmul.f32 %v1271, %v1299
        %v1309 = vmul.f32 %v1272, %v1299
        %v1310 = vmul.f32 %v1273, %v1299
        %v1311 = vmul.f32 %v1274, %v1299
        %v1312 = vmul.f32 %v1275, %v1299
        %v1313 = vmul.f32 %v1276, %v1299
        %v1314 = vmul.f32 %v1277, %v1299
        %v1315 = vmul.f32 %v1278, %v1299
        %v1316 = vmul.f32 %v1279, %v1299
        %v1317 = vmul.f32 %v1280, %v1299
        %v1318 = vmul.f32 %v1281, %v1299
        %v1319 = vmul.f32 %v1282, %v1299
        %v1320 = vmul.f32 %v1283, %v1299
        %v1321 = vmul.f32 %v1284, %v1299
        %v1322 = vmul.f32 %v1285, %v1299
        %v1323 = vmul.f32 %v1286, %v1299
        %v1324 = vmul.f32 %v1287, %v1299
        %v1325 = vmul.f32 %v1288, %v1299
        %v1326 = vmul.f32 %v1289, %v1299
        %v1327 = vmul.f32 %v1290, %v1299
        %v1328 = vmul.f32 %v1291, %v1299
        %v1329 = vmul.f32 %v1292, %v1299
        %v1330 = vmul.f32 %v1293, %v1299
        %v1331 = vmul.f32 %v1294, %v1299
        %v1332 = vadd.f32 %v1134, %v1300
        %v1333 = vadd.f32 %v1135, %v1301
        %v1334 = vadd.f32 %v1136, %v1302
        %v1335 = vadd.f32 %v1137, %v1303
        %v1336 = vadd.f32 %v1138, %v1304
        %v1337 = vadd.f32 %v1139, %v1305
        %v1338 = vadd.f32 %v1140, %v1306
        %v1339 = vadd.f32 %v1141, %v1307
        %v1340 = vadd.f32 %v1142, %v1308
        %v1341 = vadd.f32 %v1143, %v1309
        %v1342 = vadd.f32 %v1144, %v1310
        %v1343 = vadd.f32 %v1145, %v1311
        %v1344 = vadd.f32 %v1146, %v1312
        %v1345 = vadd.f32 %v1147, %v1313
        %v1346 = vadd.f32 %v1148, %v1314
        %v1347 = vadd.f32 %v1149, %v1315
        %v1348 = vadd.f32 %v1150, %v1316
        %v1349 = vadd.f32 %v1151, %v1317
        %v1350 = vadd.f32 %v1152, %v1318
        %v1351 = vadd.f32 %v1153, %v1319
        %v1352 = vadd.f32 %v1154, %v1320
        %v1353 = vadd.f32 %v1155, %v1321
        %v1354 = vadd.f32 %v1156, %v1322
        %v1355 = vadd.f32 %v1157, %v1323
        %v1356 = vadd.f32 %v1158, %v1324
        %v1357 = vadd.f32 %v1159, %v1325
        %v1358 = vadd.f32 %v1160, %v1326
        %v1359 = vadd.f32 %v1161, %v1327
        %v1360 = vadd.f32 %v1162, %v1328
        %v1361 = vadd.f32 %v1163, %v1329
        %v1362 = vadd.f32 %v1164, %v1330
        %v1363 = vadd.f32 %v1165, %v1331
        %v1364 = vrot.slane %v454, 2
        %v1365 = vrot.slane %v455, 2
        %v1366 = vrot.slane %v456, 2
        %v1367 = vrot.slane %v457, 2
        %v1368 = vrot.slane %v458, 2
        %v1369 = vrot.slane %v459, 2
        %v1370 = vrot.slane %v460, 2
        %v1371 = vrot.slane %v461, 2
        %v1372 = vrot.slane %v462, 2
        %v1373 = vrot.slane %v463, 2
        %v1374 = vrot.slane %v464, 2
        %v1375 = vrot.slane %v465, 2
        %v1376 = vrot.slane %v466, 2
        %v1377 = vrot.slane %v467, 2
        %v1378 = vrot.slane %v468, 2
        %v1379 = vrot.slane %v469, 2
        %v1380 = vrot.slane %v486, 2
        %v1381 = vrot.slane %v487, 2
        %v1382 = vrot.slane %v488, 2
        %v1383 = vrot.slane %v489, 2
        %v1384 = vrot.slane %v490, 2
        %v1385 = vrot.slane %v491, 2
        %v1386 = vrot.slane %v492, 2
        %v1387 = vrot.slane %v493, 2
        %v1388 = vrot.slane %v494, 2
        %v1389 = vrot.slane %v495, 2
        %v1390 = vrot.slane %v496, 2
        %v1391 = vrot.slane %v497, 2
        %v1392 = vrot.slane %v498, 2
        %v1393 = vrot.slane %v499, 2
        %v1394 = vrot.slane %v500, 2
        %v1395 = vrot.slane %v501, 2
        %vm1396 = vcmp.lt.s32.totalorder %v503, 6
        %v1397 = vsel %vm1396, %v1394, %v1395
        %v1398 = vsel %vm1396, %v1393, %v1394
        %v1399 = vsel %vm1396, %v1392, %v1393
        %v1400 = vsel %vm1396, %v1391, %v1392
        %v1401 = vsel %vm1396, %v1390, %v1391
        %v1402 = vsel %vm1396, %v1389, %v1390
        %v1403 = vsel %vm1396, %v1388, %v1389
        %v1404 = vsel %vm1396, %v1387, %v1388
        %v1405 = vsel %vm1396, %v1386, %v1387
        %v1406 = vsel %vm1396, %v1385, %v1386
        %v1407 = vsel %vm1396, %v1384, %v1385
        %v1408 = vsel %vm1396, %v1383, %v1384
        %v1409 = vsel %vm1396, %v1382, %v1383
        %v1410 = vsel %vm1396, %v1381, %v1382
        %v1411 = vsel %vm1396, %v1380, %v1381
        %v1412 = vsel %vm1396, %v1379, %v1380
        %v1413 = vsel %vm1396, %v1378, %v1379
        %v1414 = vsel %vm1396, %v1377, %v1378
        %v1415 = vsel %vm1396, %v1376, %v1377
        %v1416 = vsel %vm1396, %v1375, %v1376
        %v1417 = vsel %vm1396, %v1374, %v1375
        %v1418 = vsel %vm1396, %v1373, %v1374
        %v1419 = vsel %vm1396, %v1372, %v1373
        %v1420 = vsel %vm1396, %v1371, %v1372
        %v1421 = vsel %vm1396, %v1370, %v1371
        %v1422 = vsel %vm1396, %v1369, %v1370
        %v1423 = vsel %vm1396, %v1368, %v1369
        %v1424 = vsel %vm1396, %v1367, %v1368
        %v1425 = vsel %vm1396, %v1366, %v1367
        %v1426 = vsel %vm1396, %v1365, %v1366
        %v1427 = vsel %vm1396, %v1364, %v1365
        %v1428 = vsel %vm1396, %v1395, %v1364
        %vm1429 = vcmp.lt.s32.totalorder %v503, 254
        %vm1430 = vcmp.lt.s32.totalorder %v504, 254
        %vm1431 = vcmp.lt.s32.totalorder %v505, 254
        %vm1432 = vcmp.lt.s32.totalorder %v506, 254
        %vm1433 = vcmp.lt.s32.totalorder %v507, 254
        %vm1434 = vcmp.lt.s32.totalorder %v508, 254
        %vm1435 = vcmp.lt.s32.totalorder %v509, 254
        %vm1436 = vcmp.lt.s32.totalorder %v510, 254
        %vm1437 = vcmp.lt.s32.totalorder %v511, 254
        %vm1438 = vcmp.lt.s32.totalorder %v512, 254
        %vm1439 = vcmp.lt.s32.totalorder %v513, 254
        %vm1440 = vcmp.lt.s32.totalorder %v514, 254
        %vm1441 = vcmp.lt.s32.totalorder %v515, 254
        %vm1442 = vcmp.lt.s32.totalorder %v516, 254
        %vm1443 = vcmp.lt.s32.totalorder %v517, 254
        %vm1444 = vcmp.lt.s32.totalorder %v518, 254
        %vm1445 = vcmp.lt.s32.totalorder %v519, 254
        %vm1446 = vcmp.lt.s32.totalorder %v520, 254
        %vm1447 = vcmp.lt.s32.totalorder %v521, 254
        %vm1448 = vcmp.lt.s32.totalorder %v522, 254
        %vm1449 = vcmp.lt.s32.totalorder %v523, 254
        %vm1450 = vcmp.lt.s32.totalorder %v524, 254
        %vm1451 = vcmp.lt.s32.totalorder %v525, 254
        %vm1452 = vcmp.lt.s32.totalorder %v526, 254
        %vm1453 = vcmp.lt.s32.totalorder %v527, 254
        %vm1454 = vcmp.lt.s32.totalorder %v528, 254
        %vm1455 = vcmp.lt.s32.totalorder %v529, 254
        %vm1456 = vcmp.lt.s32.totalorder %v530, 254
        %vm1457 = vcmp.lt.s32.totalorder %v531, 254
        %vm1458 = vcmp.lt.s32.totalorder %v532, 254
        %vm1459 = vcmp.lt.s32.totalorder %v533, 254
        %vm1460 = vcmp.lt.s32.totalorder %v534, 254
        %v1461 = vsel %vm1429, %v1427, 0.0
        %v1462 = vsel %vm1430, %v1426, 0.0
        %v1463 = vsel %vm1431, %v1425, 0.0
        %v1464 = vsel %vm1432, %v1424, 0.0
        %v1465 = vsel %vm1433, %v1423, 0.0
        %v1466 = vsel %vm1434, %v1422, 0.0
        %v1467 = vsel %vm1435, %v1421, 0.0
        %v1468 = vsel %vm1436, %v1420, 0.0
        %v1469 = vsel %vm1437, %v1419, 0.0
        %v1470 = vsel %vm1438, %v1418, 0.0
        %v1471 = vsel %vm1439, %v1417, 0.0
        %v1472 = vsel %vm1440, %v1416, 0.0
        %v1473 = vsel %vm1441, %v1415, 0.0
        %v1474 = vsel %vm1442, %v1414, 0.0
        %v1475 = vsel %vm1443, %v1413, 0.0
        %v1476 = vsel %vm1444, %v1412, 0.0
        %v1477 = vsel %vm1445, %v1411, 0.0
        %v1478 = vsel %vm1446, %v1410, 0.0
        %v1479 = vsel %vm1447, %v1409, 0.0
        %v1480 = vsel %vm1448, %v1408, 0.0
        %v1481 = vsel %vm1449, %v1407, 0.0
        %v1482 = vsel %vm1450, %v1406, 0.0
        %v1483 = vsel %vm1451, %v1405, 0.0
        %v1484 = vsel %vm1452, %v1404, 0.0
        %v1485 = vsel %vm1453, %v1403, 0.0
        %v1486 = vsel %vm1454, %v1402, 0.0
        %v1487 = vsel %vm1455, %v1401, 0.0
        %v1488 = vsel %vm1456, %v1400, 0.0
        %v1489 = vsel %vm1457, %v1399, 0.0
        %v1490 = vsel %vm1458, %v1398, 0.0
        %v1491 = vsel %vm1459, %v1397, 0.0
        %v1492 = vsel %vm1460, %v1428, 0.0
        %v1493 = vld [vmem:[%s1 + $0x5] sm:$0x1]
        %v1494 = vlaneseq
        %v1495 = vshrl.u32 %v1494, 7
        %v1496 = vsub.s32 0, %v1495
        %v1497 = vrot.slane %v1493, %v1496
        %v1498 = vmul.f32 %v1461, %v1497
        %v1499 = vmul.f32 %v1462, %v1497
        %v1500 = vmul.f32 %v1463, %v1497
        %v1501 = vmul.f32 %v1464, %v1497
        %v1502 = vmul.f32 %v1465, %v1497
        %v1503 = vmul.f32 %v1466, %v1497
        %v1504 = vmul.f32 %v1467, %v1497
        %v1505 = vmul.f32 %v1468, %v1497
        %v1506 = vmul.f32 %v1469, %v1497
        %v1507 = vmul.f32 %v1470, %v1497
        %v1508 = vmul.f32 %v1471, %v1497
        %v1509 = vmul.f32 %v1472, %v1497
        %v1510 = vmul.f32 %v1473, %v1497
        %v1511 = vmul.f32 %v1474, %v1497
        %v1512 = vmul.f32 %v1475, %v1497
        %v1513 = vmul.f32 %v1476, %v1497
        %v1514 = vmul.f32 %v1477, %v1497
        %v1515 = vmul.f32 %v1478, %v1497
        %v1516 = vmul.f32 %v1479, %v1497
        %v1517 = vmul.f32 %v1480, %v1497
        %v1518 = vmul.f32 %v1481, %v1497
        %v1519 = vmul.f32 %v1482, %v1497
        %v1520 = vmul.f32 %v1483, %v1497
        %v1521 = vmul.f32 %v1484, %v1497
        %v1522 = vmul.f32 %v1485, %v1497
        %v1523 = vmul.f32 %v1486, %v1497
        %v1524 = vmul.f32 %v1487, %v1497
        %v1525 = vmul.f32 %v1488, %v1497
        %v1526 = vmul.f32 %v1489, %v1497
        %v1527 = vmul.f32 %v1490, %v1497
        %v1528 = vmul.f32 %v1491, %v1497
        %v1529 = vmul.f32 %v1492, %v1497
        %v1530 = vadd.f32 %v1332, %v1498
        %v1531 = vadd.f32 %v1333, %v1499
        %v1532 = vadd.f32 %v1334, %v1500
        %v1533 = vadd.f32 %v1335, %v1501
        %v1534 = vadd.f32 %v1336, %v1502
        %v1535 = vadd.f32 %v1337, %v1503
        %v1536 = vadd.f32 %v1338, %v1504
        %v1537 = vadd.f32 %v1339, %v1505
        %v1538 = vadd.f32 %v1340, %v1506
        %v1539 = vadd.f32 %v1341, %v1507
        %v1540 = vadd.f32 %v1342, %v1508
        %v1541 = vadd.f32 %v1343, %v1509
        %v1542 = vadd.f32 %v1344, %v1510
        %v1543 = vadd.f32 %v1345, %v1511
        %v1544 = vadd.f32 %v1346, %v1512
        %v1545 = vadd.f32 %v1347, %v1513
        %v1546 = vadd.f32 %v1348, %v1514
        %v1547 = vadd.f32 %v1349, %v1515
        %v1548 = vadd.f32 %v1350, %v1516
        %v1549 = vadd.f32 %v1351, %v1517
        %v1550 = vadd.f32 %v1352, %v1518
        %v1551 = vadd.f32 %v1353, %v1519
        %v1552 = vadd.f32 %v1354, %v1520
        %v1553 = vadd.f32 %v1355, %v1521
        %v1554 = vadd.f32 %v1356, %v1522
        %v1555 = vadd.f32 %v1357, %v1523
        %v1556 = vadd.f32 %v1358, %v1524
        %v1557 = vadd.f32 %v1359, %v1525
        %v1558 = vadd.f32 %v1360, %v1526
        %v1559 = vadd.f32 %v1361, %v1527
        %v1560 = vadd.f32 %v1362, %v1528
        %v1561 = vadd.f32 %v1363, %v1529
        %v1562 = vrot.slane %v454, 3
        %v1563 = vrot.slane %v455, 3
        %v1564 = vrot.slane %v456, 3
        %v1565 = vrot.slane %v457, 3
        %v1566 = vrot.slane %v458, 3
        %v1567 = vrot.slane %v459, 3
        %v1568 = vrot.slane %v460, 3
        %v1569 = vrot.slane %v461, 3
        %v1570 = vrot.slane %v462, 3
        %v1571 = vrot.slane %v463, 3
        %v1572 = vrot.slane %v464, 3
        %v1573 = vrot.slane %v465, 3
        %v1574 = vrot.slane %v466, 3
        %v1575 = vrot.slane %v467, 3
        %v1576 = vrot.slane %v468, 3
        %v1577 = vrot.slane %v469, 3
        %v1578 = vrot.slane %v486, 3
        %v1579 = vrot.slane %v487, 3
        %v1580 = vrot.slane %v488, 3
        %v1581 = vrot.slane %v489, 3
        %v1582 = vrot.slane %v490, 3
        %v1583 = vrot.slane %v491, 3
        %v1584 = vrot.slane %v492, 3
        %v1585 = vrot.slane %v493, 3
        %v1586 = vrot.slane %v494, 3
        %v1587 = vrot.slane %v495, 3
        %v1588 = vrot.slane %v496, 3
        %v1589 = vrot.slane %v497, 3
        %v1590 = vrot.slane %v498, 3
        %v1591 = vrot.slane %v499, 3
        %v1592 = vrot.slane %v500, 3
        %v1593 = vrot.slane %v501, 3
        %vm1594 = vcmp.lt.s32.totalorder %v503, 5
        %v1595 = vsel %vm1594, %v1592, %v1593
        %v1596 = vsel %vm1594, %v1591, %v1592
        %v1597 = vsel %vm1594, %v1590, %v1591
        %v1598 = vsel %vm1594, %v1589, %v1590
        %v1599 = vsel %vm1594, %v1588, %v1589
        %v1600 = vsel %vm1594, %v1587, %v1588
        %v1601 = vsel %vm1594, %v1586, %v1587
        %v1602 = vsel %vm1594, %v1585, %v1586
        %v1603 = vsel %vm1594, %v1584, %v1585
        %v1604 = vsel %vm1594, %v1583, %v1584
        %v1605 = vsel %vm1594, %v1582, %v1583
        %v1606 = vsel %vm1594, %v1581, %v1582
        %v1607 = vsel %vm1594, %v1580, %v1581
        %v1608 = vsel %vm1594, %v1579, %v1580
        %v1609 = vsel %vm1594, %v1578, %v1579
        %v1610 = vsel %vm1594, %v1577, %v1578
        %v1611 = vsel %vm1594, %v1576, %v1577
        %v1612 = vsel %vm1594, %v1575, %v1576
        %v1613 = vsel %vm1594, %v1574, %v1575
        %v1614 = vsel %vm1594, %v1573, %v1574
        %v1615 = vsel %vm1594, %v1572, %v1573
        %v1616 = vsel %vm1594, %v1571, %v1572
        %v1617 = vsel %vm1594, %v1570, %v1571
        %v1618 = vsel %vm1594, %v1569, %v1570
        %v1619 = vsel %vm1594, %v1568, %v1569
        %v1620 = vsel %vm1594, %v1567, %v1568
        %v1621 = vsel %vm1594, %v1566, %v1567
        %v1622 = vsel %vm1594, %v1565, %v1566
        %v1623 = vsel %vm1594, %v1564, %v1565
        %v1624 = vsel %vm1594, %v1563, %v1564
        %v1625 = vsel %vm1594, %v1562, %v1563
        %v1626 = vsel %vm1594, %v1593, %v1562
        %vm1627 = vcmp.lt.s32.totalorder %v503, 253
        %vm1628 = vcmp.lt.s32.totalorder %v504, 253
        %vm1629 = vcmp.lt.s32.totalorder %v505, 253
        %vm1630 = vcmp.lt.s32.totalorder %v506, 253
        %vm1631 = vcmp.lt.s32.totalorder %v507, 253
        %vm1632 = vcmp.lt.s32.totalorder %v508, 253
        %vm1633 = vcmp.lt.s32.totalorder %v509, 253
        %vm1634 = vcmp.lt.s32.totalorder %v510, 253
        %vm1635 = vcmp.lt.s32.totalorder %v511, 253
        %vm1636 = vcmp.lt.s32.totalorder %v512, 253
        %vm1637 = vcmp.lt.s32.totalorder %v513, 253
        %vm1638 = vcmp.lt.s32.totalorder %v514, 253
        %vm1639 = vcmp.lt.s32.totalorder %v515, 253
        %vm1640 = vcmp.lt.s32.totalorder %v516, 253
        %vm1641 = vcmp.lt.s32.totalorder %v517, 253
        %vm1642 = vcmp.lt.s32.totalorder %v518, 253
        %vm1643 = vcmp.lt.s32.totalorder %v519, 253
        %vm1644 = vcmp.lt.s32.totalorder %v520, 253
        %vm1645 = vcmp.lt.s32.totalorder %v521, 253
        %vm1646 = vcmp.lt.s32.totalorder %v522, 253
        %vm1647 = vcmp.lt.s32.totalorder %v523, 253
        %vm1648 = vcmp.lt.s32.totalorder %v524, 253
        %vm1649 = vcmp.lt.s32.totalorder %v525, 253
        %vm1650 = vcmp.lt.s32.totalorder %v526, 253
        %vm1651 = vcmp.lt.s32.totalorder %v527, 253
        %vm1652 = vcmp.lt.s32.totalorder %v528, 253
        %vm1653 = vcmp.lt.s32.totalorder %v529, 253
        %vm1654 = vcmp.lt.s32.totalorder %v530, 253
        %vm1655 = vcmp.lt.s32.totalorder %v531, 253
        %vm1656 = vcmp.lt.s32.totalorder %v532, 253
        %vm1657 = vcmp.lt.s32.totalorder %v533, 253
        %vm1658 = vcmp.lt.s32.totalorder %v534, 253
        %v1659 = vsel %vm1627, %v1625, 0.0
        %v1660 = vsel %vm1628, %v1624, 0.0
        %v1661 = vsel %vm1629, %v1623, 0.0
        %v1662 = vsel %vm1630, %v1622, 0.0
        %v1663 = vsel %vm1631, %v1621, 0.0
        %v1664 = vsel %vm1632, %v1620, 0.0
        %v1665 = vsel %vm1633, %v1619, 0.0
        %v1666 = vsel %vm1634, %v1618, 0.0
        %v1667 = vsel %vm1635, %v1617, 0.0
        %v1668 = vsel %vm1636, %v1616, 0.0
        %v1669 = vsel %vm1637, %v1615, 0.0
        %v1670 = vsel %vm1638, %v1614, 0.0
        %v1671 = vsel %vm1639, %v1613, 0.0
        %v1672 = vsel %vm1640, %v1612, 0.0
        %v1673 = vsel %vm1641, %v1611, 0.0
        %v1674 = vsel %vm1642, %v1610, 0.0
        %v1675 = vsel %vm1643, %v1609, 0.0
        %v1676 = vsel %vm1644, %v1608, 0.0
        %v1677 = vsel %vm1645, %v1607, 0.0
        %v1678 = vsel %vm1646, %v1606, 0.0
        %v1679 = vsel %vm1647, %v1605, 0.0
        %v1680 = vsel %vm1648, %v1604, 0.0
        %v1681 = vsel %vm1649, %v1603, 0.0
        %v1682 = vsel %vm1650, %v1602, 0.0
        %v1683 = vsel %vm1651, %v1601, 0.0
        %v1684 = vsel %vm1652, %v1600, 0.0
        %v1685 = vsel %vm1653, %v1599, 0.0
        %v1686 = vsel %vm1654, %v1598, 0.0
        %v1687 = vsel %vm1655, %v1597, 0.0
        %v1688 = vsel %vm1656, %v1596, 0.0
        %v1689 = vsel %vm1657, %v1595, 0.0
        %v1690 = vsel %vm1658, %v1626, 0.0
        %v1691 = vld [vmem:[%s1 + $0x6] sm:$0x1]
        %v1692 = vlaneseq
        %v1693 = vshrl.u32 %v1692, 7
        %v1694 = vsub.s32 0, %v1693
        %v1695 = vrot.slane %v1691, %v1694
        %v1696 = vmul.f32 %v1659, %v1695
        %v1697 = vmul.f32 %v1660, %v1695
        %v1698 = vmul.f32 %v1661, %v1695
        %v1699 = vmul.f32 %v1662, %v1695
        %v1700 = vmul.f32 %v1663, %v1695
        %v1701 = vmul.f32 %v1664, %v1695
        %v1702 = vmul.f32 %v1665, %v1695
        %v1703 = vmul.f32 %v1666, %v1695
        %v1704 = vmul.f32 %v1667, %v1695
        %v1705 = vmul.f32 %v1668, %v1695
        %v1706 = vmul.f32 %v1669, %v1695
        %v1707 = vmul.f32 %v1670, %v1695
        %v1708 = vmul.f32 %v1671, %v1695
        %v1709 = vmul.f32 %v1672, %v1695
        %v1710 = vmul.f32 %v1673, %v1695
        %v1711 = vmul.f32 %v1674, %v1695
        %v1712 = vmul.f32 %v1675, %v1695
        %v1713 = vmul.f32 %v1676, %v1695
        %v1714 = vmul.f32 %v1677, %v1695
        %v1715 = vmul.f32 %v1678, %v1695
        %v1716 = vmul.f32 %v1679, %v1695
        %v1717 = vmul.f32 %v1680, %v1695
        %v1718 = vmul.f32 %v1681, %v1695
        %v1719 = vmul.f32 %v1682, %v1695
        %v1720 = vmul.f32 %v1683, %v1695
        %v1721 = vmul.f32 %v1684, %v1695
        %v1722 = vmul.f32 %v1685, %v1695
        %v1723 = vmul.f32 %v1686, %v1695
        %v1724 = vmul.f32 %v1687, %v1695
        %v1725 = vmul.f32 %v1688, %v1695
        %v1726 = vmul.f32 %v1689, %v1695
        %v1727 = vmul.f32 %v1690, %v1695
        %v1728 = vadd.f32 %v1530, %v1696
        %v1729 = vadd.f32 %v1531, %v1697
        %v1730 = vadd.f32 %v1532, %v1698
        %v1731 = vadd.f32 %v1533, %v1699
        %v1732 = vadd.f32 %v1534, %v1700
        %v1733 = vadd.f32 %v1535, %v1701
        %v1734 = vadd.f32 %v1536, %v1702
        %v1735 = vadd.f32 %v1537, %v1703
        %v1736 = vadd.f32 %v1538, %v1704
        %v1737 = vadd.f32 %v1539, %v1705
        %v1738 = vadd.f32 %v1540, %v1706
        %v1739 = vadd.f32 %v1541, %v1707
        %v1740 = vadd.f32 %v1542, %v1708
        %v1741 = vadd.f32 %v1543, %v1709
        %v1742 = vadd.f32 %v1544, %v1710
        %v1743 = vadd.f32 %v1545, %v1711
        %v1744 = vadd.f32 %v1546, %v1712
        %v1745 = vadd.f32 %v1547, %v1713
        %v1746 = vadd.f32 %v1548, %v1714
        %v1747 = vadd.f32 %v1549, %v1715
        %v1748 = vadd.f32 %v1550, %v1716
        %v1749 = vadd.f32 %v1551, %v1717
        %v1750 = vadd.f32 %v1552, %v1718
        %v1751 = vadd.f32 %v1553, %v1719
        %v1752 = vadd.f32 %v1554, %v1720
        %v1753 = vadd.f32 %v1555, %v1721
        %v1754 = vadd.f32 %v1556, %v1722
        %v1755 = vadd.f32 %v1557, %v1723
        %v1756 = vadd.f32 %v1558, %v1724
        %v1757 = vadd.f32 %v1559, %v1725
        %v1758 = vadd.f32 %v1560, %v1726
        %v1759 = vadd.f32 %v1561, %v1727
        %v1760 = vld [vmem:[%s2] sm:$0x1]
        %v1762 = vlaneseq
        %v1763 = vshrl.u32 %v1762, 7
        %v1764 = vsub.s32 0, %v1763
        %v1765 = vrot.slane %v1760, %v1764
        %v1767 = vadd.f32 %v1728, %v1765
        %v1768 = vadd.f32 %v1729, %v1765
        %v1769 = vadd.f32 %v1730, %v1765
        %v1770 = vadd.f32 %v1731, %v1765
        %v1771 = vadd.f32 %v1732, %v1765
        %v1772 = vadd.f32 %v1733, %v1765
        %v1773 = vadd.f32 %v1734, %v1765
        %v1774 = vadd.f32 %v1735, %v1765
        %v1775 = vadd.f32 %v1736, %v1765
        %v1776 = vadd.f32 %v1737, %v1765
        %v1777 = vadd.f32 %v1738, %v1765
        %v1778 = vadd.f32 %v1739, %v1765
        %v1779 = vadd.f32 %v1740, %v1765
        %v1780 = vadd.f32 %v1741, %v1765
        %v1781 = vadd.f32 %v1742, %v1765
        %v1782 = vadd.f32 %v1743, %v1765
        %v1783 = vadd.f32 %v1744, %v1765
        %v1784 = vadd.f32 %v1745, %v1765
        %v1785 = vadd.f32 %v1746, %v1765
        %v1786 = vadd.f32 %v1747, %v1765
        %v1787 = vadd.f32 %v1748, %v1765
        %v1788 = vadd.f32 %v1749, %v1765
        %v1789 = vadd.f32 %v1750, %v1765
        %v1790 = vadd.f32 %v1751, %v1765
        %v1791 = vadd.f32 %v1752, %v1765
        %v1792 = vadd.f32 %v1753, %v1765
        %v1793 = vadd.f32 %v1754, %v1765
        %v1794 = vadd.f32 %v1755, %v1765
        %v1795 = vadd.f32 %v1756, %v1765
        %v1796 = vadd.f32 %v1757, %v1765
        %v1797 = vadd.f32 %v1758, %v1765
        %v1798 = vadd.f32 %v1759, %v1765
        %1799 = vadd.xlane.f32.xlu0 %v1767
        %v1800 = vpop.xlane.xlu0 %1799
        %1801 = vadd.xlane.f32.xlu0 %v1768
        %v1802 = vpop.xlane.xlu0 %1801
        %1803 = vadd.xlane.f32.xlu0 %v1769
        %v1804 = vpop.xlane.xlu0 %1803
        %1805 = vadd.xlane.f32.xlu0 %v1770
        %v1806 = vpop.xlane.xlu0 %1805
        %1807 = vadd.xlane.f32.xlu0 %v1771
        %v1808 = vpop.xlane.xlu0 %1807
        %1809 = vadd.xlane.f32.xlu0 %v1772
        %v1810 = vpop.xlane.xlu0 %1809
        %1811 = vadd.xlane.f32.xlu0 %v1773
        %v1812 = vpop.xlane.xlu0 %1811
        %1813 = vadd.xlane.f32.xlu0 %v1774
        %v1814 = vpop.xlane.xlu0 %1813
        %1815 = vadd.xlane.f32.xlu0 %v1775
        %v1816 = vpop.xlane.xlu0 %1815
        %1817 = vadd.xlane.f32.xlu0 %v1776
        %v1818 = vpop.xlane.xlu0 %1817
        %1819 = vadd.xlane.f32.xlu0 %v1777
        %v1820 = vpop.xlane.xlu0 %1819
        %1821 = vadd.xlane.f32.xlu0 %v1778
        %v1822 = vpop.xlane.xlu0 %1821
        %1823 = vadd.xlane.f32.xlu0 %v1779
        %v1824 = vpop.xlane.xlu0 %1823
        %1825 = vadd.xlane.f32.xlu0 %v1780
        %v1826 = vpop.xlane.xlu0 %1825
        %1827 = vadd.xlane.f32.xlu0 %v1781
        %v1828 = vpop.xlane.xlu0 %1827
        %1829 = vadd.xlane.f32.xlu0 %v1782
        %v1830 = vpop.xlane.xlu0 %1829
        %1831 = vadd.xlane.f32.xlu0 %v1783
        %v1832 = vpop.xlane.xlu0 %1831
        %1833 = vadd.xlane.f32.xlu0 %v1784
        %v1834 = vpop.xlane.xlu0 %1833
        %1835 = vadd.xlane.f32.xlu0 %v1785
        %v1836 = vpop.xlane.xlu0 %1835
        %1837 = vadd.xlane.f32.xlu0 %v1786
        %v1838 = vpop.xlane.xlu0 %1837
        %1839 = vadd.xlane.f32.xlu0 %v1787
        %v1840 = vpop.xlane.xlu0 %1839
        %1841 = vadd.xlane.f32.xlu0 %v1788
        %v1842 = vpop.xlane.xlu0 %1841
        %1843 = vadd.xlane.f32.xlu0 %v1789
        %v1844 = vpop.xlane.xlu0 %1843
        %1845 = vadd.xlane.f32.xlu0 %v1790
        %v1846 = vpop.xlane.xlu0 %1845
        %1847 = vadd.xlane.f32.xlu0 %v1791
        %v1848 = vpop.xlane.xlu0 %1847
        %1849 = vadd.xlane.f32.xlu0 %v1792
        %v1850 = vpop.xlane.xlu0 %1849
        %1851 = vadd.xlane.f32.xlu0 %v1793
        %v1852 = vpop.xlane.xlu0 %1851
        %1853 = vadd.xlane.f32.xlu0 %v1794
        %v1854 = vpop.xlane.xlu0 %1853
        %1855 = vadd.xlane.f32.xlu0 %v1795
        %v1856 = vpop.xlane.xlu0 %1855
        %1857 = vadd.xlane.f32.xlu0 %v1796
        %v1858 = vpop.xlane.xlu0 %1857
        %1859 = vadd.xlane.f32.xlu0 %v1797
        %v1860 = vpop.xlane.xlu0 %1859
        %1861 = vadd.xlane.f32.xlu0 %v1798
        %v1862 = vpop.xlane.xlu0 %1861
        %v1863 = vrcp.pop 128.0
        %v1864 = vmul.f32 %v1800, %v1863
        %v1865 = vmul.f32 %v1802, %v1863
        %v1866 = vmul.f32 %v1804, %v1863
        %v1867 = vmul.f32 %v1806, %v1863
        %v1868 = vmul.f32 %v1808, %v1863
        %v1869 = vmul.f32 %v1810, %v1863
        %v1870 = vmul.f32 %v1812, %v1863
        %v1871 = vmul.f32 %v1814, %v1863
        %v1872 = vmul.f32 %v1816, %v1863
        %v1873 = vmul.f32 %v1818, %v1863
        %v1874 = vmul.f32 %v1820, %v1863
        %v1875 = vmul.f32 %v1822, %v1863
        %v1876 = vmul.f32 %v1824, %v1863
        %v1877 = vmul.f32 %v1826, %v1863
        %v1878 = vmul.f32 %v1828, %v1863
        %v1879 = vmul.f32 %v1830, %v1863
        %v1880 = vmul.f32 %v1832, %v1863
        %v1881 = vmul.f32 %v1834, %v1863
        %v1882 = vmul.f32 %v1836, %v1863
        %v1883 = vmul.f32 %v1838, %v1863
        %v1884 = vmul.f32 %v1840, %v1863
        %v1885 = vmul.f32 %v1842, %v1863
        %v1886 = vmul.f32 %v1844, %v1863
        %v1887 = vmul.f32 %v1846, %v1863
        %v1888 = vmul.f32 %v1848, %v1863
        %v1889 = vmul.f32 %v1850, %v1863
        %v1890 = vmul.f32 %v1852, %v1863
        %v1891 = vmul.f32 %v1854, %v1863
        %v1892 = vmul.f32 %v1856, %v1863
        %v1893 = vmul.f32 %v1858, %v1863
        %v1894 = vmul.f32 %v1860, %v1863
        %v1895 = vmul.f32 %v1862, %v1863
        %v1896 = vsub.f32 %v1767, %v1864
        %v1897 = vsub.f32 %v1768, %v1865
        %v1898 = vsub.f32 %v1769, %v1866
        %v1899 = vsub.f32 %v1770, %v1867
        %v1900 = vsub.f32 %v1771, %v1868
        %v1901 = vsub.f32 %v1772, %v1869
        %v1902 = vsub.f32 %v1773, %v1870
        %v1903 = vsub.f32 %v1774, %v1871
        %v1904 = vsub.f32 %v1775, %v1872
        %v1905 = vsub.f32 %v1776, %v1873
        %v1906 = vsub.f32 %v1777, %v1874
        %v1907 = vsub.f32 %v1778, %v1875
        %v1908 = vsub.f32 %v1779, %v1876
        %v1909 = vsub.f32 %v1780, %v1877
        %v1910 = vsub.f32 %v1781, %v1878
        %v1911 = vsub.f32 %v1782, %v1879
        %v1912 = vsub.f32 %v1783, %v1880
        %v1913 = vsub.f32 %v1784, %v1881
        %v1914 = vsub.f32 %v1785, %v1882
        %v1915 = vsub.f32 %v1786, %v1883
        %v1916 = vsub.f32 %v1787, %v1884
        %v1917 = vsub.f32 %v1788, %v1885
        %v1918 = vsub.f32 %v1789, %v1886
        %v1919 = vsub.f32 %v1790, %v1887
        %v1920 = vsub.f32 %v1791, %v1888
        %v1921 = vsub.f32 %v1792, %v1889
        %v1922 = vsub.f32 %v1793, %v1890
        %v1923 = vsub.f32 %v1794, %v1891
        %v1924 = vsub.f32 %v1795, %v1892
        %v1925 = vsub.f32 %v1796, %v1893
        %v1926 = vsub.f32 %v1797, %v1894
        %v1927 = vsub.f32 %v1798, %v1895
        %v1928 = vmul.f32 %v1896, %v1896
        %v1929 = vmul.f32 %v1897, %v1897
        %v1930 = vmul.f32 %v1898, %v1898
        %v1931 = vmul.f32 %v1899, %v1899
        %v1932 = vmul.f32 %v1900, %v1900
        %v1933 = vmul.f32 %v1901, %v1901
        %v1934 = vmul.f32 %v1902, %v1902
        %v1935 = vmul.f32 %v1903, %v1903
        %v1936 = vmul.f32 %v1904, %v1904
        %v1937 = vmul.f32 %v1905, %v1905
        %v1938 = vmul.f32 %v1906, %v1906
        %v1939 = vmul.f32 %v1907, %v1907
        %v1940 = vmul.f32 %v1908, %v1908
        %v1941 = vmul.f32 %v1909, %v1909
        %v1942 = vmul.f32 %v1910, %v1910
        %v1943 = vmul.f32 %v1911, %v1911
        %v1944 = vmul.f32 %v1912, %v1912
        %v1945 = vmul.f32 %v1913, %v1913
        %v1946 = vmul.f32 %v1914, %v1914
        %v1947 = vmul.f32 %v1915, %v1915
        %v1948 = vmul.f32 %v1916, %v1916
        %v1949 = vmul.f32 %v1917, %v1917
        %v1950 = vmul.f32 %v1918, %v1918
        %v1951 = vmul.f32 %v1919, %v1919
        %v1952 = vmul.f32 %v1920, %v1920
        %v1953 = vmul.f32 %v1921, %v1921
        %v1954 = vmul.f32 %v1922, %v1922
        %v1955 = vmul.f32 %v1923, %v1923
        %v1956 = vmul.f32 %v1924, %v1924
        %v1957 = vmul.f32 %v1925, %v1925
        %v1958 = vmul.f32 %v1926, %v1926
        %v1959 = vmul.f32 %v1927, %v1927
        %1960 = vadd.xlane.f32.xlu0 %v1928
        %v1961 = vpop.xlane.xlu0 %1960
        %1962 = vadd.xlane.f32.xlu0 %v1929
        %v1963 = vpop.xlane.xlu0 %1962
        %1964 = vadd.xlane.f32.xlu0 %v1930
        %v1965 = vpop.xlane.xlu0 %1964
        %1966 = vadd.xlane.f32.xlu0 %v1931
        %v1967 = vpop.xlane.xlu0 %1966
        %1968 = vadd.xlane.f32.xlu0 %v1932
        %v1969 = vpop.xlane.xlu0 %1968
        %1970 = vadd.xlane.f32.xlu0 %v1933
        %v1971 = vpop.xlane.xlu0 %1970
        %1972 = vadd.xlane.f32.xlu0 %v1934
        %v1973 = vpop.xlane.xlu0 %1972
        %1974 = vadd.xlane.f32.xlu0 %v1935
        %v1975 = vpop.xlane.xlu0 %1974
        %1976 = vadd.xlane.f32.xlu0 %v1936
        %v1977 = vpop.xlane.xlu0 %1976
        %1978 = vadd.xlane.f32.xlu0 %v1937
        %v1979 = vpop.xlane.xlu0 %1978
        %1980 = vadd.xlane.f32.xlu0 %v1938
        %v1981 = vpop.xlane.xlu0 %1980
        %1982 = vadd.xlane.f32.xlu0 %v1939
        %v1983 = vpop.xlane.xlu0 %1982
        %1984 = vadd.xlane.f32.xlu0 %v1940
        %v1985 = vpop.xlane.xlu0 %1984
        %1986 = vadd.xlane.f32.xlu0 %v1941
        %v1987 = vpop.xlane.xlu0 %1986
        %1988 = vadd.xlane.f32.xlu0 %v1942
        %v1989 = vpop.xlane.xlu0 %1988
        %1990 = vadd.xlane.f32.xlu0 %v1943
        %v1991 = vpop.xlane.xlu0 %1990
        %1992 = vadd.xlane.f32.xlu0 %v1944
        %v1993 = vpop.xlane.xlu0 %1992
        %1994 = vadd.xlane.f32.xlu0 %v1945
        %v1995 = vpop.xlane.xlu0 %1994
        %1996 = vadd.xlane.f32.xlu0 %v1946
        %v1997 = vpop.xlane.xlu0 %1996
        %1998 = vadd.xlane.f32.xlu0 %v1947
        %v1999 = vpop.xlane.xlu0 %1998
        %2000 = vadd.xlane.f32.xlu0 %v1948
        %v2001 = vpop.xlane.xlu0 %2000
        %2002 = vadd.xlane.f32.xlu0 %v1949
        %v2003 = vpop.xlane.xlu0 %2002
        %2004 = vadd.xlane.f32.xlu0 %v1950
        %v2005 = vpop.xlane.xlu0 %2004
        %2006 = vadd.xlane.f32.xlu0 %v1951
        %v2007 = vpop.xlane.xlu0 %2006
        %2008 = vadd.xlane.f32.xlu0 %v1952
        %v2009 = vpop.xlane.xlu0 %2008
        %2010 = vadd.xlane.f32.xlu0 %v1953
        %v2011 = vpop.xlane.xlu0 %2010
        %2012 = vadd.xlane.f32.xlu0 %v1954
        %v2013 = vpop.xlane.xlu0 %2012
        %2014 = vadd.xlane.f32.xlu0 %v1955
        %v2015 = vpop.xlane.xlu0 %2014
        %2016 = vadd.xlane.f32.xlu0 %v1956
        %v2017 = vpop.xlane.xlu0 %2016
        %2018 = vadd.xlane.f32.xlu0 %v1957
        %v2019 = vpop.xlane.xlu0 %2018
        %2020 = vadd.xlane.f32.xlu0 %v1958
        %v2021 = vpop.xlane.xlu0 %2020
        %2022 = vadd.xlane.f32.xlu0 %v1959
        %v2023 = vpop.xlane.xlu0 %2022
        %v2024 = vmul.f32 %v1961, %v1863
        %v2025 = vmul.f32 %v1963, %v1863
        %v2026 = vmul.f32 %v1965, %v1863
        %v2027 = vmul.f32 %v1967, %v1863
        %v2028 = vmul.f32 %v1969, %v1863
        %v2029 = vmul.f32 %v1971, %v1863
        %v2030 = vmul.f32 %v1973, %v1863
        %v2031 = vmul.f32 %v1975, %v1863
        %v2032 = vmul.f32 %v1977, %v1863
        %v2033 = vmul.f32 %v1979, %v1863
        %v2034 = vmul.f32 %v1981, %v1863
        %v2035 = vmul.f32 %v1983, %v1863
        %v2036 = vmul.f32 %v1985, %v1863
        %v2037 = vmul.f32 %v1987, %v1863
        %v2038 = vmul.f32 %v1989, %v1863
        %v2039 = vmul.f32 %v1991, %v1863
        %v2040 = vmul.f32 %v1993, %v1863
        %v2041 = vmul.f32 %v1995, %v1863
        %v2042 = vmul.f32 %v1997, %v1863
        %v2043 = vmul.f32 %v1999, %v1863
        %v2044 = vmul.f32 %v2001, %v1863
        %v2045 = vmul.f32 %v2003, %v1863
        %v2046 = vmul.f32 %v2005, %v1863
        %v2047 = vmul.f32 %v2007, %v1863
        %v2048 = vmul.f32 %v2009, %v1863
        %v2049 = vmul.f32 %v2011, %v1863
        %v2050 = vmul.f32 %v2013, %v1863
        %v2051 = vmul.f32 %v2015, %v1863
        %v2052 = vmul.f32 %v2017, %v1863
        %v2053 = vmul.f32 %v2019, %v1863
        %v2054 = vmul.f32 %v2021, %v1863
        %v2055 = vmul.f32 %v2023, %v1863
        %v2056 = vadd.f32 %v2024, 1e-06
        %v2057 = vadd.f32 %v2025, 1e-06
        %v2058 = vadd.f32 %v2026, 1e-06
        %v2059 = vadd.f32 %v2027, 1e-06
        %v2060 = vadd.f32 %v2028, 1e-06
        %v2061 = vadd.f32 %v2029, 1e-06
        %v2062 = vadd.f32 %v2030, 1e-06
        %v2063 = vadd.f32 %v2031, 1e-06
        %v2064 = vadd.f32 %v2032, 1e-06
        %v2065 = vadd.f32 %v2033, 1e-06
        %v2066 = vadd.f32 %v2034, 1e-06
        %v2067 = vadd.f32 %v2035, 1e-06
        %v2068 = vadd.f32 %v2036, 1e-06
        %v2069 = vadd.f32 %v2037, 1e-06
        %v2070 = vadd.f32 %v2038, 1e-06
        %v2071 = vadd.f32 %v2039, 1e-06
        %v2072 = vadd.f32 %v2040, 1e-06
        %v2073 = vadd.f32 %v2041, 1e-06
        %v2074 = vadd.f32 %v2042, 1e-06
        %v2075 = vadd.f32 %v2043, 1e-06
        %v2076 = vadd.f32 %v2044, 1e-06
        %v2077 = vadd.f32 %v2045, 1e-06
        %v2078 = vadd.f32 %v2046, 1e-06
        %v2079 = vadd.f32 %v2047, 1e-06
        %v2080 = vadd.f32 %v2048, 1e-06
        %v2081 = vadd.f32 %v2049, 1e-06
        %v2082 = vadd.f32 %v2050, 1e-06
        %v2083 = vadd.f32 %v2051, 1e-06
        %v2084 = vadd.f32 %v2052, 1e-06
        %v2085 = vadd.f32 %v2053, 1e-06
        %v2086 = vadd.f32 %v2054, 1e-06
        %v2087 = vadd.f32 %v2055, 1e-06
        %v2088 = vrsqrt.pop %v2056
        %v2089 = vrsqrt.pop %v2057
        %v2090 = vrsqrt.pop %v2058
        %v2091 = vrsqrt.pop %v2059
        %v2092 = vrsqrt.pop %v2060
        %v2093 = vrsqrt.pop %v2061
        %v2094 = vrsqrt.pop %v2062
        %v2095 = vrsqrt.pop %v2063
        %v2096 = vrsqrt.pop %v2064
        %v2097 = vrsqrt.pop %v2065
        %v2098 = vrsqrt.pop %v2066
        %v2099 = vrsqrt.pop %v2067
        %v2100 = vrsqrt.pop %v2068
        %v2101 = vrsqrt.pop %v2069
        %v2102 = vrsqrt.pop %v2070
        %v2103 = vrsqrt.pop %v2071
        %v2104 = vrsqrt.pop %v2072
        %v2105 = vrsqrt.pop %v2073
        %v2106 = vrsqrt.pop %v2074
        %v2107 = vrsqrt.pop %v2075
        %v2108 = vrsqrt.pop %v2076
        %v2109 = vrsqrt.pop %v2077
        %v2110 = vrsqrt.pop %v2078
        %v2111 = vrsqrt.pop %v2079
        %v2112 = vrsqrt.pop %v2080
        %v2113 = vrsqrt.pop %v2081
        %v2114 = vrsqrt.pop %v2082
        %v2115 = vrsqrt.pop %v2083
        %v2116 = vrsqrt.pop %v2084
        %v2117 = vrsqrt.pop %v2085
        %v2118 = vrsqrt.pop %v2086
        %v2119 = vrsqrt.pop %v2087
        %v2120 = vmul.f32 %v1896, %v2088
        %v2121 = vmul.f32 %v1897, %v2089
        %v2122 = vmul.f32 %v1898, %v2090
        %v2123 = vmul.f32 %v1899, %v2091
        %v2124 = vmul.f32 %v1900, %v2092
        %v2125 = vmul.f32 %v1901, %v2093
        %v2126 = vmul.f32 %v1902, %v2094
        %v2127 = vmul.f32 %v1903, %v2095
        %v2128 = vmul.f32 %v1904, %v2096
        %v2129 = vmul.f32 %v1905, %v2097
        %v2130 = vmul.f32 %v1906, %v2098
        %v2131 = vmul.f32 %v1907, %v2099
        %v2132 = vmul.f32 %v1908, %v2100
        %v2133 = vmul.f32 %v1909, %v2101
        %v2134 = vmul.f32 %v1910, %v2102
        %v2135 = vmul.f32 %v1911, %v2103
        %v2136 = vmul.f32 %v1912, %v2104
        %v2137 = vmul.f32 %v1913, %v2105
        %v2138 = vmul.f32 %v1914, %v2106
        %v2139 = vmul.f32 %v1915, %v2107
        %v2140 = vmul.f32 %v1916, %v2108
        %v2141 = vmul.f32 %v1917, %v2109
        %v2142 = vmul.f32 %v1918, %v2110
        %v2143 = vmul.f32 %v1919, %v2111
        %v2144 = vmul.f32 %v1920, %v2112
        %v2145 = vmul.f32 %v1921, %v2113
        %v2146 = vmul.f32 %v1922, %v2114
        %v2147 = vmul.f32 %v1923, %v2115
        %v2148 = vmul.f32 %v1924, %v2116
        %v2149 = vmul.f32 %v1925, %v2117
        %v2150 = vmul.f32 %v1926, %v2118
        %v2151 = vmul.f32 %v1927, %v2119
        %v2152 = vld [vmem:[%s3] sm:$0x1]
        %v2154 = vlaneseq
        %v2155 = vshrl.u32 %v2154, 7
        %v2156 = vsub.s32 0, %v2155
        %v2157 = vrot.slane %v2152, %v2156
        %v2159 = vmul.f32 %v2120, %v2157
        %v2160 = vmul.f32 %v2121, %v2157
        %v2161 = vmul.f32 %v2122, %v2157
        %v2162 = vmul.f32 %v2123, %v2157
        %v2163 = vmul.f32 %v2124, %v2157
        %v2164 = vmul.f32 %v2125, %v2157
        %v2165 = vmul.f32 %v2126, %v2157
        %v2166 = vmul.f32 %v2127, %v2157
        %v2167 = vmul.f32 %v2128, %v2157
        %v2168 = vmul.f32 %v2129, %v2157
        %v2169 = vmul.f32 %v2130, %v2157
        %v2170 = vmul.f32 %v2131, %v2157
        %v2171 = vmul.f32 %v2132, %v2157
        %v2172 = vmul.f32 %v2133, %v2157
        %v2173 = vmul.f32 %v2134, %v2157
        %v2174 = vmul.f32 %v2135, %v2157
        %v2175 = vmul.f32 %v2136, %v2157
        %v2176 = vmul.f32 %v2137, %v2157
        %v2177 = vmul.f32 %v2138, %v2157
        %v2178 = vmul.f32 %v2139, %v2157
        %v2179 = vmul.f32 %v2140, %v2157
        %v2180 = vmul.f32 %v2141, %v2157
        %v2181 = vmul.f32 %v2142, %v2157
        %v2182 = vmul.f32 %v2143, %v2157
        %v2183 = vmul.f32 %v2144, %v2157
        %v2184 = vmul.f32 %v2145, %v2157
        %v2185 = vmul.f32 %v2146, %v2157
        %v2186 = vmul.f32 %v2147, %v2157
        %v2187 = vmul.f32 %v2148, %v2157
        %v2188 = vmul.f32 %v2149, %v2157
        %v2189 = vmul.f32 %v2150, %v2157
        %v2190 = vmul.f32 %v2151, %v2157
        %v2191 = vld [vmem:[%s4] sm:$0x1]
        %v2193 = vlaneseq
        %v2194 = vshrl.u32 %v2193, 7
        %v2195 = vsub.s32 0, %v2194
        %v2196 = vrot.slane %v2191, %v2195
        %v2198 = vadd.f32 %v2159, %v2196
        %v2199 = vadd.f32 %v2160, %v2196
        %v2200 = vadd.f32 %v2161, %v2196
        %v2201 = vadd.f32 %v2162, %v2196
        %v2202 = vadd.f32 %v2163, %v2196
        %v2203 = vadd.f32 %v2164, %v2196
        %v2204 = vadd.f32 %v2165, %v2196
        %v2205 = vadd.f32 %v2166, %v2196
        %v2206 = vadd.f32 %v2167, %v2196
        %v2207 = vadd.f32 %v2168, %v2196
        %v2208 = vadd.f32 %v2169, %v2196
        %v2209 = vadd.f32 %v2170, %v2196
        %v2210 = vadd.f32 %v2171, %v2196
        %v2211 = vadd.f32 %v2172, %v2196
        %v2212 = vadd.f32 %v2173, %v2196
        %v2213 = vadd.f32 %v2174, %v2196
        %v2214 = vadd.f32 %v2175, %v2196
        %v2215 = vadd.f32 %v2176, %v2196
        %v2216 = vadd.f32 %v2177, %v2196
        %v2217 = vadd.f32 %v2178, %v2196
        %v2218 = vadd.f32 %v2179, %v2196
        %v2219 = vadd.f32 %v2180, %v2196
        %v2220 = vadd.f32 %v2181, %v2196
        %v2221 = vadd.f32 %v2182, %v2196
        %v2222 = vadd.f32 %v2183, %v2196
        %v2223 = vadd.f32 %v2184, %v2196
        %v2224 = vadd.f32 %v2185, %v2196
        %v2225 = vadd.f32 %v2186, %v2196
        %v2226 = vadd.f32 %v2187, %v2196
        %v2227 = vadd.f32 %v2188, %v2196
        %v2228 = vadd.f32 %v2189, %v2196
        %v2229 = vadd.f32 %v2190, %v2196
        %v2230 = vpack.c.bf16 %v2199, %v2198
        %v2231 = vpack.c.bf16 %v2201, %v2200
        %v2232 = vpack.c.bf16 %v2203, %v2202
        %v2233 = vpack.c.bf16 %v2205, %v2204
        %v2234 = vpack.c.bf16 %v2207, %v2206
        %v2235 = vpack.c.bf16 %v2209, %v2208
        %v2236 = vpack.c.bf16 %v2211, %v2210
        %v2237 = vpack.c.bf16 %v2213, %v2212
        %v2238 = vpack.c.bf16 %v2215, %v2214
        %v2239 = vpack.c.bf16 %v2217, %v2216
        %v2240 = vpack.c.bf16 %v2219, %v2218
        %v2241 = vpack.c.bf16 %v2221, %v2220
        %v2242 = vpack.c.bf16 %v2223, %v2222
        %v2243 = vpack.c.bf16 %v2225, %v2224
        %v2244 = vpack.c.bf16 %v2227, %v2226
        %v2245 = vpack.c.bf16 %v2229, %v2228
        %v2246 = vld [vmem:[%s5] sm:$0xff]
        %v2247 = vld [vmem:[%s5 + $0x8] sm:$0xff]
        %v2248 = vld [vmem:[%s5 + $0x10] sm:$0xff]
        %v2249 = vld [vmem:[%s5 + $0x18] sm:$0xff]
        %v2250 = vld [vmem:[%s5 + $0x20] sm:$0xff]
        %v2251 = vld [vmem:[%s5 + $0x28] sm:$0xff]
        %v2252 = vld [vmem:[%s5 + $0x30] sm:$0xff]
        %v2253 = vld [vmem:[%s5 + $0x38] sm:$0xff]
        %v2254 = vld [vmem:[%s5 + $0x40] sm:$0xff]
        %v2255 = vld [vmem:[%s5 + $0x48] sm:$0xff]
        %v2256 = vld [vmem:[%s5 + $0x50] sm:$0xff]
        %v2257 = vld [vmem:[%s5 + $0x58] sm:$0xff]
        %v2258 = vld [vmem:[%s5 + $0x60] sm:$0xff]
        %v2259 = vld [vmem:[%s5 + $0x68] sm:$0xff]
        %v2260 = vld [vmem:[%s5 + $0x70] sm:$0xff]
        %v2261 = vld [vmem:[%s5 + $0x78] sm:$0xff]
        %v2262 = vld [vmem:[%s6] sm:$0x3]
        %v2264 = vlaneseq
        %v2265 = vshrl.u32 %v2264, 7
        %v2266 = vsub.s32 0, %v2265
        %v2267 = vrot.slane %v2262, %v2266
        %v2268 = vlaneseq
        %v2269 = vshrl.u32 %v2268, 7
        %v2270 = vsub.s32 1, %v2269
        %v2271 = vrot.slane %v2262, %v2270
        %v2290 = vunpack.c.l.b16 %v2246
        %v2291 = vunpack.c.h.b16 %v2246
        %v2292 = vunpack.c.l.b16 %v2247
        %v2293 = vunpack.c.h.b16 %v2247
        %v2294 = vunpack.c.l.b16 %v2248
        %v2295 = vunpack.c.h.b16 %v2248
        %v2296 = vunpack.c.l.b16 %v2249
        %v2297 = vunpack.c.h.b16 %v2249
        %v2298 = vunpack.c.l.b16 %v2250
        %v2299 = vunpack.c.h.b16 %v2250
        %v2300 = vunpack.c.l.b16 %v2251
        %v2301 = vunpack.c.h.b16 %v2251
        %v2302 = vunpack.c.l.b16 %v2252
        %v2303 = vunpack.c.h.b16 %v2252
        %v2304 = vunpack.c.l.b16 %v2253
        %v2305 = vunpack.c.h.b16 %v2253
        %v2306 = vunpack.c.l.b16 %v2254
        %v2307 = vunpack.c.h.b16 %v2254
        %v2308 = vunpack.c.l.b16 %v2255
        %v2309 = vunpack.c.h.b16 %v2255
        %v2310 = vunpack.c.l.b16 %v2256
        %v2311 = vunpack.c.h.b16 %v2256
        %v2312 = vunpack.c.l.b16 %v2257
        %v2313 = vunpack.c.h.b16 %v2257
        %v2314 = vunpack.c.l.b16 %v2258
        %v2315 = vunpack.c.h.b16 %v2258
        %v2316 = vunpack.c.l.b16 %v2259
        %v2317 = vunpack.c.h.b16 %v2259
        %v2318 = vunpack.c.l.b16 %v2260
        %v2319 = vunpack.c.h.b16 %v2260
        %v2320 = vunpack.c.l.b16 %v2261
        %v2321 = vunpack.c.h.b16 %v2261
        %v2322 = vpack.c.b16 %v2292, %v2290
        %v2323 = vpack.c.b16 %v2293, %v2291
        %v2324 = vpack.c.b16 %v2296, %v2294
        %v2325 = vpack.c.b16 %v2297, %v2295
        %v2326 = vpack.c.b16 %v2300, %v2298
        %v2327 = vpack.c.b16 %v2301, %v2299
        %v2328 = vpack.c.b16 %v2304, %v2302
        %v2329 = vpack.c.b16 %v2305, %v2303
        %v2330 = vpack.c.b16 %v2308, %v2306
        %v2331 = vpack.c.b16 %v2309, %v2307
        %v2332 = vpack.c.b16 %v2312, %v2310
        %v2333 = vpack.c.b16 %v2313, %v2311
        %v2334 = vpack.c.b16 %v2316, %v2314
        %v2335 = vpack.c.b16 %v2317, %v2315
        %v2336 = vpack.c.b16 %v2320, %v2318
        %v2337 = vpack.c.b16 %v2321, %v2319
        %2354 = vmatprep.subr.bf16.mxu0 %v2323
        %2355 = vmatpush1.bf16.msra.mxu0 %v2322
        %2356 = vmatprep.subr.bf16.mxu0 %v2325
        %2357 = vmatpush1.bf16.msra.mxu0 %v2324
        %2358 = vmatprep.subr.bf16.mxu0 %v2327
        %2359 = vmatpush1.bf16.msra.mxu0 %v2326
        %2360 = vmatprep.subr.bf16.mxu0 %v2329
        %2361 = vmatpush1.bf16.msra.mxu0 %v2328
        %2362 = vmatprep.subr.bf16.mxu0 %v2331
        %2363 = vmatpush1.bf16.msra.mxu0 %v2330
        %2364 = vmatprep.subr.bf16.mxu0 %v2333
        %2365 = vmatpush1.bf16.msra.mxu0 %v2332
        %2366 = vmatprep.subr.bf16.mxu0 %v2335
        %2367 = vmatpush1.bf16.msra.mxu0 %v2334
        %2368 = vmatprep.subr.bf16.mxu0 %v2337
        %2369 = vmatpush1.bf16.msra.mxu0 %v2336
        %2370 = vmatprep.subr.bf16.mxu0 0
        %2371 = vmatpush1.bf16.msra.mxu0 0
        %2372 = vmatprep.subr.bf16.mxu0 0
        %2373 = vmatpush1.bf16.msra.mxu0 0
        %2374 = vmatprep.subr.bf16.mxu0 0
        %2375 = vmatpush1.bf16.msra.mxu0 0
        %2376 = vmatprep.subr.bf16.mxu0 0
        %2377 = vmatpush1.bf16.msra.mxu0 0
        %2378 = vmatprep.subr.bf16.mxu0 0
        %2379 = vmatpush1.bf16.msra.mxu0 0
        %2380 = vmatprep.subr.bf16.mxu0 0
        %2381 = vmatpush1.bf16.msra.mxu0 0
        %2382 = vmatprep.subr.bf16.mxu0 0
        %2383 = vmatpush1.bf16.msra.mxu0 0
        %2384 = vmatprep.subr.bf16.mxu0 0
        %2385 = vmatpush1.bf16.msra.mxu0 0
        %2386 = vmatprep.mubr.bf16.mxu0 0
        %2387 = vmatmul.mubr.bf16.gmra.mrb[0].mxu0 %v2230
        %v2388 = vpop.f32.mrb[0].mxu0
        %v2389 = vadd.f32 %v2267, %v2388
        %v2390 = vpop.f32.mrb[0].mxu0
        %v2391 = vadd.f32 %v2271, %v2390
        %v2392 = vpop.f32.mrb[0].mxu0
        %v2393 = vadd.f32 %v2267, %v2392
        %v2394 = vpop.f32.mrb[0].mxu0
        %v2395 = vadd.f32 %v2271, %v2394
        %2396 = vmatprep.mubr.bf16.mxu0 0
        %2397 = vmatmul.mubr.bf16.gmra.mrb[0].mxu0 %v2231
        %v2398 = vpop.f32.mrb[0].mxu0
        %v2399 = vadd.f32 %v2267, %v2398
        %v2400 = vpop.f32.mrb[0].mxu0
        %v2401 = vadd.f32 %v2271, %v2400
        %v2402 = vpop.f32.mrb[0].mxu0
        %v2403 = vadd.f32 %v2267, %v2402
        %v2404 = vpop.f32.mrb[0].mxu0
        %v2405 = vadd.f32 %v2271, %v2404
        %2406 = vmatprep.mubr.bf16.mxu0 0
        %2407 = vmatmul.mubr.bf16.gmra.mrb[0].mxu0 %v2232
        %v2408 = vpop.f32.mrb[0].mxu0
        %v2409 = vadd.f32 %v2267, %v2408
        %v2410 = vpop.f32.mrb[0].mxu0
        %v2411 = vadd.f32 %v2271, %v2410
        %v2412 = vpop.f32.mrb[0].mxu0
        %v2413 = vadd.f32 %v2267, %v2412
        %v2414 = vpop.f32.mrb[0].mxu0
        %v2415 = vadd.f32 %v2271, %v2414
        %2416 = vmatprep.mubr.bf16.mxu0 0
        %2417 = vmatmul.mubr.bf16.gmra.mrb[0].mxu0 %v2233
        %v2418 = vpop.f32.mrb[0].mxu0
        %v2419 = vadd.f32 %v2267, %v2418
        %v2420 = vpop.f32.mrb[0].mxu0
        %v2421 = vadd.f32 %v2271, %v2420
        %v2422 = vpop.f32.mrb[0].mxu0
        %v2423 = vadd.f32 %v2267, %v2422
        %v2424 = vpop.f32.mrb[0].mxu0
        %v2425 = vadd.f32 %v2271, %v2424
        %2426 = vmatprep.mubr.bf16.mxu0 0
        %2427 = vmatmul.mubr.bf16.gmra.mrb[0].mxu0 %v2234
        %v2428 = vpop.f32.mrb[0].mxu0
        %v2429 = vadd.f32 %v2267, %v2428
        %v2430 = vpop.f32.mrb[0].mxu0
        %v2431 = vadd.f32 %v2271, %v2430
        %v2432 = vpop.f32.mrb[0].mxu0
        %v2433 = vadd.f32 %v2267, %v2432
        %v2434 = vpop.f32.mrb[0].mxu0
        %v2435 = vadd.f32 %v2271, %v2434
        %2436 = vmatprep.mubr.bf16.mxu0 0
        %2437 = vmatmul.mubr.bf16.gmra.mrb[0].mxu0 %v2235
        %v2438 = vpop.f32.mrb[0].mxu0
        %v2439 = vadd.f32 %v2267, %v2438
        %v2440 = vpop.f32.mrb[0].mxu0
        %v2441 = vadd.f32 %v2271, %v2440
        %v2442 = vpop.f32.mrb[0].mxu0
        %v2443 = vadd.f32 %v2267, %v2442
        %v2444 = vpop.f32.mrb[0].mxu0
        %v2445 = vadd.f32 %v2271, %v2444
        %2446 = vmatprep.mubr.bf16.mxu0 0
        %2447 = vmatmul.mubr.bf16.gmra.mrb[0].mxu0 %v2236
        %v2448 = vpop.f32.mrb[0].mxu0
        %v2449 = vadd.f32 %v2267, %v2448
        %v2450 = vpop.f32.mrb[0].mxu0
        %v2451 = vadd.f32 %v2271, %v2450
        %v2452 = vpop.f32.mrb[0].mxu0
        %v2453 = vadd.f32 %v2267, %v2452
        %v2454 = vpop.f32.mrb[0].mxu0
        %v2455 = vadd.f32 %v2271, %v2454
        %2456 = vmatprep.mubr.bf16.mxu0 0
        %2457 = vmatmul.mubr.bf16.gmra.mrb[0].mxu0 %v2237
        %v2458 = vpop.f32.mrb[0].mxu0
        %v2459 = vadd.f32 %v2267, %v2458
        %v2460 = vpop.f32.mrb[0].mxu0
        %v2461 = vadd.f32 %v2271, %v2460
        %v2462 = vpop.f32.mrb[0].mxu0
        %v2463 = vadd.f32 %v2267, %v2462
        %v2464 = vpop.f32.mrb[0].mxu0
        %v2465 = vadd.f32 %v2271, %v2464
        %2466 = vmatprep.mubr.bf16.mxu0 0
        %2467 = vmatmul.mubr.bf16.gmra.mrb[0].mxu0 %v2238
        %v2468 = vpop.f32.mrb[0].mxu0
        %v2469 = vadd.f32 %v2267, %v2468
        %v2470 = vpop.f32.mrb[0].mxu0
        %v2471 = vadd.f32 %v2271, %v2470
        %v2472 = vpop.f32.mrb[0].mxu0
        %v2473 = vadd.f32 %v2267, %v2472
        %v2474 = vpop.f32.mrb[0].mxu0
        %v2475 = vadd.f32 %v2271, %v2474
        %2476 = vmatprep.mubr.bf16.mxu0 0
        %2477 = vmatmul.mubr.bf16.gmra.mrb[0].mxu0 %v2239
        %v2478 = vpop.f32.mrb[0].mxu0
        %v2479 = vadd.f32 %v2267, %v2478
        %v2480 = vpop.f32.mrb[0].mxu0
        %v2481 = vadd.f32 %v2271, %v2480
        %v2482 = vpop.f32.mrb[0].mxu0
        %v2483 = vadd.f32 %v2267, %v2482
        %v2484 = vpop.f32.mrb[0].mxu0
        %v2485 = vadd.f32 %v2271, %v2484
        %2486 = vmatprep.mubr.bf16.mxu0 0
        %2487 = vmatmul.mubr.bf16.gmra.mrb[0].mxu0 %v2240
        %v2488 = vpop.f32.mrb[0].mxu0
        %v2489 = vadd.f32 %v2267, %v2488
        %v2490 = vpop.f32.mrb[0].mxu0
        %v2491 = vadd.f32 %v2271, %v2490
        %v2492 = vpop.f32.mrb[0].mxu0
        %v2493 = vadd.f32 %v2267, %v2492
        %v2494 = vpop.f32.mrb[0].mxu0
        %v2495 = vadd.f32 %v2271, %v2494
        %2496 = vmatprep.mubr.bf16.mxu0 0
        %2497 = vmatmul.mubr.bf16.gmra.mrb[0].mxu0 %v2241
        %v2498 = vpop.f32.mrb[0].mxu0
        %v2499 = vadd.f32 %v2267, %v2498
        %v2500 = vpop.f32.mrb[0].mxu0
        %v2501 = vadd.f32 %v2271, %v2500
        %v2502 = vpop.f32.mrb[0].mxu0
        %v2503 = vadd.f32 %v2267, %v2502
        %v2504 = vpop.f32.mrb[0].mxu0
        %v2505 = vadd.f32 %v2271, %v2504
        %2506 = vmatprep.mubr.bf16.mxu0 0
        %2507 = vmatmul.mubr.bf16.gmra.mrb[0].mxu0 %v2242
        %v2508 = vpop.f32.mrb[0].mxu0
        %v2509 = vadd.f32 %v2267, %v2508
        %v2510 = vpop.f32.mrb[0].mxu0
        %v2511 = vadd.f32 %v2271, %v2510
        %v2512 = vpop.f32.mrb[0].mxu0
        %v2513 = vadd.f32 %v2267, %v2512
        %v2514 = vpop.f32.mrb[0].mxu0
        %v2515 = vadd.f32 %v2271, %v2514
        %2516 = vmatprep.mubr.bf16.mxu0 0
        %2517 = vmatmul.mubr.bf16.gmra.mrb[0].mxu0 %v2243
        %v2518 = vpop.f32.mrb[0].mxu0
        %v2519 = vadd.f32 %v2267, %v2518
        %v2520 = vpop.f32.mrb[0].mxu0
        %v2521 = vadd.f32 %v2271, %v2520
        %v2522 = vpop.f32.mrb[0].mxu0
        %v2523 = vadd.f32 %v2267, %v2522
        %v2524 = vpop.f32.mrb[0].mxu0
        %v2525 = vadd.f32 %v2271, %v2524
        %2526 = vmatprep.mubr.bf16.mxu0 0
        %2527 = vmatmul.mubr.bf16.gmra.mrb[0].mxu0 %v2244
        %v2528 = vpop.f32.mrb[0].mxu0
        %v2529 = vadd.f32 %v2267, %v2528
        %v2530 = vpop.f32.mrb[0].mxu0
        %v2531 = vadd.f32 %v2271, %v2530
        %v2532 = vpop.f32.mrb[0].mxu0
        %v2533 = vadd.f32 %v2267, %v2532
        %v2534 = vpop.f32.mrb[0].mxu0
        %v2535 = vadd.f32 %v2271, %v2534
        %2536 = vmatprep.mubr.bf16.mxu0 0
        %2537 = vmatmul.mubr.bf16.gmra.mrb[0].mxu0 %v2245
        %v2538 = vpop.f32.mrb[0].mxu0
        %v2539 = vadd.f32 %v2267, %v2538
        %v2540 = vpop.f32.mrb[0].mxu0
        %v2541 = vadd.f32 %v2271, %v2540
        %v2542 = vpop.f32.mrb[0].mxu0
        %v2543 = vadd.f32 %v2267, %v2542
        %v2544 = vpop.f32.mrb[0].mxu0
        %v2545 = vadd.f32 %v2271, %v2544
        %2546 = vdwg.mxu0
        %v2547 = vmul.f32 %v2389, 0.5
        %v2548 = vmul.f32 %v2391, 0.5
        %v2549 = vmul.f32 %v2393, 0.5
        %v2550 = vmul.f32 %v2395, 0.5
        %v2551 = vmul.f32 %v2399, 0.5
        %v2552 = vmul.f32 %v2401, 0.5
        %v2553 = vmul.f32 %v2403, 0.5
        %v2554 = vmul.f32 %v2405, 0.5
        %v2555 = vmul.f32 %v2409, 0.5
        %v2556 = vmul.f32 %v2411, 0.5
        %v2557 = vmul.f32 %v2413, 0.5
        %v2558 = vmul.f32 %v2415, 0.5
        %v2559 = vmul.f32 %v2419, 0.5
        %v2560 = vmul.f32 %v2421, 0.5
        %v2561 = vmul.f32 %v2423, 0.5
        %v2562 = vmul.f32 %v2425, 0.5
        %v2563 = vmul.f32 %v2429, 0.5
        %v2564 = vmul.f32 %v2431, 0.5
        %v2565 = vmul.f32 %v2433, 0.5
        %v2566 = vmul.f32 %v2435, 0.5
        %v2567 = vmul.f32 %v2439, 0.5
        %v2568 = vmul.f32 %v2441, 0.5
        %v2569 = vmul.f32 %v2443, 0.5
        %v2570 = vmul.f32 %v2445, 0.5
        %v2571 = vmul.f32 %v2449, 0.5
        %v2572 = vmul.f32 %v2451, 0.5
        %v2573 = vmul.f32 %v2453, 0.5
        %v2574 = vmul.f32 %v2455, 0.5
        %v2575 = vmul.f32 %v2459, 0.5
        %v2576 = vmul.f32 %v2461, 0.5
        %v2577 = vmul.f32 %v2463, 0.5
        %v2578 = vmul.f32 %v2465, 0.5
        %v2579 = vmul.f32 %v2469, 0.5
        %v2580 = vmul.f32 %v2471, 0.5
        %v2581 = vmul.f32 %v2473, 0.5
        %v2582 = vmul.f32 %v2475, 0.5
        %v2583 = vmul.f32 %v2479, 0.5
        %v2584 = vmul.f32 %v2481, 0.5
        %v2585 = vmul.f32 %v2483, 0.5
        %v2586 = vmul.f32 %v2485, 0.5
        %v2587 = vmul.f32 %v2489, 0.5
        %v2588 = vmul.f32 %v2491, 0.5
        %v2589 = vmul.f32 %v2493, 0.5
        %v2590 = vmul.f32 %v2495, 0.5
        %v2591 = vmul.f32 %v2499, 0.5
        %v2592 = vmul.f32 %v2501, 0.5
        %v2593 = vmul.f32 %v2503, 0.5
        %v2594 = vmul.f32 %v2505, 0.5
        %v2595 = vmul.f32 %v2509, 0.5
        %v2596 = vmul.f32 %v2511, 0.5
        %v2597 = vmul.f32 %v2513, 0.5
        %v2598 = vmul.f32 %v2515, 0.5
        %v2599 = vmul.f32 %v2519, 0.5
        %v2600 = vmul.f32 %v2521, 0.5
        %v2601 = vmul.f32 %v2523, 0.5
        %v2602 = vmul.f32 %v2525, 0.5
        %v2603 = vmul.f32 %v2529, 0.5
        %v2604 = vmul.f32 %v2531, 0.5
        %v2605 = vmul.f32 %v2533, 0.5
        %v2606 = vmul.f32 %v2535, 0.5
        %v2607 = vmul.f32 %v2539, 0.5
        %v2608 = vmul.f32 %v2541, 0.5
        %v2609 = vmul.f32 %v2543, 0.5
        %v2610 = vmul.f32 %v2545, 0.5
        %v2611 = vmul.f32 %v2389, 0.70710677
        %v2612 = vmul.f32 %v2391, 0.70710677
        %v2613 = vmul.f32 %v2393, 0.70710677
        %v2614 = vmul.f32 %v2395, 0.70710677
        %v2615 = vmul.f32 %v2399, 0.70710677
        %v2616 = vmul.f32 %v2401, 0.70710677
        %v2617 = vmul.f32 %v2403, 0.70710677
        %v2618 = vmul.f32 %v2405, 0.70710677
        %v2619 = vmul.f32 %v2409, 0.70710677
        %v2620 = vmul.f32 %v2411, 0.70710677
        %v2621 = vmul.f32 %v2413, 0.70710677
        %v2622 = vmul.f32 %v2415, 0.70710677
        %v2623 = vmul.f32 %v2419, 0.70710677
        %v2624 = vmul.f32 %v2421, 0.70710677
        %v2625 = vmul.f32 %v2423, 0.70710677
        %v2626 = vmul.f32 %v2425, 0.70710677
        %v2627 = vmul.f32 %v2429, 0.70710677
        %v2628 = vmul.f32 %v2431, 0.70710677
        %v2629 = vmul.f32 %v2433, 0.70710677
        %v2630 = vmul.f32 %v2435, 0.70710677
        %v2631 = vmul.f32 %v2439, 0.70710677
        %v2632 = vmul.f32 %v2441, 0.70710677
        %v2633 = vmul.f32 %v2443, 0.70710677
        %v2634 = vmul.f32 %v2445, 0.70710677
        %v2635 = vmul.f32 %v2449, 0.70710677
        %v2636 = vmul.f32 %v2451, 0.70710677
        %v2637 = vmul.f32 %v2453, 0.70710677
        %v2638 = vmul.f32 %v2455, 0.70710677
        %v2639 = vmul.f32 %v2459, 0.70710677
        %v2640 = vmul.f32 %v2461, 0.70710677
        %v2641 = vmul.f32 %v2463, 0.70710677
        %v2642 = vmul.f32 %v2465, 0.70710677
        %v2643 = vmul.f32 %v2469, 0.70710677
        %v2644 = vmul.f32 %v2471, 0.70710677
        %v2645 = vmul.f32 %v2473, 0.70710677
        %v2646 = vmul.f32 %v2475, 0.70710677
        %v2647 = vmul.f32 %v2479, 0.70710677
        %v2648 = vmul.f32 %v2481, 0.70710677
        %v2649 = vmul.f32 %v2483, 0.70710677
        %v2650 = vmul.f32 %v2485, 0.70710677
        %v2651 = vmul.f32 %v2489, 0.70710677
        %v2652 = vmul.f32 %v2491, 0.70710677
        %v2653 = vmul.f32 %v2493, 0.70710677
        %v2654 = vmul.f32 %v2495, 0.70710677
        %v2655 = vmul.f32 %v2499, 0.70710677
        %v2656 = vmul.f32 %v2501, 0.70710677
        %v2657 = vmul.f32 %v2503, 0.70710677
        %v2658 = vmul.f32 %v2505, 0.70710677
        %v2659 = vmul.f32 %v2509, 0.70710677
        %v2660 = vmul.f32 %v2511, 0.70710677
        %v2661 = vmul.f32 %v2513, 0.70710677
        %v2662 = vmul.f32 %v2515, 0.70710677
        %v2663 = vmul.f32 %v2519, 0.70710677
        %v2664 = vmul.f32 %v2521, 0.70710677
        %v2665 = vmul.f32 %v2523, 0.70710677
        %v2666 = vmul.f32 %v2525, 0.70710677
        %v2667 = vmul.f32 %v2529, 0.70710677
        %v2668 = vmul.f32 %v2531, 0.70710677
        %v2669 = vmul.f32 %v2533, 0.70710677
        %v2670 = vmul.f32 %v2535, 0.70710677
        %v2671 = vmul.f32 %v2539, 0.70710677
        %v2672 = vmul.f32 %v2541, 0.70710677
        %v2673 = vmul.f32 %v2543, 0.70710677
        %v2674 = vmul.f32 %v2545, 0.70710677
        %vm2675 = vcmp.ge.f32.partialorder %v2611, 0.0
        %vm2676 = vcmp.ge.f32.partialorder %v2612, 0.0
        %vm2677 = vcmp.ge.f32.partialorder %v2613, 0.0
        %vm2678 = vcmp.ge.f32.partialorder %v2614, 0.0
        %vm2679 = vcmp.ge.f32.partialorder %v2615, 0.0
        %vm2680 = vcmp.ge.f32.partialorder %v2616, 0.0
        %vm2681 = vcmp.ge.f32.partialorder %v2617, 0.0
        %vm2682 = vcmp.ge.f32.partialorder %v2618, 0.0
        %vm2683 = vcmp.ge.f32.partialorder %v2619, 0.0
        %vm2684 = vcmp.ge.f32.partialorder %v2620, 0.0
        %vm2685 = vcmp.ge.f32.partialorder %v2621, 0.0
        %vm2686 = vcmp.ge.f32.partialorder %v2622, 0.0
        %vm2687 = vcmp.ge.f32.partialorder %v2623, 0.0
        %vm2688 = vcmp.ge.f32.partialorder %v2624, 0.0
        %vm2689 = vcmp.ge.f32.partialorder %v2625, 0.0
        %vm2690 = vcmp.ge.f32.partialorder %v2626, 0.0
        %vm2691 = vcmp.ge.f32.partialorder %v2627, 0.0
        %vm2692 = vcmp.ge.f32.partialorder %v2628, 0.0
        %vm2693 = vcmp.ge.f32.partialorder %v2629, 0.0
        %vm2694 = vcmp.ge.f32.partialorder %v2630, 0.0
        %vm2695 = vcmp.ge.f32.partialorder %v2631, 0.0
        %vm2696 = vcmp.ge.f32.partialorder %v2632, 0.0
        %vm2697 = vcmp.ge.f32.partialorder %v2633, 0.0
        %vm2698 = vcmp.ge.f32.partialorder %v2634, 0.0
        %vm2699 = vcmp.ge.f32.partialorder %v2635, 0.0
        %vm2700 = vcmp.ge.f32.partialorder %v2636, 0.0
        %vm2701 = vcmp.ge.f32.partialorder %v2637, 0.0
        %vm2702 = vcmp.ge.f32.partialorder %v2638, 0.0
        %vm2703 = vcmp.ge.f32.partialorder %v2639, 0.0
        %vm2704 = vcmp.ge.f32.partialorder %v2640, 0.0
        %vm2705 = vcmp.ge.f32.partialorder %v2641, 0.0
        %vm2706 = vcmp.ge.f32.partialorder %v2642, 0.0
        %vm2707 = vcmp.ge.f32.partialorder %v2643, 0.0
        %vm2708 = vcmp.ge.f32.partialorder %v2644, 0.0
        %vm2709 = vcmp.ge.f32.partialorder %v2645, 0.0
        %vm2710 = vcmp.ge.f32.partialorder %v2646, 0.0
        %vm2711 = vcmp.ge.f32.partialorder %v2647, 0.0
        %vm2712 = vcmp.ge.f32.partialorder %v2648, 0.0
        %vm2713 = vcmp.ge.f32.partialorder %v2649, 0.0
        %vm2714 = vcmp.ge.f32.partialorder %v2650, 0.0
        %vm2715 = vcmp.ge.f32.partialorder %v2651, 0.0
        %vm2716 = vcmp.ge.f32.partialorder %v2652, 0.0
        %vm2717 = vcmp.ge.f32.partialorder %v2653, 0.0
        %vm2718 = vcmp.ge.f32.partialorder %v2654, 0.0
        %vm2719 = vcmp.ge.f32.partialorder %v2655, 0.0
        %vm2720 = vcmp.ge.f32.partialorder %v2656, 0.0
        %vm2721 = vcmp.ge.f32.partialorder %v2657, 0.0
        %vm2722 = vcmp.ge.f32.partialorder %v2658, 0.0
        %vm2723 = vcmp.ge.f32.partialorder %v2659, 0.0
        %vm2724 = vcmp.ge.f32.partialorder %v2660, 0.0
        %vm2725 = vcmp.ge.f32.partialorder %v2661, 0.0
        %vm2726 = vcmp.ge.f32.partialorder %v2662, 0.0
        %vm2727 = vcmp.ge.f32.partialorder %v2663, 0.0
        %vm2728 = vcmp.ge.f32.partialorder %v2664, 0.0
        %vm2729 = vcmp.ge.f32.partialorder %v2665, 0.0
        %vm2730 = vcmp.ge.f32.partialorder %v2666, 0.0
        %vm2731 = vcmp.ge.f32.partialorder %v2667, 0.0
        %vm2732 = vcmp.ge.f32.partialorder %v2668, 0.0
        %vm2733 = vcmp.ge.f32.partialorder %v2669, 0.0
        %vm2734 = vcmp.ge.f32.partialorder %v2670, 0.0
        %vm2735 = vcmp.ge.f32.partialorder %v2671, 0.0
        %vm2736 = vcmp.ge.f32.partialorder %v2672, 0.0
        %vm2737 = vcmp.ge.f32.partialorder %v2673, 0.0
        %vm2738 = vcmp.ge.f32.partialorder %v2674, 0.0
        %v2739 = vsel %vm2675, 1.0, -1.0
        %v2740 = vsel %vm2676, 1.0, -1.0
        %v2741 = vsel %vm2677, 1.0, -1.0
        %v2742 = vsel %vm2678, 1.0, -1.0
        %v2743 = vsel %vm2679, 1.0, -1.0
        %v2744 = vsel %vm2680, 1.0, -1.0
        %v2745 = vsel %vm2681, 1.0, -1.0
        %v2746 = vsel %vm2682, 1.0, -1.0
        %v2747 = vsel %vm2683, 1.0, -1.0
        %v2748 = vsel %vm2684, 1.0, -1.0
        %v2749 = vsel %vm2685, 1.0, -1.0
        %v2750 = vsel %vm2686, 1.0, -1.0
        %v2751 = vsel %vm2687, 1.0, -1.0
        %v2752 = vsel %vm2688, 1.0, -1.0
        %v2753 = vsel %vm2689, 1.0, -1.0
        %v2754 = vsel %vm2690, 1.0, -1.0
        %v2755 = vsel %vm2691, 1.0, -1.0
        %v2756 = vsel %vm2692, 1.0, -1.0
        %v2757 = vsel %vm2693, 1.0, -1.0
        %v2758 = vsel %vm2694, 1.0, -1.0
        %v2759 = vsel %vm2695, 1.0, -1.0
        %v2760 = vsel %vm2696, 1.0, -1.0
        %v2761 = vsel %vm2697, 1.0, -1.0
        %v2762 = vsel %vm2698, 1.0, -1.0
        %v2763 = vsel %vm2699, 1.0, -1.0
        %v2764 = vsel %vm2700, 1.0, -1.0
        %v2765 = vsel %vm2701, 1.0, -1.0
        %v2766 = vsel %vm2702, 1.0, -1.0
        %v2767 = vsel %vm2703, 1.0, -1.0
        %v2768 = vsel %vm2704, 1.0, -1.0
        %v2769 = vsel %vm2705, 1.0, -1.0
        %v2770 = vsel %vm2706, 1.0, -1.0
        %v2771 = vsel %vm2707, 1.0, -1.0
        %v2772 = vsel %vm2708, 1.0, -1.0
        %v2773 = vsel %vm2709, 1.0, -1.0
        %v2774 = vsel %vm2710, 1.0, -1.0
        %v2775 = vsel %vm2711, 1.0, -1.0
        %v2776 = vsel %vm2712, 1.0, -1.0
        %v2777 = vsel %vm2713, 1.0, -1.0
        %v2778 = vsel %vm2714, 1.0, -1.0
        %v2779 = vsel %vm2715, 1.0, -1.0
        %v2780 = vsel %vm2716, 1.0, -1.0
        %v2781 = vsel %vm2717, 1.0, -1.0
        %v2782 = vsel %vm2718, 1.0, -1.0
        %v2783 = vsel %vm2719, 1.0, -1.0
        %v2784 = vsel %vm2720, 1.0, -1.0
        %v2785 = vsel %vm2721, 1.0, -1.0
        %v2786 = vsel %vm2722, 1.0, -1.0
        %v2787 = vsel %vm2723, 1.0, -1.0
        %v2788 = vsel %vm2724, 1.0, -1.0
        %v2789 = vsel %vm2725, 1.0, -1.0
        %v2790 = vsel %vm2726, 1.0, -1.0
        %v2791 = vsel %vm2727, 1.0, -1.0
        %v2792 = vsel %vm2728, 1.0, -1.0
        %v2793 = vsel %vm2729, 1.0, -1.0
        %v2794 = vsel %vm2730, 1.0, -1.0
        %v2795 = vsel %vm2731, 1.0, -1.0
        %v2796 = vsel %vm2732, 1.0, -1.0
        %v2797 = vsel %vm2733, 1.0, -1.0
        %v2798 = vsel %vm2734, 1.0, -1.0
        %v2799 = vsel %vm2735, 1.0, -1.0
        %v2800 = vsel %vm2736, 1.0, -1.0
        %v2801 = vsel %vm2737, 1.0, -1.0
        %v2802 = vsel %vm2738, 1.0, -1.0
        %v2803 = vand.u32 2147483647, %v2611
        %v2804 = vand.u32 2147483647, %v2612
        %v2805 = vand.u32 2147483647, %v2613
        %v2806 = vand.u32 2147483647, %v2614
        %v2807 = vand.u32 2147483647, %v2615
        %v2808 = vand.u32 2147483647, %v2616
        %v2809 = vand.u32 2147483647, %v2617
        %v2810 = vand.u32 2147483647, %v2618
        %v2811 = vand.u32 2147483647, %v2619
        %v2812 = vand.u32 2147483647, %v2620
        %v2813 = vand.u32 2147483647, %v2621
        %v2814 = vand.u32 2147483647, %v2622
        %v2815 = vand.u32 2147483647, %v2623
        %v2816 = vand.u32 2147483647, %v2624
        %v2817 = vand.u32 2147483647, %v2625
        %v2818 = vand.u32 2147483647, %v2626
        %v2819 = vand.u32 2147483647, %v2627
        %v2820 = vand.u32 2147483647, %v2628
        %v2821 = vand.u32 2147483647, %v2629
        %v2822 = vand.u32 2147483647, %v2630
        %v2823 = vand.u32 2147483647, %v2631
        %v2824 = vand.u32 2147483647, %v2632
        %v2825 = vand.u32 2147483647, %v2633
        %v2826 = vand.u32 2147483647, %v2634
        %v2827 = vand.u32 2147483647, %v2635
        %v2828 = vand.u32 2147483647, %v2636
        %v2829 = vand.u32 2147483647, %v2637
        %v2830 = vand.u32 2147483647, %v2638
        %v2831 = vand.u32 2147483647, %v2639
        %v2832 = vand.u32 2147483647, %v2640
        %v2833 = vand.u32 2147483647, %v2641
        %v2834 = vand.u32 2147483647, %v2642
        %v2835 = vand.u32 2147483647, %v2643
        %v2836 = vand.u32 2147483647, %v2644
        %v2837 = vand.u32 2147483647, %v2645
        %v2838 = vand.u32 2147483647, %v2646
        %v2839 = vand.u32 2147483647, %v2647
        %v2840 = vand.u32 2147483647, %v2648
        %v2841 = vand.u32 2147483647, %v2649
        %v2842 = vand.u32 2147483647, %v2650
        %v2843 = vand.u32 2147483647, %v2651
        %v2844 = vand.u32 2147483647, %v2652
        %v2845 = vand.u32 2147483647, %v2653
        %v2846 = vand.u32 2147483647, %v2654
        %v2847 = vand.u32 2147483647, %v2655
        %v2848 = vand.u32 2147483647, %v2656
        %v2849 = vand.u32 2147483647, %v2657
        %v2850 = vand.u32 2147483647, %v2658
        %v2851 = vand.u32 2147483647, %v2659
        %v2852 = vand.u32 2147483647, %v2660
        %v2853 = vand.u32 2147483647, %v2661
        %v2854 = vand.u32 2147483647, %v2662
        %v2855 = vand.u32 2147483647, %v2663
        %v2856 = vand.u32 2147483647, %v2664
        %v2857 = vand.u32 2147483647, %v2665
        %v2858 = vand.u32 2147483647, %v2666
        %v2859 = vand.u32 2147483647, %v2667
        %v2860 = vand.u32 2147483647, %v2668
        %v2861 = vand.u32 2147483647, %v2669
        %v2862 = vand.u32 2147483647, %v2670
        %v2863 = vand.u32 2147483647, %v2671
        %v2864 = vand.u32 2147483647, %v2672
        %v2865 = vand.u32 2147483647, %v2673
        %v2866 = vand.u32 2147483647, %v2674
        %v2867 = vmul.f32 %v2803, 0.3275911
        %v2868 = vmul.f32 %v2804, 0.3275911
        %v2869 = vmul.f32 %v2805, 0.3275911
        %v2870 = vmul.f32 %v2806, 0.3275911
        %v2871 = vmul.f32 %v2807, 0.3275911
        %v2872 = vmul.f32 %v2808, 0.3275911
        %v2873 = vmul.f32 %v2809, 0.3275911
        %v2874 = vmul.f32 %v2810, 0.3275911
        %v2875 = vmul.f32 %v2811, 0.3275911
        %v2876 = vmul.f32 %v2812, 0.3275911
        %v2877 = vmul.f32 %v2813, 0.3275911
        %v2878 = vmul.f32 %v2814, 0.3275911
        %v2879 = vmul.f32 %v2815, 0.3275911
        %v2880 = vmul.f32 %v2816, 0.3275911
        %v2881 = vmul.f32 %v2817, 0.3275911
        %v2882 = vmul.f32 %v2818, 0.3275911
        %v2883 = vmul.f32 %v2819, 0.3275911
        %v2884 = vmul.f32 %v2820, 0.3275911
        %v2885 = vmul.f32 %v2821, 0.3275911
        %v2886 = vmul.f32 %v2822, 0.3275911
        %v2887 = vmul.f32 %v2823, 0.3275911
        %v2888 = vmul.f32 %v2824, 0.3275911
        %v2889 = vmul.f32 %v2825, 0.3275911
        %v2890 = vmul.f32 %v2826, 0.3275911
        %v2891 = vmul.f32 %v2827, 0.3275911
        %v2892 = vmul.f32 %v2828, 0.3275911
        %v2893 = vmul.f32 %v2829, 0.3275911
        %v2894 = vmul.f32 %v2830, 0.3275911
        %v2895 = vmul.f32 %v2831, 0.3275911
        %v2896 = vmul.f32 %v2832, 0.3275911
        %v2897 = vmul.f32 %v2833, 0.3275911
        %v2898 = vmul.f32 %v2834, 0.3275911
        %v2899 = vmul.f32 %v2835, 0.3275911
        %v2900 = vmul.f32 %v2836, 0.3275911
        %v2901 = vmul.f32 %v2837, 0.3275911
        %v2902 = vmul.f32 %v2838, 0.3275911
        %v2903 = vmul.f32 %v2839, 0.3275911
        %v2904 = vmul.f32 %v2840, 0.3275911
        %v2905 = vmul.f32 %v2841, 0.3275911
        %v2906 = vmul.f32 %v2842, 0.3275911
        %v2907 = vmul.f32 %v2843, 0.3275911
        %v2908 = vmul.f32 %v2844, 0.3275911
        %v2909 = vmul.f32 %v2845, 0.3275911
        %v2910 = vmul.f32 %v2846, 0.3275911
        %v2911 = vmul.f32 %v2847, 0.3275911
        %v2912 = vmul.f32 %v2848, 0.3275911
        %v2913 = vmul.f32 %v2849, 0.3275911
        %v2914 = vmul.f32 %v2850, 0.3275911
        %v2915 = vmul.f32 %v2851, 0.3275911
        %v2916 = vmul.f32 %v2852, 0.3275911
        %v2917 = vmul.f32 %v2853, 0.3275911
        %v2918 = vmul.f32 %v2854, 0.3275911
        %v2919 = vmul.f32 %v2855, 0.3275911
        %v2920 = vmul.f32 %v2856, 0.3275911
        %v2921 = vmul.f32 %v2857, 0.3275911
        %v2922 = vmul.f32 %v2858, 0.3275911
        %v2923 = vmul.f32 %v2859, 0.3275911
        %v2924 = vmul.f32 %v2860, 0.3275911
        %v2925 = vmul.f32 %v2861, 0.3275911
        %v2926 = vmul.f32 %v2862, 0.3275911
        %v2927 = vmul.f32 %v2863, 0.3275911
        %v2928 = vmul.f32 %v2864, 0.3275911
        %v2929 = vmul.f32 %v2865, 0.3275911
        %v2930 = vmul.f32 %v2866, 0.3275911
        %v2931 = vadd.f32 %v2867, 1.0
        %v2932 = vadd.f32 %v2868, 1.0
        %v2933 = vadd.f32 %v2869, 1.0
        %v2934 = vadd.f32 %v2870, 1.0
        %v2935 = vadd.f32 %v2871, 1.0
        %v2936 = vadd.f32 %v2872, 1.0
        %v2937 = vadd.f32 %v2873, 1.0
        %v2938 = vadd.f32 %v2874, 1.0
        %v2939 = vadd.f32 %v2875, 1.0
        %v2940 = vadd.f32 %v2876, 1.0
        %v2941 = vadd.f32 %v2877, 1.0
        %v2942 = vadd.f32 %v2878, 1.0
        %v2943 = vadd.f32 %v2879, 1.0
        %v2944 = vadd.f32 %v2880, 1.0
        %v2945 = vadd.f32 %v2881, 1.0
        %v2946 = vadd.f32 %v2882, 1.0
        %v2947 = vadd.f32 %v2883, 1.0
        %v2948 = vadd.f32 %v2884, 1.0
        %v2949 = vadd.f32 %v2885, 1.0
        %v2950 = vadd.f32 %v2886, 1.0
        %v2951 = vadd.f32 %v2887, 1.0
        %v2952 = vadd.f32 %v2888, 1.0
        %v2953 = vadd.f32 %v2889, 1.0
        %v2954 = vadd.f32 %v2890, 1.0
        %v2955 = vadd.f32 %v2891, 1.0
        %v2956 = vadd.f32 %v2892, 1.0
        %v2957 = vadd.f32 %v2893, 1.0
        %v2958 = vadd.f32 %v2894, 1.0
        %v2959 = vadd.f32 %v2895, 1.0
        %v2960 = vadd.f32 %v2896, 1.0
        %v2961 = vadd.f32 %v2897, 1.0
        %v2962 = vadd.f32 %v2898, 1.0
        %v2963 = vadd.f32 %v2899, 1.0
        %v2964 = vadd.f32 %v2900, 1.0
        %v2965 = vadd.f32 %v2901, 1.0
        %v2966 = vadd.f32 %v2902, 1.0
        %v2967 = vadd.f32 %v2903, 1.0
        %v2968 = vadd.f32 %v2904, 1.0
        %v2969 = vadd.f32 %v2905, 1.0
        %v2970 = vadd.f32 %v2906, 1.0
        %v2971 = vadd.f32 %v2907, 1.0
        %v2972 = vadd.f32 %v2908, 1.0
        %v2973 = vadd.f32 %v2909, 1.0
        %v2974 = vadd.f32 %v2910, 1.0
        %v2975 = vadd.f32 %v2911, 1.0
        %v2976 = vadd.f32 %v2912, 1.0
        %v2977 = vadd.f32 %v2913, 1.0
        %v2978 = vadd.f32 %v2914, 1.0
        %v2979 = vadd.f32 %v2915, 1.0
        %v2980 = vadd.f32 %v2916, 1.0
        %v2981 = vadd.f32 %v2917, 1.0
        %v2982 = vadd.f32 %v2918, 1.0
        %v2983 = vadd.f32 %v2919, 1.0
        %v2984 = vadd.f32 %v2920, 1.0
        %v2985 = vadd.f32 %v2921, 1.0
        %v2986 = vadd.f32 %v2922, 1.0
        %v2987 = vadd.f32 %v2923, 1.0
        %v2988 = vadd.f32 %v2924, 1.0
        %v2989 = vadd.f32 %v2925, 1.0
        %v2990 = vadd.f32 %v2926, 1.0
        %v2991 = vadd.f32 %v2927, 1.0
        %v2992 = vadd.f32 %v2928, 1.0
        %v2993 = vadd.f32 %v2929, 1.0
        %v2994 = vadd.f32 %v2930, 1.0
        %v2995 = vrcp.pop %v2931
        %v2996 = vrcp.pop %v2932
        %v2997 = vrcp.pop %v2933
        %v2998 = vrcp.pop %v2934
        %v2999 = vrcp.pop %v2935
        %v3000 = vrcp.pop %v2936
        %v3001 = vrcp.pop %v2937
        %v3002 = vrcp.pop %v2938
        %v3003 = vrcp.pop %v2939
        %v3004 = vrcp.pop %v2940
        %v3005 = vrcp.pop %v2941
        %v3006 = vrcp.pop %v2942
        %v3007 = vrcp.pop %v2943
        %v3008 = vrcp.pop %v2944
        %v3009 = vrcp.pop %v2945
        %v3010 = vrcp.pop %v2946
        %v3011 = vrcp.pop %v2947
        %v3012 = vrcp.pop %v2948
        %v3013 = vrcp.pop %v2949
        %v3014 = vrcp.pop %v2950
        %v3015 = vrcp.pop %v2951
        %v3016 = vrcp.pop %v2952
        %v3017 = vrcp.pop %v2953
        %v3018 = vrcp.pop %v2954
        %v3019 = vrcp.pop %v2955
        %v3020 = vrcp.pop %v2956
        %v3021 = vrcp.pop %v2957
        %v3022 = vrcp.pop %v2958
        %v3023 = vrcp.pop %v2959
        %v3024 = vrcp.pop %v2960
        %v3025 = vrcp.pop %v2961
        %v3026 = vrcp.pop %v2962
        %v3027 = vrcp.pop %v2963
        %v3028 = vrcp.pop %v2964
        %v3029 = vrcp.pop %v2965
        %v3030 = vrcp.pop %v2966
        %v3031 = vrcp.pop %v2967
        %v3032 = vrcp.pop %v2968
        %v3033 = vrcp.pop %v2969
        %v3034 = vrcp.pop %v2970
        %v3035 = vrcp.pop %v2971
        %v3036 = vrcp.pop %v2972
        %v3037 = vrcp.pop %v2973
        %v3038 = vrcp.pop %v2974
        %v3039 = vrcp.pop %v2975
        %v3040 = vrcp.pop %v2976
        %v3041 = vrcp.pop %v2977
        %v3042 = vrcp.pop %v2978
        %v3043 = vrcp.pop %v2979
        %v3044 = vrcp.pop %v2980
        %v3045 = vrcp.pop %v2981
        %v3046 = vrcp.pop %v2982
        %v3047 = vrcp.pop %v2983
        %v3048 = vrcp.pop %v2984
        %v3049 = vrcp.pop %v2985
        %v3050 = vrcp.pop %v2986
        %v3051 = vrcp.pop %v2987
        %v3052 = vrcp.pop %v2988
        %v3053 = vrcp.pop %v2989
        %v3054 = vrcp.pop %v2990
        %v3055 = vrcp.pop %v2991
        %v3056 = vrcp.pop %v2992
        %v3057 = vrcp.pop %v2993
        %v3058 = vrcp.pop %v2994
        %v3059 = vmul.f32 %v2995, 1.0614054
        %v3060 = vmul.f32 %v2996, 1.0614054
        %v3061 = vmul.f32 %v2997, 1.0614054
        %v3062 = vmul.f32 %v2998, 1.0614054
        %v3063 = vmul.f32 %v2999, 1.0614054
        %v3064 = vmul.f32 %v3000, 1.0614054
        %v3065 = vmul.f32 %v3001, 1.0614054
        %v3066 = vmul.f32 %v3002, 1.0614054
        %v3067 = vmul.f32 %v3003, 1.0614054
        %v3068 = vmul.f32 %v3004, 1.0614054
        %v3069 = vmul.f32 %v3005, 1.0614054
        %v3070 = vmul.f32 %v3006, 1.0614054
        %v3071 = vmul.f32 %v3007, 1.0614054
        %v3072 = vmul.f32 %v3008, 1.0614054
        %v3073 = vmul.f32 %v3009, 1.0614054
        %v3074 = vmul.f32 %v3010, 1.0614054
        %v3075 = vmul.f32 %v3011, 1.0614054
        %v3076 = vmul.f32 %v3012, 1.0614054
        %v3077 = vmul.f32 %v3013, 1.0614054
        %v3078 = vmul.f32 %v3014, 1.0614054
        %v3079 = vmul.f32 %v3015, 1.0614054
        %v3080 = vmul.f32 %v3016, 1.0614054
        %v3081 = vmul.f32 %v3017, 1.0614054
        %v3082 = vmul.f32 %v3018, 1.0614054
        %v3083 = vmul.f32 %v3019, 1.0614054
        %v3084 = vmul.f32 %v3020, 1.0614054
        %v3085 = vmul.f32 %v3021, 1.0614054
        %v3086 = vmul.f32 %v3022, 1.0614054
        %v3087 = vmul.f32 %v3023, 1.0614054
        %v3088 = vmul.f32 %v3024, 1.0614054
        %v3089 = vmul.f32 %v3025, 1.0614054
        %v3090 = vmul.f32 %v3026, 1.0614054
        %v3091 = vmul.f32 %v3027, 1.0614054
        %v3092 = vmul.f32 %v3028, 1.0614054
        %v3093 = vmul.f32 %v3029, 1.0614054
        %v3094 = vmul.f32 %v3030, 1.0614054
        %v3095 = vmul.f32 %v3031, 1.0614054
        %v3096 = vmul.f32 %v3032, 1.0614054
        %v3097 = vmul.f32 %v3033, 1.0614054
        %v3098 = vmul.f32 %v3034, 1.0614054
        %v3099 = vmul.f32 %v3035, 1.0614054
        %v3100 = vmul.f32 %v3036, 1.0614054
        %v3101 = vmul.f32 %v3037, 1.0614054
        %v3102 = vmul.f32 %v3038, 1.0614054
        %v3103 = vmul.f32 %v3039, 1.0614054
        %v3104 = vmul.f32 %v3040, 1.0614054
        %v3105 = vmul.f32 %v3041, 1.0614054
        %v3106 = vmul.f32 %v3042, 1.0614054
        %v3107 = vmul.f32 %v3043, 1.0614054
        %v3108 = vmul.f32 %v3044, 1.0614054
        %v3109 = vmul.f32 %v3045, 1.0614054
        %v3110 = vmul.f32 %v3046, 1.0614054
        %v3111 = vmul.f32 %v3047, 1.0614054
        %v3112 = vmul.f32 %v3048, 1.0614054
        %v3113 = vmul.f32 %v3049, 1.0614054
        %v3114 = vmul.f32 %v3050, 1.0614054
        %v3115 = vmul.f32 %v3051, 1.0614054
        %v3116 = vmul.f32 %v3052, 1.0614054
        %v3117 = vmul.f32 %v3053, 1.0614054
        %v3118 = vmul.f32 %v3054, 1.0614054
        %v3119 = vmul.f32 %v3055, 1.0614054
        %v3120 = vmul.f32 %v3056, 1.0614054
        %v3121 = vmul.f32 %v3057, 1.0614054
        %v3122 = vmul.f32 %v3058, 1.0614054
        %v3123 = vadd.f32 %v3059, -1.4531521
        %v3124 = vadd.f32 %v3060, -1.4531521
        %v3125 = vadd.f32 %v3061, -1.4531521
        %v3126 = vadd.f32 %v3062, -1.4531521
        %v3127 = vadd.f32 %v3063, -1.4531521
        %v3128 = vadd.f32 %v3064, -1.4531521
        %v3129 = vadd.f32 %v3065, -1.4531521
        %v3130 = vadd.f32 %v3066, -1.4531521
        %v3131 = vadd.f32 %v3067, -1.4531521
        %v3132 = vadd.f32 %v3068, -1.4531521
        %v3133 = vadd.f32 %v3069, -1.4531521
        %v3134 = vadd.f32 %v3070, -1.4531521
        %v3135 = vadd.f32 %v3071, -1.4531521
        %v3136 = vadd.f32 %v3072, -1.4531521
        %v3137 = vadd.f32 %v3073, -1.4531521
        %v3138 = vadd.f32 %v3074, -1.4531521
        %v3139 = vadd.f32 %v3075, -1.4531521
        %v3140 = vadd.f32 %v3076, -1.4531521
        %v3141 = vadd.f32 %v3077, -1.4531521
        %v3142 = vadd.f32 %v3078, -1.4531521
        %v3143 = vadd.f32 %v3079, -1.4531521
        %v3144 = vadd.f32 %v3080, -1.4531521
        %v3145 = vadd.f32 %v3081, -1.4531521
        %v3146 = vadd.f32 %v3082, -1.4531521
        %v3147 = vadd.f32 %v3083, -1.4531521
        %v3148 = vadd.f32 %v3084, -1.4531521
        %v3149 = vadd.f32 %v3085, -1.4531521
        %v3150 = vadd.f32 %v3086, -1.4531521
        %v3151 = vadd.f32 %v3087, -1.4531521
        %v3152 = vadd.f32 %v3088, -1.4531521
        %v3153 = vadd.f32 %v3089, -1.4531521
        %v3154 = vadd.f32 %v3090, -1.4531521
        %v3155 = vadd.f32 %v3091, -1.4531521
        %v3156 = vadd.f32 %v3092, -1.4531521
        %v3157 = vadd.f32 %v3093, -1.4531521
        %v3158 = vadd.f32 %v3094, -1.4531521
        %v3159 = vadd.f32 %v3095, -1.4531521
        %v3160 = vadd.f32 %v3096, -1.4531521
        %v3161 = vadd.f32 %v3097, -1.4531521
        %v3162 = vadd.f32 %v3098, -1.4531521
        %v3163 = vadd.f32 %v3099, -1.4531521
        %v3164 = vadd.f32 %v3100, -1.4531521
        %v3165 = vadd.f32 %v3101, -1.4531521
        %v3166 = vadd.f32 %v3102, -1.4531521
        %v3167 = vadd.f32 %v3103, -1.4531521
        %v3168 = vadd.f32 %v3104, -1.4531521
        %v3169 = vadd.f32 %v3105, -1.4531521
        %v3170 = vadd.f32 %v3106, -1.4531521
        %v3171 = vadd.f32 %v3107, -1.4531521
        %v3172 = vadd.f32 %v3108, -1.4531521
        %v3173 = vadd.f32 %v3109, -1.4531521
        %v3174 = vadd.f32 %v3110, -1.4531521
        %v3175 = vadd.f32 %v3111, -1.4531521
        %v3176 = vadd.f32 %v3112, -1.4531521
        %v3177 = vadd.f32 %v3113, -1.4531521
        %v3178 = vadd.f32 %v3114, -1.4531521
        %v3179 = vadd.f32 %v3115, -1.4531521
        %v3180 = vadd.f32 %v3116, -1.4531521
        %v3181 = vadd.f32 %v3117, -1.4531521
        %v3182 = vadd.f32 %v3118, -1.4531521
        %v3183 = vadd.f32 %v3119, -1.4531521
        %v3184 = vadd.f32 %v3120, -1.4531521
        %v3185 = vadd.f32 %v3121, -1.4531521
        %v3186 = vadd.f32 %v3122, -1.4531521
        %v3187 = vmul.f32 %v3123, %v2995
        %v3188 = vmul.f32 %v3124, %v2996
        %v3189 = vmul.f32 %v3125, %v2997
        %v3190 = vmul.f32 %v3126, %v2998
        %v3191 = vmul.f32 %v3127, %v2999
        %v3192 = vmul.f32 %v3128, %v3000
        %v3193 = vmul.f32 %v3129, %v3001
        %v3194 = vmul.f32 %v3130, %v3002
        %v3195 = vmul.f32 %v3131, %v3003
        %v3196 = vmul.f32 %v3132, %v3004
        %v3197 = vmul.f32 %v3133, %v3005
        %v3198 = vmul.f32 %v3134, %v3006
        %v3199 = vmul.f32 %v3135, %v3007
        %v3200 = vmul.f32 %v3136, %v3008
        %v3201 = vmul.f32 %v3137, %v3009
        %v3202 = vmul.f32 %v3138, %v3010
        %v3203 = vmul.f32 %v3139, %v3011
        %v3204 = vmul.f32 %v3140, %v3012
        %v3205 = vmul.f32 %v3141, %v3013
        %v3206 = vmul.f32 %v3142, %v3014
        %v3207 = vmul.f32 %v3143, %v3015
        %v3208 = vmul.f32 %v3144, %v3016
        %v3209 = vmul.f32 %v3145, %v3017
        %v3210 = vmul.f32 %v3146, %v3018
        %v3211 = vmul.f32 %v3147, %v3019
        %v3212 = vmul.f32 %v3148, %v3020
        %v3213 = vmul.f32 %v3149, %v3021
        %v3214 = vmul.f32 %v3150, %v3022
        %v3215 = vmul.f32 %v3151, %v3023
        %v3216 = vmul.f32 %v3152, %v3024
        %v3217 = vmul.f32 %v3153, %v3025
        %v3218 = vmul.f32 %v3154, %v3026
        %v3219 = vmul.f32 %v3155, %v3027
        %v3220 = vmul.f32 %v3156, %v3028
        %v3221 = vmul.f32 %v3157, %v3029
        %v3222 = vmul.f32 %v3158, %v3030
        %v3223 = vmul.f32 %v3159, %v3031
        %v3224 = vmul.f32 %v3160, %v3032
        %v3225 = vmul.f32 %v3161, %v3033
        %v3226 = vmul.f32 %v3162, %v3034
        %v3227 = vmul.f32 %v3163, %v3035
        %v3228 = vmul.f32 %v3164, %v3036
        %v3229 = vmul.f32 %v3165, %v3037
        %v3230 = vmul.f32 %v3166, %v3038
        %v3231 = vmul.f32 %v3167, %v3039
        %v3232 = vmul.f32 %v3168, %v3040
        %v3233 = vmul.f32 %v3169, %v3041
        %v3234 = vmul.f32 %v3170, %v3042
        %v3235 = vmul.f32 %v3171, %v3043
        %v3236 = vmul.f32 %v3172, %v3044
        %v3237 = vmul.f32 %v3173, %v3045
        %v3238 = vmul.f32 %v3174, %v3046
        %v3239 = vmul.f32 %v3175, %v3047
        %v3240 = vmul.f32 %v3176, %v3048
        %v3241 = vmul.f32 %v3177, %v3049
        %v3242 = vmul.f32 %v3178, %v3050
        %v3243 = vmul.f32 %v3179, %v3051
        %v3244 = vmul.f32 %v3180, %v3052
        %v3245 = vmul.f32 %v3181, %v3053
        %v3246 = vmul.f32 %v3182, %v3054
        %v3247 = vmul.f32 %v3183, %v3055
        %v3248 = vmul.f32 %v3184, %v3056
        %v3249 = vmul.f32 %v3185, %v3057
        %v3250 = vmul.f32 %v3186, %v3058
        %v3251 = vadd.f32 %v3187, 1.4214138
        %v3252 = vadd.f32 %v3188, 1.4214138
        %v3253 = vadd.f32 %v3189, 1.4214138
        %v3254 = vadd.f32 %v3190, 1.4214138
        %v3255 = vadd.f32 %v3191, 1.4214138
        %v3256 = vadd.f32 %v3192, 1.4214138
        %v3257 = vadd.f32 %v3193, 1.4214138
        %v3258 = vadd.f32 %v3194, 1.4214138
        %v3259 = vadd.f32 %v3195, 1.4214138
        %v3260 = vadd.f32 %v3196, 1.4214138
        %v3261 = vadd.f32 %v3197, 1.4214138
        %v3262 = vadd.f32 %v3198, 1.4214138
        %v3263 = vadd.f32 %v3199, 1.4214138
        %v3264 = vadd.f32 %v3200, 1.4214138
        %v3265 = vadd.f32 %v3201, 1.4214138
        %v3266 = vadd.f32 %v3202, 1.4214138
        %v3267 = vadd.f32 %v3203, 1.4214138
        %v3268 = vadd.f32 %v3204, 1.4214138
        %v3269 = vadd.f32 %v3205, 1.4214138
        %v3270 = vadd.f32 %v3206, 1.4214138
        %v3271 = vadd.f32 %v3207, 1.4214138
        %v3272 = vadd.f32 %v3208, 1.4214138
        %v3273 = vadd.f32 %v3209, 1.4214138
        %v3274 = vadd.f32 %v3210, 1.4214138
        %v3275 = vadd.f32 %v3211, 1.4214138
        %v3276 = vadd.f32 %v3212, 1.4214138
        %v3277 = vadd.f32 %v3213, 1.4214138
        %v3278 = vadd.f32 %v3214, 1.4214138
        %v3279 = vadd.f32 %v3215, 1.4214138
        %v3280 = vadd.f32 %v3216, 1.4214138
        %v3281 = vadd.f32 %v3217, 1.4214138
        %v3282 = vadd.f32 %v3218, 1.4214138
        %v3283 = vadd.f32 %v3219, 1.4214138
        %v3284 = vadd.f32 %v3220, 1.4214138
        %v3285 = vadd.f32 %v3221, 1.4214138
        %v3286 = vadd.f32 %v3222, 1.4214138
        %v3287 = vadd.f32 %v3223, 1.4214138
        %v3288 = vadd.f32 %v3224, 1.4214138
        %v3289 = vadd.f32 %v3225, 1.4214138
        %v3290 = vadd.f32 %v3226, 1.4214138
        %v3291 = vadd.f32 %v3227, 1.4214138
        %v3292 = vadd.f32 %v3228, 1.4214138
        %v3293 = vadd.f32 %v3229, 1.4214138
        %v3294 = vadd.f32 %v3230, 1.4214138
        %v3295 = vadd.f32 %v3231, 1.4214138
        %v3296 = vadd.f32 %v3232, 1.4214138
        %v3297 = vadd.f32 %v3233, 1.4214138
        %v3298 = vadd.f32 %v3234, 1.4214138
        %v3299 = vadd.f32 %v3235, 1.4214138
        %v3300 = vadd.f32 %v3236, 1.4214138
        %v3301 = vadd.f32 %v3237, 1.4214138
        %v3302 = vadd.f32 %v3238, 1.4214138
        %v3303 = vadd.f32 %v3239, 1.4214138
        %v3304 = vadd.f32 %v3240, 1.4214138
        %v3305 = vadd.f32 %v3241, 1.4214138
        %v3306 = vadd.f32 %v3242, 1.4214138
        %v3307 = vadd.f32 %v3243, 1.4214138
        %v3308 = vadd.f32 %v3244, 1.4214138
        %v3309 = vadd.f32 %v3245, 1.4214138
        %v3310 = vadd.f32 %v3246, 1.4214138
        %v3311 = vadd.f32 %v3247, 1.4214138
        %v3312 = vadd.f32 %v3248, 1.4214138
        %v3313 = vadd.f32 %v3249, 1.4214138
        %v3314 = vadd.f32 %v3250, 1.4214138
        %v3315 = vmul.f32 %v3251, %v2995
        %v3316 = vmul.f32 %v3252, %v2996
        %v3317 = vmul.f32 %v3253, %v2997
        %v3318 = vmul.f32 %v3254, %v2998
        %v3319 = vmul.f32 %v3255, %v2999
        %v3320 = vmul.f32 %v3256, %v3000
        %v3321 = vmul.f32 %v3257, %v3001
        %v3322 = vmul.f32 %v3258, %v3002
        %v3323 = vmul.f32 %v3259, %v3003
        %v3324 = vmul.f32 %v3260, %v3004
        %v3325 = vmul.f32 %v3261, %v3005
        %v3326 = vmul.f32 %v3262, %v3006
        %v3327 = vmul.f32 %v3263, %v3007
        %v3328 = vmul.f32 %v3264, %v3008
        %v3329 = vmul.f32 %v3265, %v3009
        %v3330 = vmul.f32 %v3266, %v3010
        %v3331 = vmul.f32 %v3267, %v3011
        %v3332 = vmul.f32 %v3268, %v3012
        %v3333 = vmul.f32 %v3269, %v3013
        %v3334 = vmul.f32 %v3270, %v3014
        %v3335 = vmul.f32 %v3271, %v3015
        %v3336 = vmul.f32 %v3272, %v3016
        %v3337 = vmul.f32 %v3273, %v3017
        %v3338 = vmul.f32 %v3274, %v3018
        %v3339 = vmul.f32 %v3275, %v3019
        %v3340 = vmul.f32 %v3276, %v3020
        %v3341 = vmul.f32 %v3277, %v3021
        %v3342 = vmul.f32 %v3278, %v3022
        %v3343 = vmul.f32 %v3279, %v3023
        %v3344 = vmul.f32 %v3280, %v3024
        %v3345 = vmul.f32 %v3281, %v3025
        %v3346 = vmul.f32 %v3282, %v3026
        %v3347 = vmul.f32 %v3283, %v3027
        %v3348 = vmul.f32 %v3284, %v3028
        %v3349 = vmul.f32 %v3285, %v3029
        %v3350 = vmul.f32 %v3286, %v3030
        %v3351 = vmul.f32 %v3287, %v3031
        %v3352 = vmul.f32 %v3288, %v3032
        %v3353 = vmul.f32 %v3289, %v3033
        %v3354 = vmul.f32 %v3290, %v3034
        %v3355 = vmul.f32 %v3291, %v3035
        %v3356 = vmul.f32 %v3292, %v3036
        %v3357 = vmul.f32 %v3293, %v3037
        %v3358 = vmul.f32 %v3294, %v3038
        %v3359 = vmul.f32 %v3295, %v3039
        %v3360 = vmul.f32 %v3296, %v3040
        %v3361 = vmul.f32 %v3297, %v3041
        %v3362 = vmul.f32 %v3298, %v3042
        %v3363 = vmul.f32 %v3299, %v3043
        %v3364 = vmul.f32 %v3300, %v3044
        %v3365 = vmul.f32 %v3301, %v3045
        %v3366 = vmul.f32 %v3302, %v3046
        %v3367 = vmul.f32 %v3303, %v3047
        %v3368 = vmul.f32 %v3304, %v3048
        %v3369 = vmul.f32 %v3305, %v3049
        %v3370 = vmul.f32 %v3306, %v3050
        %v3371 = vmul.f32 %v3307, %v3051
        %v3372 = vmul.f32 %v3308, %v3052
        %v3373 = vmul.f32 %v3309, %v3053
        %v3374 = vmul.f32 %v3310, %v3054
        %v3375 = vmul.f32 %v3311, %v3055
        %v3376 = vmul.f32 %v3312, %v3056
        %v3377 = vmul.f32 %v3313, %v3057
        %v3378 = vmul.f32 %v3314, %v3058
        %v3379 = vadd.f32 %v3315, -0.28449672
        %v3380 = vadd.f32 %v3316, -0.28449672
        %v3381 = vadd.f32 %v3317, -0.28449672
        %v3382 = vadd.f32 %v3318, -0.28449672
        %v3383 = vadd.f32 %v3319, -0.28449672
        %v3384 = vadd.f32 %v3320, -0.28449672
        %v3385 = vadd.f32 %v3321, -0.28449672
        %v3386 = vadd.f32 %v3322, -0.28449672
        %v3387 = vadd.f32 %v3323, -0.28449672
        %v3388 = vadd.f32 %v3324, -0.28449672
        %v3389 = vadd.f32 %v3325, -0.28449672
        %v3390 = vadd.f32 %v3326, -0.28449672
        %v3391 = vadd.f32 %v3327, -0.28449672
        %v3392 = vadd.f32 %v3328, -0.28449672
        %v3393 = vadd.f32 %v3329, -0.28449672
        %v3394 = vadd.f32 %v3330, -0.28449672
        %v3395 = vadd.f32 %v3331, -0.28449672
        %v3396 = vadd.f32 %v3332, -0.28449672
        %v3397 = vadd.f32 %v3333, -0.28449672
        %v3398 = vadd.f32 %v3334, -0.28449672
        %v3399 = vadd.f32 %v3335, -0.28449672
        %v3400 = vadd.f32 %v3336, -0.28449672
        %v3401 = vadd.f32 %v3337, -0.28449672
        %v3402 = vadd.f32 %v3338, -0.28449672
        %v3403 = vadd.f32 %v3339, -0.28449672
        %v3404 = vadd.f32 %v3340, -0.28449672
        %v3405 = vadd.f32 %v3341, -0.28449672
        %v3406 = vadd.f32 %v3342, -0.28449672
        %v3407 = vadd.f32 %v3343, -0.28449672
        %v3408 = vadd.f32 %v3344, -0.28449672
        %v3409 = vadd.f32 %v3345, -0.28449672
        %v3410 = vadd.f32 %v3346, -0.28449672
        %v3411 = vadd.f32 %v3347, -0.28449672
        %v3412 = vadd.f32 %v3348, -0.28449672
        %v3413 = vadd.f32 %v3349, -0.28449672
        %v3414 = vadd.f32 %v3350, -0.28449672
        %v3415 = vadd.f32 %v3351, -0.28449672
        %v3416 = vadd.f32 %v3352, -0.28449672
        %v3417 = vadd.f32 %v3353, -0.28449672
        %v3418 = vadd.f32 %v3354, -0.28449672
        %v3419 = vadd.f32 %v3355, -0.28449672
        %v3420 = vadd.f32 %v3356, -0.28449672
        %v3421 = vadd.f32 %v3357, -0.28449672
        %v3422 = vadd.f32 %v3358, -0.28449672
        %v3423 = vadd.f32 %v3359, -0.28449672
        %v3424 = vadd.f32 %v3360, -0.28449672
        %v3425 = vadd.f32 %v3361, -0.28449672
        %v3426 = vadd.f32 %v3362, -0.28449672
        %v3427 = vadd.f32 %v3363, -0.28449672
        %v3428 = vadd.f32 %v3364, -0.28449672
        %v3429 = vadd.f32 %v3365, -0.28449672
        %v3430 = vadd.f32 %v3366, -0.28449672
        %v3431 = vadd.f32 %v3367, -0.28449672
        %v3432 = vadd.f32 %v3368, -0.28449672
        %v3433 = vadd.f32 %v3369, -0.28449672
        %v3434 = vadd.f32 %v3370, -0.28449672
        %v3435 = vadd.f32 %v3371, -0.28449672
        %v3436 = vadd.f32 %v3372, -0.28449672
        %v3437 = vadd.f32 %v3373, -0.28449672
        %v3438 = vadd.f32 %v3374, -0.28449672
        %v3439 = vadd.f32 %v3375, -0.28449672
        %v3440 = vadd.f32 %v3376, -0.28449672
        %v3441 = vadd.f32 %v3377, -0.28449672
        %v3442 = vadd.f32 %v3378, -0.28449672
        %v3443 = vmul.f32 %v3379, %v2995
        %v3444 = vmul.f32 %v3380, %v2996
        %v3445 = vmul.f32 %v3381, %v2997
        %v3446 = vmul.f32 %v3382, %v2998
        %v3447 = vmul.f32 %v3383, %v2999
        %v3448 = vmul.f32 %v3384, %v3000
        %v3449 = vmul.f32 %v3385, %v3001
        %v3450 = vmul.f32 %v3386, %v3002
        %v3451 = vmul.f32 %v3387, %v3003
        %v3452 = vmul.f32 %v3388, %v3004
        %v3453 = vmul.f32 %v3389, %v3005
        %v3454 = vmul.f32 %v3390, %v3006
        %v3455 = vmul.f32 %v3391, %v3007
        %v3456 = vmul.f32 %v3392, %v3008
        %v3457 = vmul.f32 %v3393, %v3009
        %v3458 = vmul.f32 %v3394, %v3010
        %v3459 = vmul.f32 %v3395, %v3011
        %v3460 = vmul.f32 %v3396, %v3012
        %v3461 = vmul.f32 %v3397, %v3013
        %v3462 = vmul.f32 %v3398, %v3014
        %v3463 = vmul.f32 %v3399, %v3015
        %v3464 = vmul.f32 %v3400, %v3016
        %v3465 = vmul.f32 %v3401, %v3017
        %v3466 = vmul.f32 %v3402, %v3018
        %v3467 = vmul.f32 %v3403, %v3019
        %v3468 = vmul.f32 %v3404, %v3020
        %v3469 = vmul.f32 %v3405, %v3021
        %v3470 = vmul.f32 %v3406, %v3022
        %v3471 = vmul.f32 %v3407, %v3023
        %v3472 = vmul.f32 %v3408, %v3024
        %v3473 = vmul.f32 %v3409, %v3025
        %v3474 = vmul.f32 %v3410, %v3026
        %v3475 = vmul.f32 %v3411, %v3027
        %v3476 = vmul.f32 %v3412, %v3028
        %v3477 = vmul.f32 %v3413, %v3029
        %v3478 = vmul.f32 %v3414, %v3030
        %v3479 = vmul.f32 %v3415, %v3031
        %v3480 = vmul.f32 %v3416, %v3032
        %v3481 = vmul.f32 %v3417, %v3033
        %v3482 = vmul.f32 %v3418, %v3034
        %v3483 = vmul.f32 %v3419, %v3035
        %v3484 = vmul.f32 %v3420, %v3036
        %v3485 = vmul.f32 %v3421, %v3037
        %v3486 = vmul.f32 %v3422, %v3038
        %v3487 = vmul.f32 %v3423, %v3039
        %v3488 = vmul.f32 %v3424, %v3040
        %v3489 = vmul.f32 %v3425, %v3041
        %v3490 = vmul.f32 %v3426, %v3042
        %v3491 = vmul.f32 %v3427, %v3043
        %v3492 = vmul.f32 %v3428, %v3044
        %v3493 = vmul.f32 %v3429, %v3045
        %v3494 = vmul.f32 %v3430, %v3046
        %v3495 = vmul.f32 %v3431, %v3047
        %v3496 = vmul.f32 %v3432, %v3048
        %v3497 = vmul.f32 %v3433, %v3049
        %v3498 = vmul.f32 %v3434, %v3050
        %v3499 = vmul.f32 %v3435, %v3051
        %v3500 = vmul.f32 %v3436, %v3052
        %v3501 = vmul.f32 %v3437, %v3053
        %v3502 = vmul.f32 %v3438, %v3054
        %v3503 = vmul.f32 %v3439, %v3055
        %v3504 = vmul.f32 %v3440, %v3056
        %v3505 = vmul.f32 %v3441, %v3057
        %v3506 = vmul.f32 %v3442, %v3058
        %v3507 = vadd.f32 %v3443, 0.2548296
        %v3508 = vadd.f32 %v3444, 0.2548296
        %v3509 = vadd.f32 %v3445, 0.2548296
        %v3510 = vadd.f32 %v3446, 0.2548296
        %v3511 = vadd.f32 %v3447, 0.2548296
        %v3512 = vadd.f32 %v3448, 0.2548296
        %v3513 = vadd.f32 %v3449, 0.2548296
        %v3514 = vadd.f32 %v3450, 0.2548296
        %v3515 = vadd.f32 %v3451, 0.2548296
        %v3516 = vadd.f32 %v3452, 0.2548296
        %v3517 = vadd.f32 %v3453, 0.2548296
        %v3518 = vadd.f32 %v3454, 0.2548296
        %v3519 = vadd.f32 %v3455, 0.2548296
        %v3520 = vadd.f32 %v3456, 0.2548296
        %v3521 = vadd.f32 %v3457, 0.2548296
        %v3522 = vadd.f32 %v3458, 0.2548296
        %v3523 = vadd.f32 %v3459, 0.2548296
        %v3524 = vadd.f32 %v3460, 0.2548296
        %v3525 = vadd.f32 %v3461, 0.2548296
        %v3526 = vadd.f32 %v3462, 0.2548296
        %v3527 = vadd.f32 %v3463, 0.2548296
        %v3528 = vadd.f32 %v3464, 0.2548296
        %v3529 = vadd.f32 %v3465, 0.2548296
        %v3530 = vadd.f32 %v3466, 0.2548296
        %v3531 = vadd.f32 %v3467, 0.2548296
        %v3532 = vadd.f32 %v3468, 0.2548296
        %v3533 = vadd.f32 %v3469, 0.2548296
        %v3534 = vadd.f32 %v3470, 0.2548296
        %v3535 = vadd.f32 %v3471, 0.2548296
        %v3536 = vadd.f32 %v3472, 0.2548296
        %v3537 = vadd.f32 %v3473, 0.2548296
        %v3538 = vadd.f32 %v3474, 0.2548296
        %v3539 = vadd.f32 %v3475, 0.2548296
        %v3540 = vadd.f32 %v3476, 0.2548296
        %v3541 = vadd.f32 %v3477, 0.2548296
        %v3542 = vadd.f32 %v3478, 0.2548296
        %v3543 = vadd.f32 %v3479, 0.2548296
        %v3544 = vadd.f32 %v3480, 0.2548296
        %v3545 = vadd.f32 %v3481, 0.2548296
        %v3546 = vadd.f32 %v3482, 0.2548296
        %v3547 = vadd.f32 %v3483, 0.2548296
        %v3548 = vadd.f32 %v3484, 0.2548296
        %v3549 = vadd.f32 %v3485, 0.2548296
        %v3550 = vadd.f32 %v3486, 0.2548296
        %v3551 = vadd.f32 %v3487, 0.2548296
        %v3552 = vadd.f32 %v3488, 0.2548296
        %v3553 = vadd.f32 %v3489, 0.2548296
        %v3554 = vadd.f32 %v3490, 0.2548296
        %v3555 = vadd.f32 %v3491, 0.2548296
        %v3556 = vadd.f32 %v3492, 0.2548296
        %v3557 = vadd.f32 %v3493, 0.2548296
        %v3558 = vadd.f32 %v3494, 0.2548296
        %v3559 = vadd.f32 %v3495, 0.2548296
        %v3560 = vadd.f32 %v3496, 0.2548296
        %v3561 = vadd.f32 %v3497, 0.2548296
        %v3562 = vadd.f32 %v3498, 0.2548296
        %v3563 = vadd.f32 %v3499, 0.2548296
        %v3564 = vadd.f32 %v3500, 0.2548296
        %v3565 = vadd.f32 %v3501, 0.2548296
        %v3566 = vadd.f32 %v3502, 0.2548296
        %v3567 = vadd.f32 %v3503, 0.2548296
        %v3568 = vadd.f32 %v3504, 0.2548296
        %v3569 = vadd.f32 %v3505, 0.2548296
        %v3570 = vadd.f32 %v3506, 0.2548296
        %v3571 = vmul.f32 %v3507, %v2995
        %v3572 = vmul.f32 %v3508, %v2996
        %v3573 = vmul.f32 %v3509, %v2997
        %v3574 = vmul.f32 %v3510, %v2998
        %v3575 = vmul.f32 %v3511, %v2999
        %v3576 = vmul.f32 %v3512, %v3000
        %v3577 = vmul.f32 %v3513, %v3001
        %v3578 = vmul.f32 %v3514, %v3002
        %v3579 = vmul.f32 %v3515, %v3003
        %v3580 = vmul.f32 %v3516, %v3004
        %v3581 = vmul.f32 %v3517, %v3005
        %v3582 = vmul.f32 %v3518, %v3006
        %v3583 = vmul.f32 %v3519, %v3007
        %v3584 = vmul.f32 %v3520, %v3008
        %v3585 = vmul.f32 %v3521, %v3009
        %v3586 = vmul.f32 %v3522, %v3010
        %v3587 = vmul.f32 %v3523, %v3011
        %v3588 = vmul.f32 %v3524, %v3012
        %v3589 = vmul.f32 %v3525, %v3013
        %v3590 = vmul.f32 %v3526, %v3014
        %v3591 = vmul.f32 %v3527, %v3015
        %v3592 = vmul.f32 %v3528, %v3016
        %v3593 = vmul.f32 %v3529, %v3017
        %v3594 = vmul.f32 %v3530, %v3018
        %v3595 = vmul.f32 %v3531, %v3019
        %v3596 = vmul.f32 %v3532, %v3020
        %v3597 = vmul.f32 %v3533, %v3021
        %v3598 = vmul.f32 %v3534, %v3022
        %v3599 = vmul.f32 %v3535, %v3023
        %v3600 = vmul.f32 %v3536, %v3024
        %v3601 = vmul.f32 %v3537, %v3025
        %v3602 = vmul.f32 %v3538, %v3026
        %v3603 = vmul.f32 %v3539, %v3027
        %v3604 = vmul.f32 %v3540, %v3028
        %v3605 = vmul.f32 %v3541, %v3029
        %v3606 = vmul.f32 %v3542, %v3030
        %v3607 = vmul.f32 %v3543, %v3031
        %v3608 = vmul.f32 %v3544, %v3032
        %v3609 = vmul.f32 %v3545, %v3033
        %v3610 = vmul.f32 %v3546, %v3034
        %v3611 = vmul.f32 %v3547, %v3035
        %v3612 = vmul.f32 %v3548, %v3036
        %v3613 = vmul.f32 %v3549, %v3037
        %v3614 = vmul.f32 %v3550, %v3038
        %v3615 = vmul.f32 %v3551, %v3039
        %v3616 = vmul.f32 %v3552, %v3040
        %v3617 = vmul.f32 %v3553, %v3041
        %v3618 = vmul.f32 %v3554, %v3042
        %v3619 = vmul.f32 %v3555, %v3043
        %v3620 = vmul.f32 %v3556, %v3044
        %v3621 = vmul.f32 %v3557, %v3045
        %v3622 = vmul.f32 %v3558, %v3046
        %v3623 = vmul.f32 %v3559, %v3047
        %v3624 = vmul.f32 %v3560, %v3048
        %v3625 = vmul.f32 %v3561, %v3049
        %v3626 = vmul.f32 %v3562, %v3050
        %v3627 = vmul.f32 %v3563, %v3051
        %v3628 = vmul.f32 %v3564, %v3052
        %v3629 = vmul.f32 %v3565, %v3053
        %v3630 = vmul.f32 %v3566, %v3054
        %v3631 = vmul.f32 %v3567, %v3055
        %v3632 = vmul.f32 %v3568, %v3056
        %v3633 = vmul.f32 %v3569, %v3057
        %v3634 = vmul.f32 %v3570, %v3058
        %v3635 = vsub.f32 0.0, %v2803
        %v3636 = vsub.f32 0.0, %v2804
        %v3637 = vsub.f32 0.0, %v2805
        %v3638 = vsub.f32 0.0, %v2806
        %v3639 = vsub.f32 0.0, %v2807
        %v3640 = vsub.f32 0.0, %v2808
        %v3641 = vsub.f32 0.0, %v2809
        %v3642 = vsub.f32 0.0, %v2810
        %v3643 = vsub.f32 0.0, %v2811
        %v3644 = vsub.f32 0.0, %v2812
        %v3645 = vsub.f32 0.0, %v2813
        %v3646 = vsub.f32 0.0, %v2814
        %v3647 = vsub.f32 0.0, %v2815
        %v3648 = vsub.f32 0.0, %v2816
        %v3649 = vsub.f32 0.0, %v2817
        %v3650 = vsub.f32 0.0, %v2818
        %v3651 = vsub.f32 0.0, %v2819
        %v3652 = vsub.f32 0.0, %v2820
        %v3653 = vsub.f32 0.0, %v2821
        %v3654 = vsub.f32 0.0, %v2822
        %v3655 = vsub.f32 0.0, %v2823
        %v3656 = vsub.f32 0.0, %v2824
        %v3657 = vsub.f32 0.0, %v2825
        %v3658 = vsub.f32 0.0, %v2826
        %v3659 = vsub.f32 0.0, %v2827
        %v3660 = vsub.f32 0.0, %v2828
        %v3661 = vsub.f32 0.0, %v2829
        %v3662 = vsub.f32 0.0, %v2830
        %v3663 = vsub.f32 0.0, %v2831
        %v3664 = vsub.f32 0.0, %v2832
        %v3665 = vsub.f32 0.0, %v2833
        %v3666 = vsub.f32 0.0, %v2834
        %v3667 = vsub.f32 0.0, %v2835
        %v3668 = vsub.f32 0.0, %v2836
        %v3669 = vsub.f32 0.0, %v2837
        %v3670 = vsub.f32 0.0, %v2838
        %v3671 = vsub.f32 0.0, %v2839
        %v3672 = vsub.f32 0.0, %v2840
        %v3673 = vsub.f32 0.0, %v2841
        %v3674 = vsub.f32 0.0, %v2842
        %v3675 = vsub.f32 0.0, %v2843
        %v3676 = vsub.f32 0.0, %v2844
        %v3677 = vsub.f32 0.0, %v2845
        %v3678 = vsub.f32 0.0, %v2846
        %v3679 = vsub.f32 0.0, %v2847
        %v3680 = vsub.f32 0.0, %v2848
        %v3681 = vsub.f32 0.0, %v2849
        %v3682 = vsub.f32 0.0, %v2850
        %v3683 = vsub.f32 0.0, %v2851
        %v3684 = vsub.f32 0.0, %v2852
        %v3685 = vsub.f32 0.0, %v2853
        %v3686 = vsub.f32 0.0, %v2854
        %v3687 = vsub.f32 0.0, %v2855
        %v3688 = vsub.f32 0.0, %v2856
        %v3689 = vsub.f32 0.0, %v2857
        %v3690 = vsub.f32 0.0, %v2858
        %v3691 = vsub.f32 0.0, %v2859
        %v3692 = vsub.f32 0.0, %v2860
        %v3693 = vsub.f32 0.0, %v2861
        %v3694 = vsub.f32 0.0, %v2862
        %v3695 = vsub.f32 0.0, %v2863
        %v3696 = vsub.f32 0.0, %v2864
        %v3697 = vsub.f32 0.0, %v2865
        %v3698 = vsub.f32 0.0, %v2866
        %v3699 = vmul.f32 %v3635, %v2803
        %v3700 = vmul.f32 %v3636, %v2804
        %v3701 = vmul.f32 %v3637, %v2805
        %v3702 = vmul.f32 %v3638, %v2806
        %v3703 = vmul.f32 %v3639, %v2807
        %v3704 = vmul.f32 %v3640, %v2808
        %v3705 = vmul.f32 %v3641, %v2809
        %v3706 = vmul.f32 %v3642, %v2810
        %v3707 = vmul.f32 %v3643, %v2811
        %v3708 = vmul.f32 %v3644, %v2812
        %v3709 = vmul.f32 %v3645, %v2813
        %v3710 = vmul.f32 %v3646, %v2814
        %v3711 = vmul.f32 %v3647, %v2815
        %v3712 = vmul.f32 %v3648, %v2816
        %v3713 = vmul.f32 %v3649, %v2817
        %v3714 = vmul.f32 %v3650, %v2818
        %v3715 = vmul.f32 %v3651, %v2819
        %v3716 = vmul.f32 %v3652, %v2820
        %v3717 = vmul.f32 %v3653, %v2821
        %v3718 = vmul.f32 %v3654, %v2822
        %v3719 = vmul.f32 %v3655, %v2823
        %v3720 = vmul.f32 %v3656, %v2824
        %v3721 = vmul.f32 %v3657, %v2825
        %v3722 = vmul.f32 %v3658, %v2826
        %v3723 = vmul.f32 %v3659, %v2827
        %v3724 = vmul.f32 %v3660, %v2828
        %v3725 = vmul.f32 %v3661, %v2829
        %v3726 = vmul.f32 %v3662, %v2830
        %v3727 = vmul.f32 %v3663, %v2831
        %v3728 = vmul.f32 %v3664, %v2832
        %v3729 = vmul.f32 %v3665, %v2833
        %v3730 = vmul.f32 %v3666, %v2834
        %v3731 = vmul.f32 %v3667, %v2835
        %v3732 = vmul.f32 %v3668, %v2836
        %v3733 = vmul.f32 %v3669, %v2837
        %v3734 = vmul.f32 %v3670, %v2838
        %v3735 = vmul.f32 %v3671, %v2839
        %v3736 = vmul.f32 %v3672, %v2840
        %v3737 = vmul.f32 %v3673, %v2841
        %v3738 = vmul.f32 %v3674, %v2842
        %v3739 = vmul.f32 %v3675, %v2843
        %v3740 = vmul.f32 %v3676, %v2844
        %v3741 = vmul.f32 %v3677, %v2845
        %v3742 = vmul.f32 %v3678, %v2846
        %v3743 = vmul.f32 %v3679, %v2847
        %v3744 = vmul.f32 %v3680, %v2848
        %v3745 = vmul.f32 %v3681, %v2849
        %v3746 = vmul.f32 %v3682, %v2850
        %v3747 = vmul.f32 %v3683, %v2851
        %v3748 = vmul.f32 %v3684, %v2852
        %v3749 = vmul.f32 %v3685, %v2853
        %v3750 = vmul.f32 %v3686, %v2854
        %v3751 = vmul.f32 %v3687, %v2855
        %v3752 = vmul.f32 %v3688, %v2856
        %v3753 = vmul.f32 %v3689, %v2857
        %v3754 = vmul.f32 %v3690, %v2858
        %v3755 = vmul.f32 %v3691, %v2859
        %v3756 = vmul.f32 %v3692, %v2860
        %v3757 = vmul.f32 %v3693, %v2861
        %v3758 = vmul.f32 %v3694, %v2862
        %v3759 = vmul.f32 %v3695, %v2863
        %v3760 = vmul.f32 %v3696, %v2864
        %v3761 = vmul.f32 %v3697, %v2865
        %v3762 = vmul.f32 %v3698, %v2866
        %v3763 = vmul.f32 %v3699, 1.442695
        %v3764 = vpow.pop %v3763
        %v3765 = vmul.f32 %v3700, 1.442695
        %v3766 = vpow.pop %v3765
        %v3767 = vmul.f32 %v3701, 1.442695
        %v3768 = vpow.pop %v3767
        %v3769 = vmul.f32 %v3702, 1.442695
        %v3770 = vpow.pop %v3769
        %v3771 = vmul.f32 %v3703, 1.442695
        %v3772 = vpow.pop %v3771
        %v3773 = vmul.f32 %v3704, 1.442695
        %v3774 = vpow.pop %v3773
        %v3775 = vmul.f32 %v3705, 1.442695
        %v3776 = vpow.pop %v3775
        %v3777 = vmul.f32 %v3706, 1.442695
        %v3778 = vpow.pop %v3777
        %v3779 = vmul.f32 %v3707, 1.442695
        %v3780 = vpow.pop %v3779
        %v3781 = vmul.f32 %v3708, 1.442695
        %v3782 = vpow.pop %v3781
        %v3783 = vmul.f32 %v3709, 1.442695
        %v3784 = vpow.pop %v3783
        %v3785 = vmul.f32 %v3710, 1.442695
        %v3786 = vpow.pop %v3785
        %v3787 = vmul.f32 %v3711, 1.442695
        %v3788 = vpow.pop %v3787
        %v3789 = vmul.f32 %v3712, 1.442695
        %v3790 = vpow.pop %v3789
        %v3791 = vmul.f32 %v3713, 1.442695
        %v3792 = vpow.pop %v3791
        %v3793 = vmul.f32 %v3714, 1.442695
        %v3794 = vpow.pop %v3793
        %v3795 = vmul.f32 %v3715, 1.442695
        %v3796 = vpow.pop %v3795
        %v3797 = vmul.f32 %v3716, 1.442695
        %v3798 = vpow.pop %v3797
        %v3799 = vmul.f32 %v3717, 1.442695
        %v3800 = vpow.pop %v3799
        %v3801 = vmul.f32 %v3718, 1.442695
        %v3802 = vpow.pop %v3801
        %v3803 = vmul.f32 %v3719, 1.442695
        %v3804 = vpow.pop %v3803
        %v3805 = vmul.f32 %v3720, 1.442695
        %v3806 = vpow.pop %v3805
        %v3807 = vmul.f32 %v3721, 1.442695
        %v3808 = vpow.pop %v3807
        %v3809 = vmul.f32 %v3722, 1.442695
        %v3810 = vpow.pop %v3809
        %v3811 = vmul.f32 %v3723, 1.442695
        %v3812 = vpow.pop %v3811
        %v3813 = vmul.f32 %v3724, 1.442695
        %v3814 = vpow.pop %v3813
        %v3815 = vmul.f32 %v3725, 1.442695
        %v3816 = vpow.pop %v3815
        %v3817 = vmul.f32 %v3726, 1.442695
        %v3818 = vpow.pop %v3817
        %v3819 = vmul.f32 %v3727, 1.442695
        %v3820 = vpow.pop %v3819
        %v3821 = vmul.f32 %v3728, 1.442695
        %v3822 = vpow.pop %v3821
        %v3823 = vmul.f32 %v3729, 1.442695
        %v3824 = vpow.pop %v3823
        %v3825 = vmul.f32 %v3730, 1.442695
        %v3826 = vpow.pop %v3825
        %v3827 = vmul.f32 %v3731, 1.442695
        %v3828 = vpow.pop %v3827
        %v3829 = vmul.f32 %v3732, 1.442695
        %v3830 = vpow.pop %v3829
        %v3831 = vmul.f32 %v3733, 1.442695
        %v3832 = vpow.pop %v3831
        %v3833 = vmul.f32 %v3734, 1.442695
        %v3834 = vpow.pop %v3833
        %v3835 = vmul.f32 %v3735, 1.442695
        %v3836 = vpow.pop %v3835
        %v3837 = vmul.f32 %v3736, 1.442695
        %v3838 = vpow.pop %v3837
        %v3839 = vmul.f32 %v3737, 1.442695
        %v3840 = vpow.pop %v3839
        %v3841 = vmul.f32 %v3738, 1.442695
        %v3842 = vpow.pop %v3841
        %v3843 = vmul.f32 %v3739, 1.442695
        %v3844 = vpow.pop %v3843
        %v3845 = vmul.f32 %v3740, 1.442695
        %v3846 = vpow.pop %v3845
        %v3847 = vmul.f32 %v3741, 1.442695
        %v3848 = vpow.pop %v3847
        %v3849 = vmul.f32 %v3742, 1.442695
        %v3850 = vpow.pop %v3849
        %v3851 = vmul.f32 %v3743, 1.442695
        %v3852 = vpow.pop %v3851
        %v3853 = vmul.f32 %v3744, 1.442695
        %v3854 = vpow.pop %v3853
        %v3855 = vmul.f32 %v3745, 1.442695
        %v3856 = vpow.pop %v3855
        %v3857 = vmul.f32 %v3746, 1.442695
        %v3858 = vpow.pop %v3857
        %v3859 = vmul.f32 %v3747, 1.442695
        %v3860 = vpow.pop %v3859
        %v3861 = vmul.f32 %v3748, 1.442695
        %v3862 = vpow.pop %v3861
        %v3863 = vmul.f32 %v3749, 1.442695
        %v3864 = vpow.pop %v3863
        %v3865 = vmul.f32 %v3750, 1.442695
        %v3866 = vpow.pop %v3865
        %v3867 = vmul.f32 %v3751, 1.442695
        %v3868 = vpow.pop %v3867
        %v3869 = vmul.f32 %v3752, 1.442695
        %v3870 = vpow.pop %v3869
        %v3871 = vmul.f32 %v3753, 1.442695
        %v3872 = vpow.pop %v3871
        %v3873 = vmul.f32 %v3754, 1.442695
        %v3874 = vpow.pop %v3873
        %v3875 = vmul.f32 %v3755, 1.442695
        %v3876 = vpow.pop %v3875
        %v3877 = vmul.f32 %v3756, 1.442695
        %v3878 = vpow.pop %v3877
        %v3879 = vmul.f32 %v3757, 1.442695
        %v3880 = vpow.pop %v3879
        %v3881 = vmul.f32 %v3758, 1.442695
        %v3882 = vpow.pop %v3881
        %v3883 = vmul.f32 %v3759, 1.442695
        %v3884 = vpow.pop %v3883
        %v3885 = vmul.f32 %v3760, 1.442695
        %v3886 = vpow.pop %v3885
        %v3887 = vmul.f32 %v3761, 1.442695
        %v3888 = vpow.pop %v3887
        %v3889 = vmul.f32 %v3762, 1.442695
        %v3890 = vpow.pop %v3889
        %v3891 = vmul.f32 %v3571, %v3764
        %v3892 = vmul.f32 %v3572, %v3766
        %v3893 = vmul.f32 %v3573, %v3768
        %v3894 = vmul.f32 %v3574, %v3770
        %v3895 = vmul.f32 %v3575, %v3772
        %v3896 = vmul.f32 %v3576, %v3774
        %v3897 = vmul.f32 %v3577, %v3776
        %v3898 = vmul.f32 %v3578, %v3778
        %v3899 = vmul.f32 %v3579, %v3780
        %v3900 = vmul.f32 %v3580, %v3782
        %v3901 = vmul.f32 %v3581, %v3784
        %v3902 = vmul.f32 %v3582, %v3786
        %v3903 = vmul.f32 %v3583, %v3788
        %v3904 = vmul.f32 %v3584, %v3790
        %v3905 = vmul.f32 %v3585, %v3792
        %v3906 = vmul.f32 %v3586, %v3794
        %v3907 = vmul.f32 %v3587, %v3796
        %v3908 = vmul.f32 %v3588, %v3798
        %v3909 = vmul.f32 %v3589, %v3800
        %v3910 = vmul.f32 %v3590, %v3802
        %v3911 = vmul.f32 %v3591, %v3804
        %v3912 = vmul.f32 %v3592, %v3806
        %v3913 = vmul.f32 %v3593, %v3808
        %v3914 = vmul.f32 %v3594, %v3810
        %v3915 = vmul.f32 %v3595, %v3812
        %v3916 = vmul.f32 %v3596, %v3814
        %v3917 = vmul.f32 %v3597, %v3816
        %v3918 = vmul.f32 %v3598, %v3818
        %v3919 = vmul.f32 %v3599, %v3820
        %v3920 = vmul.f32 %v3600, %v3822
        %v3921 = vmul.f32 %v3601, %v3824
        %v3922 = vmul.f32 %v3602, %v3826
        %v3923 = vmul.f32 %v3603, %v3828
        %v3924 = vmul.f32 %v3604, %v3830
        %v3925 = vmul.f32 %v3605, %v3832
        %v3926 = vmul.f32 %v3606, %v3834
        %v3927 = vmul.f32 %v3607, %v3836
        %v3928 = vmul.f32 %v3608, %v3838
        %v3929 = vmul.f32 %v3609, %v3840
        %v3930 = vmul.f32 %v3610, %v3842
        %v3931 = vmul.f32 %v3611, %v3844
        %v3932 = vmul.f32 %v3612, %v3846
        %v3933 = vmul.f32 %v3613, %v3848
        %v3934 = vmul.f32 %v3614, %v3850
        %v3935 = vmul.f32 %v3615, %v3852
        %v3936 = vmul.f32 %v3616, %v3854
        %v3937 = vmul.f32 %v3617, %v3856
        %v3938 = vmul.f32 %v3618, %v3858
        %v3939 = vmul.f32 %v3619, %v3860
        %v3940 = vmul.f32 %v3620, %v3862
        %v3941 = vmul.f32 %v3621, %v3864
        %v3942 = vmul.f32 %v3622, %v3866
        %v3943 = vmul.f32 %v3623, %v3868
        %v3944 = vmul.f32 %v3624, %v3870
        %v3945 = vmul.f32 %v3625, %v3872
        %v3946 = vmul.f32 %v3626, %v3874
        %v3947 = vmul.f32 %v3627, %v3876
        %v3948 = vmul.f32 %v3628, %v3878
        %v3949 = vmul.f32 %v3629, %v3880
        %v3950 = vmul.f32 %v3630, %v3882
        %v3951 = vmul.f32 %v3631, %v3884
        %v3952 = vmul.f32 %v3632, %v3886
        %v3953 = vmul.f32 %v3633, %v3888
        %v3954 = vmul.f32 %v3634, %v3890
        %v3955 = vsub.f32 1.0, %v3891
        %v3956 = vsub.f32 1.0, %v3892
        %v3957 = vsub.f32 1.0, %v3893
        %v3958 = vsub.f32 1.0, %v3894
        %v3959 = vsub.f32 1.0, %v3895
        %v3960 = vsub.f32 1.0, %v3896
        %v3961 = vsub.f32 1.0, %v3897
        %v3962 = vsub.f32 1.0, %v3898
        %v3963 = vsub.f32 1.0, %v3899
        %v3964 = vsub.f32 1.0, %v3900
        %v3965 = vsub.f32 1.0, %v3901
        %v3966 = vsub.f32 1.0, %v3902
        %v3967 = vsub.f32 1.0, %v3903
        %v3968 = vsub.f32 1.0, %v3904
        %v3969 = vsub.f32 1.0, %v3905
        %v3970 = vsub.f32 1.0, %v3906
        %v3971 = vsub.f32 1.0, %v3907
        %v3972 = vsub.f32 1.0, %v3908
        %v3973 = vsub.f32 1.0, %v3909
        %v3974 = vsub.f32 1.0, %v3910
        %v3975 = vsub.f32 1.0, %v3911
        %v3976 = vsub.f32 1.0, %v3912
        %v3977 = vsub.f32 1.0, %v3913
        %v3978 = vsub.f32 1.0, %v3914
        %v3979 = vsub.f32 1.0, %v3915
        %v3980 = vsub.f32 1.0, %v3916
        %v3981 = vsub.f32 1.0, %v3917
        %v3982 = vsub.f32 1.0, %v3918
        %v3983 = vsub.f32 1.0, %v3919
        %v3984 = vsub.f32 1.0, %v3920
        %v3985 = vsub.f32 1.0, %v3921
        %v3986 = vsub.f32 1.0, %v3922
        %v3987 = vsub.f32 1.0, %v3923
        %v3988 = vsub.f32 1.0, %v3924
        %v3989 = vsub.f32 1.0, %v3925
        %v3990 = vsub.f32 1.0, %v3926
        %v3991 = vsub.f32 1.0, %v3927
        %v3992 = vsub.f32 1.0, %v3928
        %v3993 = vsub.f32 1.0, %v3929
        %v3994 = vsub.f32 1.0, %v3930
        %v3995 = vsub.f32 1.0, %v3931
        %v3996 = vsub.f32 1.0, %v3932
        %v3997 = vsub.f32 1.0, %v3933
        %v3998 = vsub.f32 1.0, %v3934
        %v3999 = vsub.f32 1.0, %v3935
        %v4000 = vsub.f32 1.0, %v3936
        %v4001 = vsub.f32 1.0, %v3937
        %v4002 = vsub.f32 1.0, %v3938
        %v4003 = vsub.f32 1.0, %v3939
        %v4004 = vsub.f32 1.0, %v3940
        %v4005 = vsub.f32 1.0, %v3941
        %v4006 = vsub.f32 1.0, %v3942
        %v4007 = vsub.f32 1.0, %v3943
        %v4008 = vsub.f32 1.0, %v3944
        %v4009 = vsub.f32 1.0, %v3945
        %v4010 = vsub.f32 1.0, %v3946
        %v4011 = vsub.f32 1.0, %v3947
        %v4012 = vsub.f32 1.0, %v3948
        %v4013 = vsub.f32 1.0, %v3949
        %v4014 = vsub.f32 1.0, %v3950
        %v4015 = vsub.f32 1.0, %v3951
        %v4016 = vsub.f32 1.0, %v3952
        %v4017 = vsub.f32 1.0, %v3953
        %v4018 = vsub.f32 1.0, %v3954
        %v4019 = vmul.f32 %v2739, %v3955
        %v4020 = vmul.f32 %v2740, %v3956
        %v4021 = vmul.f32 %v2741, %v3957
        %v4022 = vmul.f32 %v2742, %v3958
        %v4023 = vmul.f32 %v2743, %v3959
        %v4024 = vmul.f32 %v2744, %v3960
        %v4025 = vmul.f32 %v2745, %v3961
        %v4026 = vmul.f32 %v2746, %v3962
        %v4027 = vmul.f32 %v2747, %v3963
        %v4028 = vmul.f32 %v2748, %v3964
        %v4029 = vmul.f32 %v2749, %v3965
        %v4030 = vmul.f32 %v2750, %v3966
        %v4031 = vmul.f32 %v2751, %v3967
        %v4032 = vmul.f32 %v2752, %v3968
        %v4033 = vmul.f32 %v2753, %v3969
        %v4034 = vmul.f32 %v2754, %v3970
        %v4035 = vmul.f32 %v2755, %v3971
        %v4036 = vmul.f32 %v2756, %v3972
        %v4037 = vmul.f32 %v2757, %v3973
        %v4038 = vmul.f32 %v2758, %v3974
        %v4039 = vmul.f32 %v2759, %v3975
        %v4040 = vmul.f32 %v2760, %v3976
        %v4041 = vmul.f32 %v2761, %v3977
        %v4042 = vmul.f32 %v2762, %v3978
        %v4043 = vmul.f32 %v2763, %v3979
        %v4044 = vmul.f32 %v2764, %v3980
        %v4045 = vmul.f32 %v2765, %v3981
        %v4046 = vmul.f32 %v2766, %v3982
        %v4047 = vmul.f32 %v2767, %v3983
        %v4048 = vmul.f32 %v2768, %v3984
        %v4049 = vmul.f32 %v2769, %v3985
        %v4050 = vmul.f32 %v2770, %v3986
        %v4051 = vmul.f32 %v2771, %v3987
        %v4052 = vmul.f32 %v2772, %v3988
        %v4053 = vmul.f32 %v2773, %v3989
        %v4054 = vmul.f32 %v2774, %v3990
        %v4055 = vmul.f32 %v2775, %v3991
        %v4056 = vmul.f32 %v2776, %v3992
        %v4057 = vmul.f32 %v2777, %v3993
        %v4058 = vmul.f32 %v2778, %v3994
        %v4059 = vmul.f32 %v2779, %v3995
        %v4060 = vmul.f32 %v2780, %v3996
        %v4061 = vmul.f32 %v2781, %v3997
        %v4062 = vmul.f32 %v2782, %v3998
        %v4063 = vmul.f32 %v2783, %v3999
        %v4064 = vmul.f32 %v2784, %v4000
        %v4065 = vmul.f32 %v2785, %v4001
        %v4066 = vmul.f32 %v2786, %v4002
        %v4067 = vmul.f32 %v2787, %v4003
        %v4068 = vmul.f32 %v2788, %v4004
        %v4069 = vmul.f32 %v2789, %v4005
        %v4070 = vmul.f32 %v2790, %v4006
        %v4071 = vmul.f32 %v2791, %v4007
        %v4072 = vmul.f32 %v2792, %v4008
        %v4073 = vmul.f32 %v2793, %v4009
        %v4074 = vmul.f32 %v2794, %v4010
        %v4075 = vmul.f32 %v2795, %v4011
        %v4076 = vmul.f32 %v2796, %v4012
        %v4077 = vmul.f32 %v2797, %v4013
        %v4078 = vmul.f32 %v2798, %v4014
        %v4079 = vmul.f32 %v2799, %v4015
        %v4080 = vmul.f32 %v2800, %v4016
        %v4081 = vmul.f32 %v2801, %v4017
        %v4082 = vmul.f32 %v2802, %v4018
        %v4083 = vadd.f32 %v4019, 1.0
        %v4084 = vadd.f32 %v4020, 1.0
        %v4085 = vadd.f32 %v4021, 1.0
        %v4086 = vadd.f32 %v4022, 1.0
        %v4087 = vadd.f32 %v4023, 1.0
        %v4088 = vadd.f32 %v4024, 1.0
        %v4089 = vadd.f32 %v4025, 1.0
        %v4090 = vadd.f32 %v4026, 1.0
        %v4091 = vadd.f32 %v4027, 1.0
        %v4092 = vadd.f32 %v4028, 1.0
        %v4093 = vadd.f32 %v4029, 1.0
        %v4094 = vadd.f32 %v4030, 1.0
        %v4095 = vadd.f32 %v4031, 1.0
        %v4096 = vadd.f32 %v4032, 1.0
        %v4097 = vadd.f32 %v4033, 1.0
        %v4098 = vadd.f32 %v4034, 1.0
        %v4099 = vadd.f32 %v4035, 1.0
        %v4100 = vadd.f32 %v4036, 1.0
        %v4101 = vadd.f32 %v4037, 1.0
        %v4102 = vadd.f32 %v4038, 1.0
        %v4103 = vadd.f32 %v4039, 1.0
        %v4104 = vadd.f32 %v4040, 1.0
        %v4105 = vadd.f32 %v4041, 1.0
        %v4106 = vadd.f32 %v4042, 1.0
        %v4107 = vadd.f32 %v4043, 1.0
        %v4108 = vadd.f32 %v4044, 1.0
        %v4109 = vadd.f32 %v4045, 1.0
        %v4110 = vadd.f32 %v4046, 1.0
        %v4111 = vadd.f32 %v4047, 1.0
        %v4112 = vadd.f32 %v4048, 1.0
        %v4113 = vadd.f32 %v4049, 1.0
        %v4114 = vadd.f32 %v4050, 1.0
        %v4115 = vadd.f32 %v4051, 1.0
        %v4116 = vadd.f32 %v4052, 1.0
        %v4117 = vadd.f32 %v4053, 1.0
        %v4118 = vadd.f32 %v4054, 1.0
        %v4119 = vadd.f32 %v4055, 1.0
        %v4120 = vadd.f32 %v4056, 1.0
        %v4121 = vadd.f32 %v4057, 1.0
        %v4122 = vadd.f32 %v4058, 1.0
        %v4123 = vadd.f32 %v4059, 1.0
        %v4124 = vadd.f32 %v4060, 1.0
        %v4125 = vadd.f32 %v4061, 1.0
        %v4126 = vadd.f32 %v4062, 1.0
        %v4127 = vadd.f32 %v4063, 1.0
        %v4128 = vadd.f32 %v4064, 1.0
        %v4129 = vadd.f32 %v4065, 1.0
        %v4130 = vadd.f32 %v4066, 1.0
        %v4131 = vadd.f32 %v4067, 1.0
        %v4132 = vadd.f32 %v4068, 1.0
        %v4133 = vadd.f32 %v4069, 1.0
        %v4134 = vadd.f32 %v4070, 1.0
        %v4135 = vadd.f32 %v4071, 1.0
        %v4136 = vadd.f32 %v4072, 1.0
        %v4137 = vadd.f32 %v4073, 1.0
        %v4138 = vadd.f32 %v4074, 1.0
        %v4139 = vadd.f32 %v4075, 1.0
        %v4140 = vadd.f32 %v4076, 1.0
        %v4141 = vadd.f32 %v4077, 1.0
        %v4142 = vadd.f32 %v4078, 1.0
        %v4143 = vadd.f32 %v4079, 1.0
        %v4144 = vadd.f32 %v4080, 1.0
        %v4145 = vadd.f32 %v4081, 1.0
        %v4146 = vadd.f32 %v4082, 1.0
        %v4147 = vmul.f32 %v2547, %v4083
        %v4148 = vmul.f32 %v2548, %v4084
        %v4149 = vmul.f32 %v2549, %v4085
        %v4150 = vmul.f32 %v2550, %v4086
        %v4151 = vmul.f32 %v2551, %v4087
        %v4152 = vmul.f32 %v2552, %v4088
        %v4153 = vmul.f32 %v2553, %v4089
        %v4154 = vmul.f32 %v2554, %v4090
        %v4155 = vmul.f32 %v2555, %v4091
        %v4156 = vmul.f32 %v2556, %v4092
        %v4157 = vmul.f32 %v2557, %v4093
        %v4158 = vmul.f32 %v2558, %v4094
        %v4159 = vmul.f32 %v2559, %v4095
        %v4160 = vmul.f32 %v2560, %v4096
        %v4161 = vmul.f32 %v2561, %v4097
        %v4162 = vmul.f32 %v2562, %v4098
        %v4163 = vmul.f32 %v2563, %v4099
        %v4164 = vmul.f32 %v2564, %v4100
        %v4165 = vmul.f32 %v2565, %v4101
        %v4166 = vmul.f32 %v2566, %v4102
        %v4167 = vmul.f32 %v2567, %v4103
        %v4168 = vmul.f32 %v2568, %v4104
        %v4169 = vmul.f32 %v2569, %v4105
        %v4170 = vmul.f32 %v2570, %v4106
        %v4171 = vmul.f32 %v2571, %v4107
        %v4172 = vmul.f32 %v2572, %v4108
        %v4173 = vmul.f32 %v2573, %v4109
        %v4174 = vmul.f32 %v2574, %v4110
        %v4175 = vmul.f32 %v2575, %v4111
        %v4176 = vmul.f32 %v2576, %v4112
        %v4177 = vmul.f32 %v2577, %v4113
        %v4178 = vmul.f32 %v2578, %v4114
        %v4179 = vmul.f32 %v2579, %v4115
        %v4180 = vmul.f32 %v2580, %v4116
        %v4181 = vmul.f32 %v2581, %v4117
        %v4182 = vmul.f32 %v2582, %v4118
        %v4183 = vmul.f32 %v2583, %v4119
        %v4184 = vmul.f32 %v2584, %v4120
        %v4185 = vmul.f32 %v2585, %v4121
        %v4186 = vmul.f32 %v2586, %v4122
        %v4187 = vmul.f32 %v2587, %v4123
        %v4188 = vmul.f32 %v2588, %v4124
        %v4189 = vmul.f32 %v2589, %v4125
        %v4190 = vmul.f32 %v2590, %v4126
        %v4191 = vmul.f32 %v2591, %v4127
        %v4192 = vmul.f32 %v2592, %v4128
        %v4193 = vmul.f32 %v2593, %v4129
        %v4194 = vmul.f32 %v2594, %v4130
        %v4195 = vmul.f32 %v2595, %v4131
        %v4196 = vmul.f32 %v2596, %v4132
        %v4197 = vmul.f32 %v2597, %v4133
        %v4198 = vmul.f32 %v2598, %v4134
        %v4199 = vmul.f32 %v2599, %v4135
        %v4200 = vmul.f32 %v2600, %v4136
        %v4201 = vmul.f32 %v2601, %v4137
        %v4202 = vmul.f32 %v2602, %v4138
        %v4203 = vmul.f32 %v2603, %v4139
        %v4204 = vmul.f32 %v2604, %v4140
        %v4205 = vmul.f32 %v2605, %v4141
        %v4206 = vmul.f32 %v2606, %v4142
        %v4207 = vmul.f32 %v2607, %v4143
        %v4208 = vmul.f32 %v2608, %v4144
        %v4209 = vmul.f32 %v2609, %v4145
        %v4210 = vmul.f32 %v2610, %v4146
        %v4211 = vmul.f32 %v4147, %v4147
        %v4212 = vmul.f32 %v4148, %v4148
        %v4213 = vmul.f32 %v4149, %v4149
        %v4214 = vmul.f32 %v4150, %v4150
        %v4215 = vmul.f32 %v4151, %v4151
        %v4216 = vmul.f32 %v4152, %v4152
        %v4217 = vmul.f32 %v4153, %v4153
        %v4218 = vmul.f32 %v4154, %v4154
        %v4219 = vmul.f32 %v4155, %v4155
        %v4220 = vmul.f32 %v4156, %v4156
        %v4221 = vmul.f32 %v4157, %v4157
        %v4222 = vmul.f32 %v4158, %v4158
        %v4223 = vmul.f32 %v4159, %v4159
        %v4224 = vmul.f32 %v4160, %v4160
        %v4225 = vmul.f32 %v4161, %v4161
        %v4226 = vmul.f32 %v4162, %v4162
        %v4227 = vmul.f32 %v4163, %v4163
        %v4228 = vmul.f32 %v4164, %v4164
        %v4229 = vmul.f32 %v4165, %v4165
        %v4230 = vmul.f32 %v4166, %v4166
        %v4231 = vmul.f32 %v4167, %v4167
        %v4232 = vmul.f32 %v4168, %v4168
        %v4233 = vmul.f32 %v4169, %v4169
        %v4234 = vmul.f32 %v4170, %v4170
        %v4235 = vmul.f32 %v4171, %v4171
        %v4236 = vmul.f32 %v4172, %v4172
        %v4237 = vmul.f32 %v4173, %v4173
        %v4238 = vmul.f32 %v4174, %v4174
        %v4239 = vmul.f32 %v4175, %v4175
        %v4240 = vmul.f32 %v4176, %v4176
        %v4241 = vmul.f32 %v4177, %v4177
        %v4242 = vmul.f32 %v4178, %v4178
        %v4243 = vmul.f32 %v4179, %v4179
        %v4244 = vmul.f32 %v4180, %v4180
        %v4245 = vmul.f32 %v4181, %v4181
        %v4246 = vmul.f32 %v4182, %v4182
        %v4247 = vmul.f32 %v4183, %v4183
        %v4248 = vmul.f32 %v4184, %v4184
        %v4249 = vmul.f32 %v4185, %v4185
        %v4250 = vmul.f32 %v4186, %v4186
        %v4251 = vmul.f32 %v4187, %v4187
        %v4252 = vmul.f32 %v4188, %v4188
        %v4253 = vmul.f32 %v4189, %v4189
        %v4254 = vmul.f32 %v4190, %v4190
        %v4255 = vmul.f32 %v4191, %v4191
        %v4256 = vmul.f32 %v4192, %v4192
        %v4257 = vmul.f32 %v4193, %v4193
        %v4258 = vmul.f32 %v4194, %v4194
        %v4259 = vmul.f32 %v4195, %v4195
        %v4260 = vmul.f32 %v4196, %v4196
        %v4261 = vmul.f32 %v4197, %v4197
        %v4262 = vmul.f32 %v4198, %v4198
        %v4263 = vmul.f32 %v4199, %v4199
        %v4264 = vmul.f32 %v4200, %v4200
        %v4265 = vmul.f32 %v4201, %v4201
        %v4266 = vmul.f32 %v4202, %v4202
        %v4267 = vmul.f32 %v4203, %v4203
        %v4268 = vmul.f32 %v4204, %v4204
        %v4269 = vmul.f32 %v4205, %v4205
        %v4270 = vmul.f32 %v4206, %v4206
        %v4271 = vmul.f32 %v4207, %v4207
        %v4272 = vmul.f32 %v4208, %v4208
        %v4273 = vmul.f32 %v4209, %v4209
        %v4274 = vmul.f32 %v4210, %v4210
        %v4275 = vadd.f32 %v4211, %v4213
        %v4276 = vadd.f32 %v4275, %v4215
        %v4277 = vadd.f32 %v4276, %v4217
        %v4278 = vadd.f32 %v4277, %v4219
        %v4279 = vadd.f32 %v4278, %v4221
        %v4280 = vadd.f32 %v4279, %v4223
        %v4281 = vadd.f32 %v4280, %v4225
        %v4282 = vadd.f32 %v4281, %v4227
        %v4283 = vadd.f32 %v4282, %v4229
        %v4284 = vadd.f32 %v4283, %v4231
        %v4285 = vadd.f32 %v4284, %v4233
        %v4286 = vadd.f32 %v4285, %v4235
        %v4287 = vadd.f32 %v4286, %v4237
        %v4288 = vadd.f32 %v4287, %v4239
        %v4289 = vadd.f32 %v4288, %v4241
        %v4290 = vadd.f32 %v4289, %v4243
        %v4291 = vadd.f32 %v4290, %v4245
        %v4292 = vadd.f32 %v4291, %v4247
        %v4293 = vadd.f32 %v4292, %v4249
        %v4294 = vadd.f32 %v4293, %v4251
        %v4295 = vadd.f32 %v4294, %v4253
        %v4296 = vadd.f32 %v4295, %v4255
        %v4297 = vadd.f32 %v4296, %v4257
        %v4298 = vadd.f32 %v4297, %v4259
        %v4299 = vadd.f32 %v4298, %v4261
        %v4300 = vadd.f32 %v4299, %v4263
        %v4301 = vadd.f32 %v4300, %v4265
        %v4302 = vadd.f32 %v4301, %v4267
        %v4303 = vadd.f32 %v4302, %v4269
        %v4304 = vadd.f32 %v4303, %v4271
        %v4305 = vadd.f32 %v4304, %v4273
        %v4306 = vrot.slane %v4305, 4
        %v4307 = vadd.f32 %v4305, %v4306
        %v4308 = vrot.slane %v4307, 2
        %v4309 = vadd.f32 %v4307, %v4308
        %v4310 = vrot.slane %v4309, 1
        %v4311 = vadd.f32 %v4309, %v4310
        %v4312 = vadd.f32 %v4212, %v4214
        %v4313 = vadd.f32 %v4312, %v4216
        %v4314 = vadd.f32 %v4313, %v4218
        %v4315 = vadd.f32 %v4314, %v4220
        %v4316 = vadd.f32 %v4315, %v4222
        %v4317 = vadd.f32 %v4316, %v4224
        %v4318 = vadd.f32 %v4317, %v4226
        %v4319 = vadd.f32 %v4318, %v4228
        %v4320 = vadd.f32 %v4319, %v4230
        %v4321 = vadd.f32 %v4320, %v4232
        %v4322 = vadd.f32 %v4321, %v4234
        %v4323 = vadd.f32 %v4322, %v4236
        %v4324 = vadd.f32 %v4323, %v4238
        %v4325 = vadd.f32 %v4324, %v4240
        %v4326 = vadd.f32 %v4325, %v4242
        %v4327 = vadd.f32 %v4326, %v4244
        %v4328 = vadd.f32 %v4327, %v4246
        %v4329 = vadd.f32 %v4328, %v4248
        %v4330 = vadd.f32 %v4329, %v4250
        %v4331 = vadd.f32 %v4330, %v4252
        %v4332 = vadd.f32 %v4331, %v4254
        %v4333 = vadd.f32 %v4332, %v4256
        %v4334 = vadd.f32 %v4333, %v4258
        %v4335 = vadd.f32 %v4334, %v4260
        %v4336 = vadd.f32 %v4335, %v4262
        %v4337 = vadd.f32 %v4336, %v4264
        %v4338 = vadd.f32 %v4337, %v4266
        %v4339 = vadd.f32 %v4338, %v4268
        %v4340 = vadd.f32 %v4339, %v4270
        %v4341 = vadd.f32 %v4340, %v4272
        %v4342 = vadd.f32 %v4341, %v4274
        %v4343 = vrot.slane %v4342, 4
        %v4344 = vadd.f32 %v4342, %v4343
        %v4345 = vrot.slane %v4344, 2
        %v4346 = vadd.f32 %v4344, %v4345
        %v4347 = vrot.slane %v4346, 1
        %v4348 = vadd.f32 %v4346, %v4347
        %v4349 = vrsqrt.pop %v4311
        %v4350 = vmul.f32 %v4311, %v4349
        %vm4351 = vcmp.eq.f32.partialorder %v4311, inf
        %v4352 = vsel %vm4351, %v4311, %v4350
        %vm4353 = vcmp.eq.f32.partialorder %v4311, 0.0
        %v4354 = vand.u32 %v4311, 2147483648
        %v4355 = vsel %vm4353, %v4354, %v4352
        %v4356 = vrsqrt.pop %v4348
        %v4357 = vmul.f32 %v4348, %v4356
        %vm4358 = vcmp.eq.f32.partialorder %v4348, inf
        %v4359 = vsel %vm4358, %v4348, %v4357
        %vm4360 = vcmp.eq.f32.partialorder %v4348, 0.0
        %v4361 = vand.u32 %v4348, 2147483648
        %v4362 = vsel %vm4360, %v4361, %v4359
        %v4363 = vadd.f32 %v4355, %v4362
        %4364 = vadd.xlane.f32.xlu0 %v4363
        %v4365 = vpop.xlane.xlu0 %4364
        %v4366 = vrcp.pop 256.0
        %v4367 = vmul.f32 %v4365, %v4366
        %v4368 = vadd.f32 %v4367, 1e-06
        %v4369 = vrcp.pop %v4368
        %v4370 = vmul.f32 %v4355, %v4369
        %v4371 = vmul.f32 %v4362, %v4369
        %v4372 = vld [vmem:[%s7] sm:$0x3]
        %v4375 = vcombine.low %v4370, %v4371
        %v4377 = vunpack.c.l.s4 1966171168
        %v4378 = vunpack.c.0.s8 %v4377
        %v4379 = vlaneseq
        %v4380 = vshrl.u32 %v4379, 7
        %v4381 = vsub.s32 %v4378, %v4380
        %v4382 = vrot.slane %v4375, %v4381
        %v4384 = vunpack.c.l.s4 1966171168
        %v4385 = vunpack.c.0.s8 %v4384
        %v4386 = vlaneseq
        %v4387 = vshrl.u32 %v4386, 7
        %v4388 = vsub.s32 %v4385, %v4387
        %v4389 = vrot.slane %v4382, %v4388
        %v4391 = vmul.f32 %v4372, %v4389
        %v4392 = vadd.f32 %v4391, 1.0
        %v4394 = vlaneseq
        %v4395 = vshrl.u32 %v4394, 7
        %v4396 = vsub.s32 0, %v4395
        %v4397 = vrot.slane %v4392, %v4396
        %v4398 = vlaneseq
        %v4399 = vshrl.u32 %v4398, 7
        %v4400 = vsub.s32 1, %v4399
        %v4401 = vrot.slane %v4392, %v4400
        %v4404 = vmul.f32 %v4147, %v4397
        %v4405 = vmul.f32 %v4148, %v4401
        %v4406 = vmul.f32 %v4149, %v4397
        %v4407 = vmul.f32 %v4150, %v4401
        %v4408 = vmul.f32 %v4151, %v4397
        %v4409 = vmul.f32 %v4152, %v4401
        %v4410 = vmul.f32 %v4153, %v4397
        %v4411 = vmul.f32 %v4154, %v4401
        %v4412 = vmul.f32 %v4155, %v4397
        %v4413 = vmul.f32 %v4156, %v4401
        %v4414 = vmul.f32 %v4157, %v4397
        %v4415 = vmul.f32 %v4158, %v4401
        %v4416 = vmul.f32 %v4159, %v4397
        %v4417 = vmul.f32 %v4160, %v4401
        %v4418 = vmul.f32 %v4161, %v4397
        %v4419 = vmul.f32 %v4162, %v4401
        %v4420 = vmul.f32 %v4163, %v4397
        %v4421 = vmul.f32 %v4164, %v4401
        %v4422 = vmul.f32 %v4165, %v4397
        %v4423 = vmul.f32 %v4166, %v4401
        %v4424 = vmul.f32 %v4167, %v4397
        %v4425 = vmul.f32 %v4168, %v4401
        %v4426 = vmul.f32 %v4169, %v4397
        %v4427 = vmul.f32 %v4170, %v4401
        %v4428 = vmul.f32 %v4171, %v4397
        %v4429 = vmul.f32 %v4172, %v4401
        %v4430 = vmul.f32 %v4173, %v4397
        %v4431 = vmul.f32 %v4174, %v4401
        %v4432 = vmul.f32 %v4175, %v4397
        %v4433 = vmul.f32 %v4176, %v4401
        %v4434 = vmul.f32 %v4177, %v4397
        %v4435 = vmul.f32 %v4178, %v4401
        %v4436 = vmul.f32 %v4179, %v4397
        %v4437 = vmul.f32 %v4180, %v4401
        %v4438 = vmul.f32 %v4181, %v4397
        %v4439 = vmul.f32 %v4182, %v4401
        %v4440 = vmul.f32 %v4183, %v4397
        %v4441 = vmul.f32 %v4184, %v4401
        %v4442 = vmul.f32 %v4185, %v4397
        %v4443 = vmul.f32 %v4186, %v4401
        %v4444 = vmul.f32 %v4187, %v4397
        %v4445 = vmul.f32 %v4188, %v4401
        %v4446 = vmul.f32 %v4189, %v4397
        %v4447 = vmul.f32 %v4190, %v4401
        %v4448 = vmul.f32 %v4191, %v4397
        %v4449 = vmul.f32 %v4192, %v4401
        %v4450 = vmul.f32 %v4193, %v4397
        %v4451 = vmul.f32 %v4194, %v4401
        %v4452 = vmul.f32 %v4195, %v4397
        %v4453 = vmul.f32 %v4196, %v4401
        %v4454 = vmul.f32 %v4197, %v4397
        %v4455 = vmul.f32 %v4198, %v4401
        %v4456 = vmul.f32 %v4199, %v4397
        %v4457 = vmul.f32 %v4200, %v4401
        %v4458 = vmul.f32 %v4201, %v4397
        %v4459 = vmul.f32 %v4202, %v4401
        %v4460 = vmul.f32 %v4203, %v4397
        %v4461 = vmul.f32 %v4204, %v4401
        %v4462 = vmul.f32 %v4205, %v4397
        %v4463 = vmul.f32 %v4206, %v4401
        %v4464 = vmul.f32 %v4207, %v4397
        %v4465 = vmul.f32 %v4208, %v4401
        %v4466 = vmul.f32 %v4209, %v4397
        %v4467 = vmul.f32 %v4210, %v4401
        %v4468 = vld [vmem:[%s8] sm:$0x3]
        %v4470 = vlaneseq
        %v4471 = vshrl.u32 %v4470, 7
        %v4472 = vsub.s32 0, %v4471
        %v4473 = vrot.slane %v4468, %v4472
        %v4474 = vlaneseq
        %v4475 = vshrl.u32 %v4474, 7
        %v4476 = vsub.s32 1, %v4475
        %v4477 = vrot.slane %v4468, %v4476
        %v4480 = vadd.f32 %v4404, %v4473
        %v4481 = vadd.f32 %v4405, %v4477
        %v4482 = vadd.f32 %v4406, %v4473
        %v4483 = vadd.f32 %v4407, %v4477
        %v4484 = vadd.f32 %v4408, %v4473
        %v4485 = vadd.f32 %v4409, %v4477
        %v4486 = vadd.f32 %v4410, %v4473
        %v4487 = vadd.f32 %v4411, %v4477
        %v4488 = vadd.f32 %v4412, %v4473
        %v4489 = vadd.f32 %v4413, %v4477
        %v4490 = vadd.f32 %v4414, %v4473
        %v4491 = vadd.f32 %v4415, %v4477
        %v4492 = vadd.f32 %v4416, %v4473
        %v4493 = vadd.f32 %v4417, %v4477
        %v4494 = vadd.f32 %v4418, %v4473
        %v4495 = vadd.f32 %v4419, %v4477
        %v4496 = vadd.f32 %v4420, %v4473
        %v4497 = vadd.f32 %v4421, %v4477
        %v4498 = vadd.f32 %v4422, %v4473
        %v4499 = vadd.f32 %v4423, %v4477
        %v4500 = vadd.f32 %v4424, %v4473
        %v4501 = vadd.f32 %v4425, %v4477
        %v4502 = vadd.f32 %v4426, %v4473
        %v4503 = vadd.f32 %v4427, %v4477
        %v4504 = vadd.f32 %v4428, %v4473
        %v4505 = vadd.f32 %v4429, %v4477
        %v4506 = vadd.f32 %v4430, %v4473
        %v4507 = vadd.f32 %v4431, %v4477
        %v4508 = vadd.f32 %v4432, %v4473
        %v4509 = vadd.f32 %v4433, %v4477
        %v4510 = vadd.f32 %v4434, %v4473
        %v4511 = vadd.f32 %v4435, %v4477
        %v4512 = vadd.f32 %v4436, %v4473
        %v4513 = vadd.f32 %v4437, %v4477
        %v4514 = vadd.f32 %v4438, %v4473
        %v4515 = vadd.f32 %v4439, %v4477
        %v4516 = vadd.f32 %v4440, %v4473
        %v4517 = vadd.f32 %v4441, %v4477
        %v4518 = vadd.f32 %v4442, %v4473
        %v4519 = vadd.f32 %v4443, %v4477
        %v4520 = vadd.f32 %v4444, %v4473
        %v4521 = vadd.f32 %v4445, %v4477
        %v4522 = vadd.f32 %v4446, %v4473
        %v4523 = vadd.f32 %v4447, %v4477
        %v4524 = vadd.f32 %v4448, %v4473
        %v4525 = vadd.f32 %v4449, %v4477
        %v4526 = vadd.f32 %v4450, %v4473
        %v4527 = vadd.f32 %v4451, %v4477
        %v4528 = vadd.f32 %v4452, %v4473
        %v4529 = vadd.f32 %v4453, %v4477
        %v4530 = vadd.f32 %v4454, %v4473
        %v4531 = vadd.f32 %v4455, %v4477
        %v4532 = vadd.f32 %v4456, %v4473
        %v4533 = vadd.f32 %v4457, %v4477
        %v4534 = vadd.f32 %v4458, %v4473
        %v4535 = vadd.f32 %v4459, %v4477
        %v4536 = vadd.f32 %v4460, %v4473
        %v4537 = vadd.f32 %v4461, %v4477
        %v4538 = vadd.f32 %v4462, %v4473
        %v4539 = vadd.f32 %v4463, %v4477
        %v4540 = vadd.f32 %v4464, %v4473
        %v4541 = vadd.f32 %v4465, %v4477
        %v4542 = vadd.f32 %v4466, %v4473
        %v4543 = vadd.f32 %v4467, %v4477
        %v4544 = vpack.c.bf16 %v4482, %v4480
        %v4545 = vpack.c.bf16 %v4483, %v4481
        %v4546 = vpack.c.bf16 %v4486, %v4484
        %v4547 = vpack.c.bf16 %v4487, %v4485
        %v4548 = vpack.c.bf16 %v4490, %v4488
        %v4549 = vpack.c.bf16 %v4491, %v4489
        %v4550 = vpack.c.bf16 %v4494, %v4492
        %v4551 = vpack.c.bf16 %v4495, %v4493
        %v4552 = vpack.c.bf16 %v4498, %v4496
        %v4553 = vpack.c.bf16 %v4499, %v4497
        %v4554 = vpack.c.bf16 %v4502, %v4500
        %v4555 = vpack.c.bf16 %v4503, %v4501
        %v4556 = vpack.c.bf16 %v4506, %v4504
        %v4557 = vpack.c.bf16 %v4507, %v4505
        %v4558 = vpack.c.bf16 %v4510, %v4508
        %v4559 = vpack.c.bf16 %v4511, %v4509
        %v4560 = vpack.c.bf16 %v4514, %v4512
        %v4561 = vpack.c.bf16 %v4515, %v4513
        %v4562 = vpack.c.bf16 %v4518, %v4516
        %v4563 = vpack.c.bf16 %v4519, %v4517
        %v4564 = vpack.c.bf16 %v4522, %v4520
        %v4565 = vpack.c.bf16 %v4523, %v4521
        %v4566 = vpack.c.bf16 %v4526, %v4524
        %v4567 = vpack.c.bf16 %v4527, %v4525
        %v4568 = vpack.c.bf16 %v4530, %v4528
        %v4569 = vpack.c.bf16 %v4531, %v4529
        %v4570 = vpack.c.bf16 %v4534, %v4532
        %v4571 = vpack.c.bf16 %v4535, %v4533
        %v4572 = vpack.c.bf16 %v4538, %v4536
        %v4573 = vpack.c.bf16 %v4539, %v4537
        %v4574 = vpack.c.bf16 %v4542, %v4540
        %v4575 = vpack.c.bf16 %v4543, %v4541
        %v4576 = vld [vmem:[%s9] sm:$0xf]
        %v4577 = vld [vmem:[%s9 + $0x4] sm:$0xf]
        %v4578 = vld [vmem:[%s9 + $0x8] sm:$0xf]
        %v4579 = vld [vmem:[%s9 + $0xc] sm:$0xf]
        %v4580 = vld [vmem:[%s9 + $0x10] sm:$0xf]
        %v4581 = vld [vmem:[%s9 + $0x14] sm:$0xf]
        %v4582 = vld [vmem:[%s9 + $0x18] sm:$0xf]
        %v4583 = vld [vmem:[%s9 + $0x1c] sm:$0xf]
        %v4584 = vld [vmem:[%s9 + $0x20] sm:$0xf]
        %v4585 = vld [vmem:[%s9 + $0x24] sm:$0xf]
        %v4586 = vld [vmem:[%s9 + $0x28] sm:$0xf]
        %v4587 = vld [vmem:[%s9 + $0x2c] sm:$0xf]
        %v4588 = vld [vmem:[%s9 + $0x30] sm:$0xf]
        %v4589 = vld [vmem:[%s9 + $0x34] sm:$0xf]
        %v4590 = vld [vmem:[%s9 + $0x38] sm:$0xf]
        %v4591 = vld [vmem:[%s9 + $0x3c] sm:$0xf]
        %v4592 = vld [vmem:[%s9 + $0x40] sm:$0xf]
        %v4593 = vld [vmem:[%s9 + $0x44] sm:$0xf]
        %v4594 = vld [vmem:[%s9 + $0x48] sm:$0xf]
        %v4595 = vld [vmem:[%s9 + $0x4c] sm:$0xf]
        %v4596 = vld [vmem:[%s9 + $0x50] sm:$0xf]
        %v4597 = vld [vmem:[%s9 + $0x54] sm:$0xf]
        %v4598 = vld [vmem:[%s9 + $0x58] sm:$0xf]
        %v4599 = vld [vmem:[%s9 + $0x5c] sm:$0xf]
        %v4600 = vld [vmem:[%s9 + $0x60] sm:$0xf]
        %v4601 = vld [vmem:[%s9 + $0x64] sm:$0xf]
        %v4602 = vld [vmem:[%s9 + $0x68] sm:$0xf]
        %v4603 = vld [vmem:[%s9 + $0x6c] sm:$0xf]
        %v4604 = vld [vmem:[%s9 + $0x70] sm:$0xf]
        %v4605 = vld [vmem:[%s9 + $0x74] sm:$0xf]
        %v4606 = vld [vmem:[%s9 + $0x78] sm:$0xf]
        %v4607 = vld [vmem:[%s9 + $0x7c] sm:$0xf]
        %v4608 = vld [vmem:[%s10] sm:$0x1]
        %v4610 = vlaneseq
        %v4611 = vshrl.u32 %v4610, 7
        %v4612 = vsub.s32 0, %v4611
        %v4613 = vrot.slane %v4608, %v4612
        %v4647 = vunpack.c.l.b16 %v4576
        %v4648 = vunpack.c.l.b16 %v4577
        %v4649 = vunpack.c.l.b16 %v4578
        %v4650 = vunpack.c.l.b16 %v4579
        %v4651 = vunpack.c.l.b16 %v4580
        %v4652 = vunpack.c.l.b16 %v4581
        %v4653 = vunpack.c.l.b16 %v4582
        %v4654 = vunpack.c.l.b16 %v4583
        %v4655 = vunpack.c.l.b16 %v4584
        %v4656 = vunpack.c.l.b16 %v4585
        %v4657 = vunpack.c.l.b16 %v4586
        %v4658 = vunpack.c.l.b16 %v4587
        %v4659 = vunpack.c.l.b16 %v4588
        %v4660 = vunpack.c.l.b16 %v4589
        %v4661 = vunpack.c.l.b16 %v4590
        %v4662 = vunpack.c.l.b16 %v4591
        %v4663 = vunpack.c.l.b16 %v4592
        %v4664 = vunpack.c.l.b16 %v4593
        %v4665 = vunpack.c.l.b16 %v4594
        %v4666 = vunpack.c.l.b16 %v4595
        %v4667 = vunpack.c.l.b16 %v4596
        %v4668 = vunpack.c.l.b16 %v4597
        %v4669 = vunpack.c.l.b16 %v4598
        %v4670 = vunpack.c.l.b16 %v4599
        %v4671 = vunpack.c.l.b16 %v4600
        %v4672 = vunpack.c.l.b16 %v4601
        %v4673 = vunpack.c.l.b16 %v4602
        %v4674 = vunpack.c.l.b16 %v4603
        %v4675 = vunpack.c.l.b16 %v4604
        %v4676 = vunpack.c.l.b16 %v4605
        %v4677 = vunpack.c.l.b16 %v4606
        %v4678 = vunpack.c.l.b16 %v4607
        %v4679 = vpack.c.b16 %v4648, %v4647
        %v4680 = vpack.c.b16 %v4650, %v4649
        %v4681 = vpack.c.b16 %v4652, %v4651
        %v4682 = vpack.c.b16 %v4654, %v4653
        %v4683 = vpack.c.b16 %v4656, %v4655
        %v4684 = vpack.c.b16 %v4658, %v4657
        %v4685 = vpack.c.b16 %v4660, %v4659
        %v4686 = vpack.c.b16 %v4662, %v4661
        %v4687 = vpack.c.b16 %v4664, %v4663
        %v4688 = vpack.c.b16 %v4666, %v4665
        %v4689 = vpack.c.b16 %v4668, %v4667
        %v4690 = vpack.c.b16 %v4670, %v4669
        %v4691 = vpack.c.b16 %v4672, %v4671
        %v4692 = vpack.c.b16 %v4674, %v4673
        %v4693 = vpack.c.b16 %v4676, %v4675
        %v4694 = vpack.c.b16 %v4678, %v4677
        %4711 = vmatprep.subr.bf16.mxu0 0
        %4712 = vmatpush1.bf16.msra.mxu0 %v4679
        %4713 = vmatprep.subr.bf16.mxu0 0
        %4714 = vmatpush1.bf16.msra.mxu0 %v4680
        %4715 = vmatprep.subr.bf16.mxu0 0
        %4716 = vmatpush1.bf16.msra.mxu0 %v4681
        %4717 = vmatprep.subr.bf16.mxu0 0
        %4718 = vmatpush1.bf16.msra.mxu0 %v4682
        %4719 = vmatprep.subr.bf16.mxu0 0
        %4720 = vmatpush1.bf16.msra.mxu0 %v4683
        %4721 = vmatprep.subr.bf16.mxu0 0
        %4722 = vmatpush1.bf16.msra.mxu0 %v4684
        %4723 = vmatprep.subr.bf16.mxu0 0
        %4724 = vmatpush1.bf16.msra.mxu0 %v4685
        %4725 = vmatprep.subr.bf16.mxu0 0
        %4726 = vmatpush1.bf16.msra.mxu0 %v4686
        %4727 = vmatprep.subr.bf16.mxu0 0
        %4728 = vmatpush1.bf16.msra.mxu0 %v4687
        %4729 = vmatprep.subr.bf16.mxu0 0
        %4730 = vmatpush1.bf16.msra.mxu0 %v4688
        %4731 = vmatprep.subr.bf16.mxu0 0
        %4732 = vmatpush1.bf16.msra.mxu0 %v4689
        %4733 = vmatprep.subr.bf16.mxu0 0
        %4734 = vmatpush1.bf16.msra.mxu0 %v4690
        %4735 = vmatprep.subr.bf16.mxu0 0
        %4736 = vmatpush1.bf16.msra.mxu0 %v4691
        %4737 = vmatprep.subr.bf16.mxu0 0
        %4738 = vmatpush1.bf16.msra.mxu0 %v4692
        %4739 = vmatprep.subr.bf16.mxu0 0
        %4740 = vmatpush1.bf16.msra.mxu0 %v4693
        %4741 = vmatprep.subr.bf16.mxu0 0
        %4742 = vmatpush1.bf16.msra.mxu0 %v4694
        %4743 = vmatprep.mubr.bf16.mxu0 %v4545
        %4744 = vmatmul.mubr.bf16.gmra.mrb[0].mxu0 %v4544
        %v4745 = vpop.f32.mrb[0].mxu0
        %v4746 = vadd.f32 %v4613, %v4745
        %v4747 = vpop.f32.mrb[0].mxu0
        %v4748 = vpop.f32.mrb[0].mxu0
        %v4749 = vadd.f32 %v4613, %v4748
        %v4750 = vpop.f32.mrb[0].mxu0
        %4751 = vmatprep.mubr.bf16.mxu0 %v4547
        %4752 = vmatmul.mubr.bf16.gmra.mrb[0].mxu0 %v4546
        %v4753 = vpop.f32.mrb[0].mxu0
        %v4754 = vadd.f32 %v4613, %v4753
        %v4755 = vpop.f32.mrb[0].mxu0
        %v4756 = vpop.f32.mrb[0].mxu0
        %v4757 = vadd.f32 %v4613, %v4756
        %v4758 = vpop.f32.mrb[0].mxu0
        %4759 = vmatprep.mubr.bf16.mxu0 %v4549
        %4760 = vmatmul.mubr.bf16.gmra.mrb[0].mxu0 %v4548
        %v4761 = vpop.f32.mrb[0].mxu0
        %v4762 = vadd.f32 %v4613, %v4761
        %v4763 = vpop.f32.mrb[0].mxu0
        %v4764 = vpop.f32.mrb[0].mxu0
        %v4765 = vadd.f32 %v4613, %v4764
        %v4766 = vpop.f32.mrb[0].mxu0
        %4767 = vmatprep.mubr.bf16.mxu0 %v4551
        %4768 = vmatmul.mubr.bf16.gmra.mrb[0].mxu0 %v4550
        %v4769 = vpop.f32.mrb[0].mxu0
        %v4770 = vadd.f32 %v4613, %v4769
        %v4771 = vpop.f32.mrb[0].mxu0
        %v4772 = vpop.f32.mrb[0].mxu0
        %v4773 = vadd.f32 %v4613, %v4772
        %v4774 = vpop.f32.mrb[0].mxu0
        %4775 = vmatprep.mubr.bf16.mxu0 %v4553
        %4776 = vmatmul.mubr.bf16.gmra.mrb[0].mxu0 %v4552
        %v4777 = vpop.f32.mrb[0].mxu0
        %v4778 = vadd.f32 %v4613, %v4777
        %v4779 = vpop.f32.mrb[0].mxu0
        %v4780 = vpop.f32.mrb[0].mxu0
        %v4781 = vadd.f32 %v4613, %v4780
        %v4782 = vpop.f32.mrb[0].mxu0
        %4783 = vmatprep.mubr.bf16.mxu0 %v4555
        %4784 = vmatmul.mubr.bf16.gmra.mrb[0].mxu0 %v4554
        %v4785 = vpop.f32.mrb[0].mxu0
        %v4786 = vadd.f32 %v4613, %v4785
        %v4787 = vpop.f32.mrb[0].mxu0
        %v4788 = vpop.f32.mrb[0].mxu0
        %v4789 = vadd.f32 %v4613, %v4788
        %v4790 = vpop.f32.mrb[0].mxu0
        %4791 = vmatprep.mubr.bf16.mxu0 %v4557
        %4792 = vmatmul.mubr.bf16.gmra.mrb[0].mxu0 %v4556
        %v4793 = vpop.f32.mrb[0].mxu0
        %v4794 = vadd.f32 %v4613, %v4793
        %v4795 = vpop.f32.mrb[0].mxu0
        %v4796 = vpop.f32.mrb[0].mxu0
        %v4797 = vadd.f32 %v4613, %v4796
        %v4798 = vpop.f32.mrb[0].mxu0
        %4799 = vmatprep.mubr.bf16.mxu0 %v4559
        %4800 = vmatmul.mubr.bf16.gmra.mrb[0].mxu0 %v4558
        %v4801 = vpop.f32.mrb[0].mxu0
        %v4802 = vadd.f32 %v4613, %v4801
        %v4803 = vpop.f32.mrb[0].mxu0
        %v4804 = vpop.f32.mrb[0].mxu0
        %v4805 = vadd.f32 %v4613, %v4804
        %v4806 = vpop.f32.mrb[0].mxu0
        %4807 = vmatprep.mubr.bf16.mxu0 %v4561
        %4808 = vmatmul.mubr.bf16.gmra.mrb[0].mxu0 %v4560
        %v4809 = vpop.f32.mrb[0].mxu0
        %v4810 = vadd.f32 %v4613, %v4809
        %v4811 = vpop.f32.mrb[0].mxu0
        %v4812 = vpop.f32.mrb[0].mxu0
        %v4813 = vadd.f32 %v4613, %v4812
        %v4814 = vpop.f32.mrb[0].mxu0
        %4815 = vmatprep.mubr.bf16.mxu0 %v4563
        %4816 = vmatmul.mubr.bf16.gmra.mrb[0].mxu0 %v4562
        %v4817 = vpop.f32.mrb[0].mxu0
        %v4818 = vadd.f32 %v4613, %v4817
        %v4819 = vpop.f32.mrb[0].mxu0
        %v4820 = vpop.f32.mrb[0].mxu0
        %v4821 = vadd.f32 %v4613, %v4820
        %v4822 = vpop.f32.mrb[0].mxu0
        %4823 = vmatprep.mubr.bf16.mxu0 %v4565
        %4824 = vmatmul.mubr.bf16.gmra.mrb[0].mxu0 %v4564
        %v4825 = vpop.f32.mrb[0].mxu0
        %v4826 = vadd.f32 %v4613, %v4825
        %v4827 = vpop.f32.mrb[0].mxu0
        %v4828 = vpop.f32.mrb[0].mxu0
        %v4829 = vadd.f32 %v4613, %v4828
        %v4830 = vpop.f32.mrb[0].mxu0
        %4831 = vmatprep.mubr.bf16.mxu0 %v4567
        %4832 = vmatmul.mubr.bf16.gmra.mrb[0].mxu0 %v4566
        %v4833 = vpop.f32.mrb[0].mxu0
        %v4834 = vadd.f32 %v4613, %v4833
        %v4835 = vpop.f32.mrb[0].mxu0
        %v4836 = vpop.f32.mrb[0].mxu0
        %v4837 = vadd.f32 %v4613, %v4836
        %v4838 = vpop.f32.mrb[0].mxu0
        %4839 = vmatprep.mubr.bf16.mxu0 %v4569
        %4840 = vmatmul.mubr.bf16.gmra.mrb[0].mxu0 %v4568
        %v4841 = vpop.f32.mrb[0].mxu0
        %v4842 = vadd.f32 %v4613, %v4841
        %v4843 = vpop.f32.mrb[0].mxu0
        %v4844 = vpop.f32.mrb[0].mxu0
        %v4845 = vadd.f32 %v4613, %v4844
        %v4846 = vpop.f32.mrb[0].mxu0
        %4847 = vmatprep.mubr.bf16.mxu0 %v4571
        %4848 = vmatmul.mubr.bf16.gmra.mrb[0].mxu0 %v4570
        %v4849 = vpop.f32.mrb[0].mxu0
        %v4850 = vadd.f32 %v4613, %v4849
        %v4851 = vpop.f32.mrb[0].mxu0
        %v4852 = vpop.f32.mrb[0].mxu0
        %v4853 = vadd.f32 %v4613, %v4852
        %v4854 = vpop.f32.mrb[0].mxu0
        %4855 = vmatprep.mubr.bf16.mxu0 %v4573
        %4856 = vmatmul.mubr.bf16.gmra.mrb[0].mxu0 %v4572
        %v4857 = vpop.f32.mrb[0].mxu0
        %v4858 = vadd.f32 %v4613, %v4857
        %v4859 = vpop.f32.mrb[0].mxu0
        %v4860 = vpop.f32.mrb[0].mxu0
        %v4861 = vadd.f32 %v4613, %v4860
        %v4862 = vpop.f32.mrb[0].mxu0
        %4863 = vmatprep.mubr.bf16.mxu0 %v4575
        %4864 = vmatmul.mubr.bf16.gmra.mrb[0].mxu0 %v4574
        %v4865 = vpop.f32.mrb[0].mxu0
        %v4866 = vadd.f32 %v4613, %v4865
        %v4867 = vpop.f32.mrb[0].mxu0
        %v4868 = vpop.f32.mrb[0].mxu0
        %v4869 = vadd.f32 %v4613, %v4868
        %v4870 = vpop.f32.mrb[0].mxu0
        %4871 = vdwg.mxu0
        %4872 = vxpose.xlu0.b32.start [1/16] %v4746, 128
        %4873 = vxpose.xlu0.b32.cont [2/16] %v4749, 128
        %4874 = vxpose.xlu0.b32.cont [3/16] %v4754, 128
        %4875 = vxpose.xlu0.b32.cont [4/16] %v4757, 128
        %4876 = vxpose.xlu0.b32.cont [5/16] %v4762, 128
        %4877 = vxpose.xlu0.b32.cont [6/16] %v4765, 128
        %4878 = vxpose.xlu0.b32.cont [7/16] %v4770, 128
        %4879 = vxpose.xlu0.b32.cont [8/16] %v4773, 128
        %4880 = vxpose.xlu0.b32.cont [9/16] %v4778, 128
        %4881 = vxpose.xlu0.b32.cont [10/16] %v4781, 128
        %4882 = vxpose.xlu0.b32.cont [11/16] %v4786, 128
        %4883 = vxpose.xlu0.b32.cont [12/16] %v4789, 128
        %4884 = vxpose.xlu0.b32.cont [13/16] %v4794, 128
        %4885 = vxpose.xlu0.b32.cont [14/16] %v4797, 128
        %4886 = vxpose.xlu0.b32.cont [15/16] %v4802, 128
        %4887 = vxpose.xlu0.b32.end [16/16] %v4805, 128
        %v4888 = vpop.trf.xlu0
        %v4889 = vpop.trf.xlu0
        %v4890 = vpop.trf.xlu0
        %v4891 = vpop.trf.xlu0
        %v4892 = vpop.trf.xlu0
        %v4893 = vpop.trf.xlu0
        %v4894 = vpop.trf.xlu0
        %v4895 = vpop.trf.xlu0
        %v4896 = vpop.trf.xlu0
        %v4897 = vpop.trf.xlu0
        %v4898 = vpop.trf.xlu0
        %v4899 = vpop.trf.xlu0
        %v4900 = vpop.trf.xlu0
        %v4901 = vpop.trf.xlu0
        %v4902 = vpop.trf.xlu0
        %v4903 = vpop.trf.xlu0
        %4904 = vxpose.xlu0.b32.start [1/16] %v4810, 128
        %4905 = vxpose.xlu0.b32.cont [2/16] %v4813, 128
        %4906 = vxpose.xlu0.b32.cont [3/16] %v4818, 128
        %4907 = vxpose.xlu0.b32.cont [4/16] %v4821, 128
        %4908 = vxpose.xlu0.b32.cont [5/16] %v4826, 128
        %4909 = vxpose.xlu0.b32.cont [6/16] %v4829, 128
        %4910 = vxpose.xlu0.b32.cont [7/16] %v4834, 128
        %4911 = vxpose.xlu0.b32.cont [8/16] %v4837, 128
        %4912 = vxpose.xlu0.b32.cont [9/16] %v4842, 128
        %4913 = vxpose.xlu0.b32.cont [10/16] %v4845, 128
        %4914 = vxpose.xlu0.b32.cont [11/16] %v4850, 128
        %4915 = vxpose.xlu0.b32.cont [12/16] %v4853, 128
        %4916 = vxpose.xlu0.b32.cont [13/16] %v4858, 128
        %4917 = vxpose.xlu0.b32.cont [14/16] %v4861, 128
        %4918 = vxpose.xlu0.b32.cont [15/16] %v4866, 128
        %4919 = vxpose.xlu0.b32.end [16/16] %v4869, 128
        %v4920 = vpop.trf.xlu0
        %v4921 = vpop.trf.xlu0
        %v4922 = vpop.trf.xlu0
        %v4923 = vpop.trf.xlu0
        %v4924 = vpop.trf.xlu0
        %v4925 = vpop.trf.xlu0
        %v4926 = vpop.trf.xlu0
        %v4927 = vpop.trf.xlu0
        %v4928 = vpop.trf.xlu0
        %v4929 = vpop.trf.xlu0
        %v4930 = vpop.trf.xlu0
        %v4931 = vpop.trf.xlu0
        %v4932 = vpop.trf.xlu0
        %v4933 = vpop.trf.xlu0
        %v4934 = vpop.trf.xlu0
        %v4935 = vpop.trf.xlu0
        %v4936 = vadd.f32 %v406, %v4888
        %v4937 = vadd.f32 %v407, %v4920
        %v4938 = vadd.f32 %v408, %v4889
        %v4939 = vadd.f32 %v409, %v4921
        %v4940 = vadd.f32 %v410, %v4890
        %v4941 = vadd.f32 %v411, %v4922
        %v4942 = vadd.f32 %v412, %v4891
        %v4943 = vadd.f32 %v413, %v4923
        %v4944 = vadd.f32 %v414, %v4892
        %v4945 = vadd.f32 %v415, %v4924
        %v4946 = vadd.f32 %v416, %v4893
        %v4947 = vadd.f32 %v417, %v4925
        %v4948 = vadd.f32 %v418, %v4894
        %v4949 = vadd.f32 %v419, %v4926
        %v4950 = vadd.f32 %v420, %v4895
        %v4951 = vadd.f32 %v421, %v4927
        %v4952 = vadd.f32 %v422, %v4896
        %v4953 = vadd.f32 %v423, %v4928
        %v4954 = vadd.f32 %v424, %v4897
        %v4955 = vadd.f32 %v425, %v4929
        %v4956 = vadd.f32 %v426, %v4898
        %v4957 = vadd.f32 %v427, %v4930
        %v4958 = vadd.f32 %v428, %v4899
        %v4959 = vadd.f32 %v429, %v4931
        %v4960 = vadd.f32 %v430, %v4900
        %v4961 = vadd.f32 %v431, %v4932
        %v4962 = vadd.f32 %v432, %v4901
        %v4963 = vadd.f32 %v433, %v4933
        %v4964 = vadd.f32 %v434, %v4902
        %v4965 = vadd.f32 %v435, %v4934
        %v4966 = vadd.f32 %v436, %v4903
        %v4967 = vadd.f32 %v437, %v4935
        %4968 = vst [vmem:[%s404] sm:$0xff] %v4936
        %4969 = vst [vmem:[%s404 + $0x8] sm:$0xff] %v4937
        %4970 = vst [vmem:[%s404 + $0x10] sm:$0xff] %v4938
        %4971 = vst [vmem:[%s404 + $0x18] sm:$0xff] %v4939
        %4972 = vst [vmem:[%s404 + $0x20] sm:$0xff] %v4940
        %4973 = vst [vmem:[%s404 + $0x28] sm:$0xff] %v4941
        %4974 = vst [vmem:[%s404 + $0x30] sm:$0xff] %v4942
        %4975 = vst [vmem:[%s404 + $0x38] sm:$0xff] %v4943
        %4976 = vst [vmem:[%s404 + $0x40] sm:$0xff] %v4944
        %4977 = vst [vmem:[%s404 + $0x48] sm:$0xff] %v4945
        %4978 = vst [vmem:[%s404 + $0x50] sm:$0xff] %v4946
        %4979 = vst [vmem:[%s404 + $0x58] sm:$0xff] %v4947
        %4980 = vst [vmem:[%s404 + $0x60] sm:$0xff] %v4948
        %4981 = vst [vmem:[%s404 + $0x68] sm:$0xff] %v4949
        %4982 = vst [vmem:[%s404 + $0x70] sm:$0xff] %v4950
        %4983 = vst [vmem:[%s404 + $0x78] sm:$0xff] %v4951
        %4984 = vst [vmem:[%s404 + $0x80] sm:$0xff] %v4952
        %4985 = vst [vmem:[%s404 + $0x88] sm:$0xff] %v4953
        %4986 = vst [vmem:[%s404 + $0x90] sm:$0xff] %v4954
        %4987 = vst [vmem:[%s404 + $0x98] sm:$0xff] %v4955
        %4988 = vst [vmem:[%s404 + $0xa0] sm:$0xff] %v4956
        %4989 = vst [vmem:[%s404 + $0xa8] sm:$0xff] %v4957
        %4990 = vst [vmem:[%s404 + $0xb0] sm:$0xff] %v4958
        %4991 = vst [vmem:[%s404 + $0xb8] sm:$0xff] %v4959
        %4992 = vst [vmem:[%s404 + $0xc0] sm:$0xff] %v4960
        %4993 = vst [vmem:[%s404 + $0xc8] sm:$0xff] %v4961
        %4994 = vst [vmem:[%s404 + $0xd0] sm:$0xff] %v4962
        %4995 = vst [vmem:[%s404 + $0xd8] sm:$0xff] %v4963
        %4996 = vst [vmem:[%s404 + $0xe0] sm:$0xff] %v4964
        %4997 = vst [vmem:[%s404 + $0xe8] sm:$0xff] %v4965
        %4998 = vst [vmem:[%s404 + $0xf0] sm:$0xff] %v4966
        %4999 = vst [vmem:[%s404 + $0xf8] sm:$0xff] %v4967
        %s5000 = sand.u32 %s272, 1
        %s5001 = scalar_lea.sflag [#allocation4], %s5000
        %s5002 = sand.u32 %s272, 1
        %s5003 = smul.addr %s5002, 256
        %s5004 = scalar_lea.vmem [#allocation5], %s5003
        // Predicated region
        $region69: #{convnext_block2.1} parent=63 // pred_check
          %p5005 = pneg %p282
        $region70: #{convnext_block2.1} parent=63 // pred_check_branch
          %5007 = sbr.rel (%p5005) target = $region72
        $region71: #{convnext_block2.1} parent=63 // pred_region
          %s5009 = ssub.s32 4096, 4096
          %5010 = vsyncadd %s5001, %s5009
          %s5011 = smul.addr %s28, 32
          %s5012 = smul.addr %s5011, 128
          %s5013 = scalar_lea.hbm %s11, %s5012
          %s5014 = sshll.u32 %s5004, 4
          %s5015 = int_to_ptr.vmem [resolvable:$true] %s5014
          %5020 = dma.vmem_to_hbm [thread:$0]  %s5015, 4096, %s5013, %s5001, 256, 256, 16
        $region72: #{convnext_block2.1} parent=63 // pred_fallthru
          _
      $region64: #{convnext_block2.1} parent=5 // pred_fallthru
        _
      %p5021 = scmp.le.s32.totalorder 2, %s23
      // Predicated region
      $region73: #{convnext_block2.1} parent=5 // pred_check
        %p5022 = pneg %p5021
      $region74: #{convnext_block2.1} parent=5 // pred_check_branch
        %5024 = sbr.rel (%p5022) target = $region76
      $region75: #{convnext_block2.1} parent=5 // pred_region
        %s5025 = ssub.s32 %s23, 2
        // Predicated region
        $region77: #{convnext_block2.1} parent=75 // pred_check
          %p5026 = pneg %p288
        $region78: #{convnext_block2.1} parent=75 // pred_check_branch
          %5028 = sbr.rel (%p5026) target = $region80
        $region79: #{convnext_block2.1} parent=75 // pred_region
          %s5029 = sand.u32 %s273, 1
          %s5030 = scalar_lea.sflag [#allocation4], %s5029
          %s5031 = sand.u32 %s273, 1
          %s5032 = smul.addr %s5031, 256
          %s5033 = scalar_lea.vmem [#allocation5], %s5032
          %5034 = dma.done %s5030, 4096
        $region80: #{convnext_block2.1} parent=75 // pred_fallthru
          _
      $region76: #{convnext_block2.1} parent=5 // pred_fallthru
        _
    $region6: #{convnext_block2.1} parent=1 // loop_footer
      %s27 = sadd.s32 1, %s23
    $region7: #{convnext_block2.1} parent=1 // loop_footer_branch
      %22 = sbr.rel target = $region3
    $region8: #{convnext_block2.1} parent=1 // loop_exit
      _
    %5035 = vsyncpa [#allocation3], 1
    %s5036 = scalar_lea.sflag [#allocation3], 1
    %5037 = vsyncpa %s5036, 1
    %5038 = vsyncpa [#allocation4], 1
    %s5039 = scalar_lea.sflag [#allocation4], 1
    %5040 = vsyncpa %s5039, 1

</llo_original>
